<compile_context>
chip_gen: v7x
topology: tpu7x:2x2x1
jax: 0.10.0
libtpu: 0.0.40
codegen_flags: <defaults>
</compile_context>

<pallas_src>
import functools

import jax
import jax.numpy as jnp
from jax import lax
from jax.experimental import pallas as pl
from jax.experimental.pallas import tpu as pltpu


def _round_up(x, m):
    return ((x + m - 1) // m) * m


def _vmem_limit_bytes():
    """Generation-aware VMEM limit: 3/4 of physical, capped for safety."""
    try:
        cap = int(pltpu.get_tpu_info().vmem_capacity_bytes)
    except Exception:
        cap = 64 * 1024 * 1024
    return max(32 * 1024 * 1024, min(cap * 3 // 4, 100 * 1024 * 1024))


def _gated_gcn_kernel(h_ref, src_ref, dst_ref,
                      w_ref, b_ref, bn_scale_ref, bn_shift_ref,
                      h_out_ref,
                      ah_ref, bd_ref, eh_ref, acc_ref,
                      *, dout: int, residual: bool):
    f32 = jnp.float32
    bf16 = jnp.bfloat16
    i = pl.program_id(0)

    te = src_ref.shape[0]     # edge tile
    np_ = ah_ref.shape[0]     # padded node count (lane dim of one-hots)

    # ---- one-time init (grid step 0): fused projection + hoisted lane slices ------
    @pl.when(i == 0)
    def _init():
        # proj = [Ah | Bh | Dh | Eh]  (Np, 4*dout): one lane-dense MXU pass.
        proj = jnp.dot(h_ref[...], w_ref[...], preferred_element_type=f32) + b_ref[...]
        ah_ref[...] = proj[:, :dout]                          # f32, needed at finalize
        bd_ref[...] = proj[:, dout:3 * dout].astype(bf16)     # gathered by src (bf16 MXU)
        eh_ref[...] = proj[:, 3 * dout:4 * dout].astype(bf16)  # gathered by dst (bf16 MXU)
        acc_ref[...] = jnp.zeros_like(acc_ref)

    # ---- per edge-tile: build one-hots in-kernel from index columns ---------------
    src_col = src_ref[...]                                     # (TE, 1) int32, -1 = pad
    dst_col = dst_ref[...]                                     # (TE, 1) int32, -1 = pad
    node_iota = lax.broadcasted_iota(jnp.int32, (te, np_), 1)  # column = node id
    src_oh = (node_iota == src_col).astype(bf16)               # (TE, Np), exact 0/1
    dst_oh = (node_iota == dst_col).astype(bf16)               # (TE, Np)

    # gather [Bh|Dh] rows by src and Eh rows by dst (bf16 MXU, f32 accumulation)
    bd_src = jnp.dot(src_oh, bd_ref[...], preferred_element_type=f32)  # (TE, 2*dout)
    eh_dst = jnp.dot(dst_oh, eh_ref[...], preferred_element_type=f32)  # (TE, dout)

    bh_src = bd_src[:, :dout]
    dh_src = bd_src[:, dout:]
    sigma = jax.nn.sigmoid(dh_src + eh_dst)                    # u_add_v -> sigmoid
    msg = bh_src * sigma                                       # u_mul_e

    # scatter-sum both reductions in one matmul:
    #   acc += dst_oh^T (Np,TE) @ [msg | sigma] (TE, 2*dout)
    cat = jnp.concatenate([msg, sigma], axis=1).astype(bf16)
    acc_ref[...] += jnp.dot(dst_oh.T, cat, preferred_element_type=f32)

    # ---- finalize (last grid step) -------------------------------------------------
    @pl.when(i == pl.num_programs(0) - 1)
    def _final():
        sum_sigma_h = acc_ref[:, :dout]
        sum_sigma = acc_ref[:, dout:]
        h_new = ah_ref[...] + sum_sigma_h * pl.reciprocal(sum_sigma + 1e-6, approx=False)
        # BatchNorm1d (eval mode) folded to a per-feature affine.
        # TODO(synk): training-mode BatchNorm (batch statistics) not implemented.
        h_bn = h_new * bn_scale_ref[...] + bn_shift_ref[...]
        h_act = jnp.maximum(h_bn, 0.0)
        if residual:
            h_act = h_ref[...] + h_act
        # TODO(synk): F.dropout is identity in eval mode; training-mode dropout not implemented.
        h_out_ref[...] = h_act.astype(h_out_ref.dtype)


def gated_gcn_edgefeat_only(h, e, src, dst, params, *, residual=False,
                            edge_tile=512):
    """Forward of GatedGCNLayerEdgeFeatOnly. Returns (h_out, e); e passes through unchanged."""
    N, din = h.shape
    dout = params["wA"].shape[1]
    if din != dout:            # module disables residual when dims differ
        residual = False
    E = src.shape[0]

    TE = edge_tile
    n_tiles = max(1, pl.cdiv(E, TE))         # >=1 tile so the output is always written
    e_pad = n_tiles * TE
    Np = _round_up(max(N, 8), 128)           # lane-dense node dim for the one-hot tiles

    # Pad node features with zero rows; pad edges with "null" (-1) indices whose
    # one-hot rows/columns are all zero -> they contribute exactly nothing.
    h_p = jnp.zeros((Np, din), h.dtype).at[:N].set(h)
    pad = e_pad - E
    src_i = src.astype(jnp.int32)
    dst_i = dst.astype(jnp.int32)
    if pad:
        src_i = jnp.concatenate([src_i, jnp.full((pad,), -1, jnp.int32)])
        dst_i = jnp.concatenate([dst_i, jnp.full((pad,), -1, jnp.int32)])
    src_col = src_i.reshape(e_pad, 1)
    dst_col = dst_i.reshape(e_pad, 1)

    # Fuse the four node projections into one lane-dense weight slab [A|B|D|E].
    w_fused = jnp.concatenate(
        [params["wA"], params["wB"], params["wD"], params["wE"]], axis=1)
    b_fused = jnp.concatenate(
        [params["bA"], params["bB"], params["bD"], params["bE"]], axis=1)

    kernel = functools.partial(_gated_gcn_kernel, dout=dout, residual=residual)

    h_out_p = pl.pallas_call(
        kernel,
        grid=(n_tiles,),
        in_specs=[
            pl.BlockSpec((Np, din), lambda i: (0, 0)),         # h (resident)
            pl.BlockSpec((TE, 1), lambda i: (i, 0)),           # src indices (column form)
            pl.BlockSpec((TE, 1), lambda i: (i, 0)),           # dst indices (column form)
            pl.BlockSpec((din, 4 * dout), lambda i: (0, 0)),   # fused weights
            pl.BlockSpec((1, 4 * dout), lambda i: (0, 0)),     # fused bias
            pl.BlockSpec((1, dout), lambda i: (0, 0)),         # BN scale (eval affine)
            pl.BlockSpec((1, dout), lambda i: (0, 0)),         # BN shift
        ],
        out_specs=pl.BlockSpec((Np, dout), lambda i: (0, 0)),
        out_shape=jax.ShapeDtypeStruct((Np, dout), jnp.float32),
        scratch_shapes=[
            pltpu.VMEM((Np, dout), jnp.float32),      # Ah
            pltpu.VMEM((Np, 2 * dout), jnp.bfloat16),  # [Bh | Dh]
            pltpu.VMEM((Np, dout), jnp.bfloat16),      # Eh
            pltpu.VMEM((Np, 2 * dout), jnp.float32),   # acc = [sum_sigma_h | sum_sigma]
        ],
        compiler_params=pltpu.CompilerParams(
            # single grid axis revisits the output/accumulator -> reduction axis
            dimension_semantics=("arbitrary",),
            vmem_limit_bytes=_vmem_limit_bytes(),
        ),
    )(h_p, src_col, dst_col, w_fused, b_fused,
      params["bn_scale"], params["bn_shift"])

    # EdgeFeatOnly: edge features are returned unchanged.
    return h_out_p[:N], e


def reference(h, e, src, dst, params, *, residual=False):
    """Pure-JAX reference mirroring the PyTorch forward (eval mode)."""
    din, dout = params["wA"].shape
    if din != dout:
        residual = False
    Ah = h @ params["wA"] + params["bA"]
    Bh = h @ params["wB"] + params["bB"]
    Dh = h @ params["wD"] + params["bD"]
    Eh = h @ params["wE"] + params["bE"]
    e_edge = Dh[src] + Eh[dst]                       # u_add_v
    sigma = jax.nn.sigmoid(e_edge)
    N = h.shape[0]
    sum_sigma_h = jnp.zeros((N, dout), jnp.float32).at[dst].add(Bh[src] * sigma)
    sum_sigma = jnp.zeros((N, dout), jnp.float32).at[dst].add(sigma)
    h_new = Ah + sum_sigma_h / (sum_sigma + 1e-6)
    h_bn = h_new * params["bn_scale"] + params["bn_shift"]
    h_act = jnp.maximum(h_bn, 0.0)
    if residual:
        h_act = h + h_act
    return h_act, e


if __name__ == "__main__":
    N, E = 32, 600            # nodes, edges (2 edge tiles of 512 incl. padding)
    Din = Dout = 32           # input_dim == output_dim so residual is active

    key = jax.random.PRNGKey(0)
    ks = jax.random.split(key, 12)

    h = jax.random.normal(ks[0], (N, Din), jnp.float32)
    e = jax.random.normal(ks[1], (E, Din), jnp.float32)
    src = jax.random.randint(ks[2], (E,), 0, N, dtype=jnp.int32)
    dst = jax.random.randint(ks[3], (E,), 0, N, dtype=jnp.int32)

    def lin_init(k, din, dout):
        kw, kb = jax.random.split(k)
        bound = 1.0 / jnp.sqrt(din)
        w = jax.random.uniform(kw, (din, dout), jnp.float32, -bound, bound)
        b = jax.random.uniform(kb, (1, dout), jnp.float32, -bound, bound)
        return w, b

    wA, bA = lin_init(ks[4], Din, Dout)
    wB, bB = lin_init(ks[5], Din, Dout)
    wD, bD = lin_init(ks[6], Din, Dout)
    wE, bE = lin_init(ks[7], Din, Dout)

    # BatchNorm1d in eval mode: fold (gamma, beta, running_mean, running_var, eps)
    # into a per-feature affine scale/shift. Use non-trivial stats to exercise it.
    gamma = jax.random.uniform(ks[8], (1, Dout), jnp.float32, 0.5, 1.5)
    beta = jax.random.uniform(ks[9], (1, Dout), jnp.float32, -0.5, 0.5)
    r_mean = 0.1 * jax.random.normal(ks[10], (1, Dout), jnp.float32)
    r_var = jax.random.uniform(ks[11], (1, Dout), jnp.float32, 0.5, 1.5)
    bn_eps = 1e-5
    bn_scale = gamma / jnp.sqrt(r_var + bn_eps)
    bn_shift = beta - r_mean * bn_scale

    params = dict(wA=wA, bA=bA, wB=wB, bB=bB, wD=wD, bD=bD, wE=wE, bE=bE,
                  bn_scale=bn_scale, bn_shift=bn_shift)

    h_out, e_out = gated_gcn_edgefeat_only(h, e, src, dst, params, residual=True)
    jax.block_until_ready((h_out, e_out))

    h_ref, e_ref = reference(h, e, src, dst, params, residual=True)
    # bf16 gather/scatter path (exact 0/1 one-hots, f32 accumulation, but Bh/Dh/Eh and
    # [msg|sigma] rounded to bf16) -> tolerance relaxed vs. the all-f32 reference.
    max_err = float(jnp.max(jnp.abs(h_out - h_ref)))
    assert jnp.allclose(h_out, h_ref, atol=2e-2, rtol=2e-2), (
        "h mismatch, max abs err = %g" % max_err)
    assert jnp.array_equal(e_out, e_ref), "edge features must pass through unchanged"

    print("KERNEL_OK")
</pallas_src>

<mosaic_0001>
module attributes {stable_mosaic.version = 11 : i64} {
  func.func @_gated_gcn_kernel(%arg0: i32, %arg1: memref<128x32xf32, #tpu.memory_space<vmem>>, %arg2: memref<512x1xi32, #tpu.memory_space<vmem>>, %arg3: memref<512x1xi32, #tpu.memory_space<vmem>>, %arg4: memref<32x128xf32, #tpu.memory_space<vmem>>, %arg5: memref<1x128xf32, #tpu.memory_space<vmem>>, %arg6: memref<1x32xf32, #tpu.memory_space<vmem>>, %arg7: memref<1x32xf32, #tpu.memory_space<vmem>>, %arg8: memref<128x32xf32, #tpu.memory_space<vmem>>, %arg9: memref<128x32xf32, #tpu.memory_space<vmem>>, %arg10: memref<128x64xbf16, #tpu.memory_space<vmem>>, %arg11: memref<128x32xbf16, #tpu.memory_space<vmem>>, %arg12: memref<128x64xf32, #tpu.memory_space<vmem>>) attributes {dimension_semantics = [#tpu.dimension_semantics<arbitrary>], iteration_bounds = array<i64: 2>, scalar_prefetch = 0 : i64, scratch_operands = 4 : i64, tpu.core_type = #tpu.core_type<tc>, window_params = [{pipeline_mode = #tpu.pipeline_mode<synchronous>, transform_indices = @transform_0, window_bounds = array<i64: 128, 32>}, {transform_indices = @transform_1, window_bounds = array<i64: 512, 1>}, {transform_indices = @transform_2, window_bounds = array<i64: 512, 1>}, {pipeline_mode = #tpu.pipeline_mode<synchronous>, transform_indices = @transform_3, window_bounds = array<i64: 32, 128>}, {pipeline_mode = #tpu.pipeline_mode<synchronous>, transform_indices = @transform_4, window_bounds = array<i64: 1, 128>}, {pipeline_mode = #tpu.pipeline_mode<synchronous>, transform_indices = @transform_5, window_bounds = array<i64: 1, 32>}, {pipeline_mode = #tpu.pipeline_mode<synchronous>, transform_indices = @transform_6, window_bounds = array<i64: 1, 32>}, {pipeline_mode = #tpu.pipeline_mode<synchronous>, transform_indices = @transform_7, window_bounds = array<i64: 128, 32>}]} {
    %c0_i32 = arith.constant 0 : i32
    %0 = arith.cmpi eq, %arg0, %c0_i32 : i32
    %1 = arith.extui %0 : i1 to i32
    %c0_i32_0 = arith.constant 0 : i32
    %2 = arith.cmpi ne, %1, %c0_i32_0 : i32
    scf.if %2 {
      %c0_16 = arith.constant 0 : index
      %c0_17 = arith.constant 0 : index
      %39 = vector.load %arg1[%c0_16, %c0_17] : memref<128x32xf32, #tpu.memory_space<vmem>>, vector<128x32xf32>
      %c0_18 = arith.constant 0 : index
      %c0_19 = arith.constant 0 : index
      %40 = vector.load %arg4[%c0_18, %c0_19] : memref<32x128xf32, #tpu.memory_space<vmem>>, vector<32x128xf32>
      %cst_20 = arith.constant dense<0.000000e+00> : vector<128x128xf32>
      %41 = tpu.matmul %39, %40, %cst_20 {dimension_numbers = #tpu.dot_dimension_numbers<[1], [0], [0], [1], [0, 0, 1, 1], [], []>} : vector<128x32xf32>, vector<32x128xf32>, vector<128x128xf32> -> vector<128x128xf32>
      %c0_21 = arith.constant 0 : index
      %c0_22 = arith.constant 0 : index
      %42 = vector.load %arg5[%c0_21, %c0_22] : memref<1x128xf32, #tpu.memory_space<vmem>>, vector<1x128xf32>
      %43 = vector.broadcast %42 : vector<1x128xf32> to vector<128x128xf32>
      %44 = arith.addf %41, %43 : vector<128x128xf32>
      %45 = vector.extract_strided_slice %44 {offsets = [0, 0], sizes = [128, 32], strides = [1, 1]} : vector<128x128xf32> to vector<128x32xf32>
      %c0_23 = arith.constant 0 : index
      %c0_24 = arith.constant 0 : index
      %46 = vector.load %arg9[%c0_23, %c0_24] : memref<128x32xf32, #tpu.memory_space<vmem>>, vector<128x32xf32>
      tpu.vector_store %arg9[%c0_23, %c0_24], %45 {strides = array<i32>} : memref<128x32xf32, #tpu.memory_space<vmem>>, vector<128x32xf32>,
      %47 = vector.extract_strided_slice %44 {offsets = [0, 32], sizes = [128, 64], strides = [1, 1]} : vector<128x128xf32> to vector<128x64xf32>
      %48 = arith.truncf %47 : vector<128x64xf32> to vector<128x64xbf16>
      %c0_25 = arith.constant 0 : index
      %c0_26 = arith.constant 0 : index
      %49 = vector.load %arg10[%c0_25, %c0_26] : memref<128x64xbf16, #tpu.memory_space<vmem>>, vector<128x64xbf16>
      tpu.vector_store %arg10[%c0_25, %c0_26], %48 {strides = array<i32>} : memref<128x64xbf16, #tpu.memory_space<vmem>>, vector<128x64xbf16>,
      %50 = vector.extract_strided_slice %44 {offsets = [0, 96], sizes = [128, 32], strides = [1, 1]} : vector<128x128xf32> to vector<128x32xf32>
      %51 = arith.truncf %50 : vector<128x32xf32> to vector<128x32xbf16>
      %c0_27 = arith.constant 0 : index
      %c0_28 = arith.constant 0 : index
      %52 = vector.load %arg11[%c0_27, %c0_28] : memref<128x32xbf16, #tpu.memory_space<vmem>>, vector<128x32xbf16>
      tpu.vector_store %arg11[%c0_27, %c0_28], %51 {strides = array<i32>} : memref<128x32xbf16, #tpu.memory_space<vmem>>, vector<128x32xbf16>,
      %cst_29 = arith.constant 0.000000e+00 : f32
      %53 = vector.broadcast %cst_29 : f32 to vector<128x64xf32>
      %c0_30 = arith.constant 0 : index
      %c0_31 = arith.constant 0 : index
      %54 = vector.load %arg12[%c0_30, %c0_31] : memref<128x64xf32, #tpu.memory_space<vmem>>, vector<128x64xf32>
      tpu.vector_store %arg12[%c0_30, %c0_31], %53 {strides = array<i32>} : memref<128x64xf32, #tpu.memory_space<vmem>>, vector<128x64xf32>,
    } else {
    }
    %c0 = arith.constant 0 : index
    %c0_1 = arith.constant 0 : index
    %3 = vector.load %arg2[%c0, %c0_1] : memref<512x1xi32, #tpu.memory_space<vmem>>, vector<512x1xi32>
    %c0_2 = arith.constant 0 : index
    %c0_3 = arith.constant 0 : index
    %4 = vector.load %arg3[%c0_2, %c0_3] : memref<512x1xi32, #tpu.memory_space<vmem>>, vector<512x1xi32>
    %5 = tpu.iota {dimensions = array<i32: 1>} : vector<512x128xi32>
    %6 = vector.broadcast %3 : vector<512x1xi32> to vector<512x128xi32>
    %7 = arith.cmpi eq, %5, %6 : vector<512x128xi32>
    %8 = arith.extui %7 : vector<512x128xi1> to vector<512x128xi32>
    %9 = arith.sitofp %8 : vector<512x128xi32> to vector<512x128xf32>
    %10 = arith.truncf %9 : vector<512x128xf32> to vector<512x128xbf16>
    %11 = vector.broadcast %4 : vector<512x1xi32> to vector<512x128xi32>
    %12 = arith.cmpi eq, %5, %11 : vector<512x128xi32>
    %13 = arith.extui %12 : vector<512x128xi1> to vector<512x128xi32>
    %14 = arith.sitofp %13 : vector<512x128xi32> to vector<512x128xf32>
    %15 = arith.truncf %14 : vector<512x128xf32> to vector<512x128xbf16>
    %c0_4 = arith.constant 0 : index
    %c0_5 = arith.constant 0 : index
    %16 = vector.load %arg10[%c0_4, %c0_5] : memref<128x64xbf16, #tpu.memory_space<vmem>>, vector<128x64xbf16>
    %cst = arith.constant dense<0.000000e+00> : vector<512x64xf32>
    %17 = tpu.matmul %10, %16, %cst {dimension_numbers = #tpu.dot_dimension_numbers<[1], [0], [0], [1], [0, 0, 1, 1], [], []>} : vector<512x128xbf16>, vector<128x64xbf16>, vector<512x64xf32> -> vector<512x64xf32>
    %c0_6 = arith.constant 0 : index
    %c0_7 = arith.constant 0 : index
    %18 = vector.load %arg11[%c0_6, %c0_7] : memref<128x32xbf16, #tpu.memory_space<vmem>>, vector<128x32xbf16>
    %cst_8 = arith.constant dense<0.000000e+00> : vector<512x32xf32>
    %19 = tpu.matmul %15, %18, %cst_8 {dimension_numbers = #tpu.dot_dimension_numbers<[1], [0], [0], [1], [0, 0, 1, 1], [], []>} : vector<512x128xbf16>, vector<128x32xbf16>, vector<512x32xf32> -> vector<512x32xf32>
    %20 = vector.extract_strided_slice %17 {offsets = [0, 0], sizes = [512, 32], strides = [1, 1]} : vector<512x64xf32> to vector<512x32xf32>
    %21 = vector.extract_strided_slice %17 {offsets = [0, 32], sizes = [512, 32], strides = [1, 1]} : vector<512x64xf32> to vector<512x32xf32>
    %22 = arith.addf %21, %19 : vector<512x32xf32>
    %23 = arith.negf %22 : vector<512x32xf32>
    %24 = math.exp %23 : vector<512x32xf32>
    %cst_9 = arith.constant 1.000000e+00 : f32
    %25 = vector.broadcast %cst_9 : f32 to vector<512x32xf32>
    %26 = arith.addf %25, %24 : vector<512x32xf32>
    %27 = arith.divf %25, %26 : vector<512x32xf32>
    %28 = arith.mulf %20, %27 : vector<512x32xf32>
    %29 = tpu.concatenate %28, %27 in 1 : vector<512x32xf32>, vector<512x32xf32> -> vector<512x64xf32>
    %30 = arith.truncf %29 : vector<512x64xf32> to vector<512x64xbf16>
    %c0_10 = arith.constant 0 : index
    %c0_11 = arith.constant 0 : index
    %31 = vector.load %arg12[%c0_10, %c0_11] : memref<128x64xf32, #tpu.memory_space<vmem>>, vector<128x64xf32>
    %32 = tpu.transpose %15, [1, 0] : vector<512x128xbf16> -> vector<128x512xbf16>
    %cst_12 = arith.constant dense<0.000000e+00> : vector<128x64xf32>
    %33 = tpu.matmul %32, %30, %cst_12 {dimension_numbers = #tpu.dot_dimension_numbers<[1], [0], [0], [1], [0, 0, 1, 1], [], []>} : vector<128x512xbf16>, vector<512x64xbf16>, vector<128x64xf32> -> vector<128x64xf32>
    %34 = arith.addf %31, %33 : vector<128x64xf32>
    %c0_13 = arith.constant 0 : index
    %c0_14 = arith.constant 0 : index
    %35 = vector.load %arg12[%c0_13, %c0_14] : memref<128x64xf32, #tpu.memory_space<vmem>>, vector<128x64xf32>
    tpu.vector_store %arg12[%c0_13, %c0_14], %34 {strides = array<i32>} : memref<128x64xf32, #tpu.memory_space<vmem>>, vector<128x64xf32>,
    %c1_i32 = arith.constant 1 : i32
    %36 = arith.cmpi eq, %arg0, %c1_i32 : i32
    %37 = arith.extui %36 : i1 to i32
    %c0_i32_15 = arith.constant 0 : i32
    %38 = arith.cmpi ne, %37, %c0_i32_15 : i32
    scf.if %38 {
      %c0_16 = arith.constant 0 : index
      %c0_17 = arith.constant 0 : index
      %39 = vector.load %arg12[%c0_16, %c0_17] : memref<128x64xf32, #tpu.memory_space<vmem>>, vector<128x32xf32>
      %c0_18 = arith.constant 0 : index
      %c32 = arith.constant 32 : index
      %40 = vector.load %arg12[%c0_18, %c32] : memref<128x64xf32, #tpu.memory_space<vmem>>, vector<128x32xf32>
      %c0_19 = arith.constant 0 : index
      %c0_20 = arith.constant 0 : index
      %41 = vector.load %arg9[%c0_19, %c0_20] : memref<128x32xf32, #tpu.memory_space<vmem>>, vector<128x32xf32>
      %cst_21 = arith.constant 9.99999997E-7 : f32
      %42 = vector.broadcast %cst_21 : f32 to vector<128x32xf32>
      %43 = arith.addf %40, %42 : vector<128x32xf32>
      %44 = tpu.reciprocal %43 : vector<128x32xf32> -> vector<128x32xf32>
      %45 = arith.mulf %39, %44 : vector<128x32xf32>
      %46 = arith.addf %41, %45 : vector<128x32xf32>
      %c0_22 = arith.constant 0 : index
      %c0_23 = arith.constant 0 : index
      %47 = vector.load %arg6[%c0_22, %c0_23] : memref<1x32xf32, #tpu.memory_space<vmem>>, vector<1x32xf32>
      %48 = vector.broadcast %47 : vector<1x32xf32> to vector<128x32xf32>
      %49 = arith.mulf %46, %48 : vector<128x32xf32>
      %c0_24 = arith.constant 0 : index
      %c0_25 = arith.constant 0 : index
      %50 = vector.load %arg7[%c0_24, %c0_25] : memref<1x32xf32, #tpu.memory_space<vmem>>, vector<1x32xf32>
      %51 = vector.broadcast %50 : vector<1x32xf32> to vector<128x32xf32>
      %52 = arith.addf %49, %51 : vector<128x32xf32>
      %cst_26 = arith.constant 0.000000e+00 : f32
      %53 = vector.broadcast %cst_26 : f32 to vector<128x32xf32>
      %54 = arith.maximumf %52, %53 : vector<128x32xf32>
      %c0_27 = arith.constant 0 : index
      %c0_28 = arith.constant 0 : index
      %55 = vector.load %arg1[%c0_27, %c0_28] : memref<128x32xf32, #tpu.memory_space<vmem>>, vector<128x32xf32>
      %56 = arith.addf %55, %54 : vector<128x32xf32>
      %c0_29 = arith.constant 0 : index
      %c0_30 = arith.constant 0 : index
      %57 = vector.load %arg8[%c0_29, %c0_30] : memref<128x32xf32, #tpu.memory_space<vmem>>, vector<128x32xf32>
      tpu.vector_store %arg8[%c0_29, %c0_30], %56 {strides = array<i32>} : memref<128x32xf32, #tpu.memory_space<vmem>>, vector<128x32xf32>,
    } else {
    }
    return
  }
  func.func @transform_0(%arg0: i32) -> (i32, i32) {
    %c0_i32 = arith.constant 0 : i32
    %c0_i32_0 = arith.constant 0 : i32
    %c0_i32_1 = arith.constant 0 : i32
    return %c0_i32, %c0_i32_0 : i32, i32
  }
  func.func @transform_1(%arg0: i32) -> (i32, i32) {
    %c0_i32 = arith.constant 0 : i32
    %c0_i32_0 = arith.constant 0 : i32
    return %arg0, %c0_i32 : i32, i32
  }
  func.func @transform_2(%arg0: i32) -> (i32, i32) {
    %c0_i32 = arith.constant 0 : i32
    %c0_i32_0 = arith.constant 0 : i32
    return %arg0, %c0_i32 : i32, i32
  }
  func.func @transform_3(%arg0: i32) -> (i32, i32) {
    %c0_i32 = arith.constant 0 : i32
    %c0_i32_0 = arith.constant 0 : i32
    %c0_i32_1 = arith.constant 0 : i32
    return %c0_i32, %c0_i32_0 : i32, i32
  }
  func.func @transform_4(%arg0: i32) -> (i32, i32) {
    %c0_i32 = arith.constant 0 : i32
    %c0_i32_0 = arith.constant 0 : i32
    %c0_i32_1 = arith.constant 0 : i32
    return %c0_i32, %c0_i32_0 : i32, i32
  }
  func.func @transform_5(%arg0: i32) -> (i32, i32) {
    %c0_i32 = arith.constant 0 : i32
    %c0_i32_0 = arith.constant 0 : i32
    %c0_i32_1 = arith.constant 0 : i32
    return %c0_i32, %c0_i32_0 : i32, i32
  }
  func.func @transform_6(%arg0: i32) -> (i32, i32) {
    %c0_i32 = arith.constant 0 : i32
    %c0_i32_0 = arith.constant 0 : i32
    %c0_i32_1 = arith.constant 0 : i32
    return %c0_i32, %c0_i32_0 : i32, i32
  }
  func.func @transform_7(%arg0: i32) -> (i32, i32) {
    %c0_i32 = arith.constant 0 : i32
    %c0_i32_0 = arith.constant 0 : i32
    %c0_i32_1 = arith.constant 0 : i32
    return %c0_i32, %c0_i32_0 : i32, i32
  }
}

</mosaic_0001>

<llo_original>
// kernel: tpu_custom_call.1
$region0: #{tpu_custom_call.1}
  #allocation0 [shape = 'u32[]', space=smem, size = 0x4, offset = 0x4, fixed_abs, tag = 'smem constant byte address 0x4 - core index']
  #allocation1 [shape = 'u32[144,128]{1,0:T(1,128)}', space=vmem, size = 0x12000, scoped, tag = 'internal scratch']
  #allocation2 [shape = 'f32[128,32]{1,0:T(8,128)}', space=vmem, size = 0x10000, scoped, tag = 'scratch operand']
  #allocation3 [shape = 'bf16[128,64]{1,0:T(16,128)(2,1)}', space=vmem, size = 0x8000, scoped, tag = 'scratch operand']
  #allocation4 [shape = 'bf16[128,32]{1,0:T(16,128)(2,1)}', space=vmem, size = 0x8000, scoped, tag = 'scratch operand']
  #allocation5 [shape = 'f32[128,64]{1,0:T(8,128)}', space=vmem, size = 0x10000, scoped, tag = 'scratch operand']
  %s0 = inlined_call_operand.vmem [shape: f32[128,32], index: 0, kind: input, shape index: {}]
  %s1 = inlined_call_operand.vmem [shape: s32[1024,1], index: 1, kind: input, shape index: {}]
  %s2 = inlined_call_operand.vmem [shape: s32[1024,1], index: 2, kind: input, shape index: {}]
  %s3 = inlined_call_operand.vmem [shape: f32[32,128], index: 3, kind: input, shape index: {}]
  %s4 = inlined_call_operand.vmem [shape: f32[1,128], index: 4, kind: input, shape index: {}]
  %s5 = inlined_call_operand.vmem [shape: f32[1,32], index: 5, kind: input, shape index: {}]
  %s6 = inlined_call_operand.vmem [shape: f32[1,32], index: 6, kind: input, shape index: {}]
  %s7 = inlined_call_operand.vmem [shape: f32[128,32], index: 7, kind: output, shape index: {}]
  %s8 = sld [smem:[#allocation0]]
  $region69: #{tpu_custom_call.1} parent=0
    _
  %s10 = ssub.s32 1, %s8
  %s11 = scalar_select 0, %s10, %s8
  loop: start=0, step=1, limit=4
  $region2: #{tpu_custom_call.1} parent=0 // loop_pre_header
    _
  $region3: #{tpu_custom_call.1} parent=0 // loop_header
    %s13 = sphi 0, %s17
    %p14 = scmp.ge.s32.totalorder %s13, 4
    %s21 = sphi 0, %s21
    %s23 = sphi 0, %s21
    %s24 = sphi 0, %s23
    %s38 = sphi 0, %s24
    %s44 = sphi 0, %s46
    %s47 = sphi 0, %s44
    %s48 = sphi 0, %s47
    %s64 = sphi 0, %s48
    %s70 = sphi 0, %s72
    %s73 = sphi 0, %s70
    %s74 = sphi 0, %s73
    %s90 = sphi 0, %s74
    %s94 = sphi 0, %s94
    %s96 = sphi 0, %s94
    %s97 = sphi 0, %s96
    %s111 = sphi 0, %s97
    %s115 = sphi 0, %s115
    %s117 = sphi 0, %s115
    %s118 = sphi 0, %s117
    %s132 = sphi 0, %s118
    %s136 = sphi 0, %s136
    %s138 = sphi 0, %s136
    %s139 = sphi 0, %s138
    %s153 = sphi 0, %s139
    %s157 = sphi 0, %s157
    %s159 = sphi 0, %s157
    %s160 = sphi 0, %s159
    %s174 = sphi 0, %s160
    %s178 = sphi 0, %s178
    %s180 = sphi 0, %s178
    %s181 = sphi 0, %s180
    %s195 = sphi 0, %s181
  $region4: #{tpu_custom_call.1} parent=0 // loop_header_branch
    %16 = sbr.rel (%p14) target = $region8
  $region5: #{tpu_custom_call.1} parent=0 // loop_body
    %s18 = ssub.s32 %s13, 1
    %s19 = ssub.s32 %s13, 2
    %s20 = sadd.s32 %s13, 1
    %s22 = sadd.s32 %s21, 1
    %p25 = scmp.eq.s32.totalorder %s13, 1
    %p26 = scmp.ne.s32.totalorder %s21, %s23
    %p27 = scmp.eq.s32.totalorder %s13, 0
    %p28 = por %p26, %p27
    %p29 = scmp.ne.s32.totalorder %s21, %s23
    %p30 = scmp.eq.s32.totalorder %s18, 1
    %p31 = por %p29, %p30
    %p32 = scmp.ne.s32.totalorder %s23, %s24
    %p33 = scmp.eq.s32.totalorder %s18, 0
    %p34 = por %p32, %p33
    %p35 = scmp.ne.s32.totalorder %s23, %s24
    %p36 = scmp.eq.s32.totalorder %s19, 1
    %p37 = por %p35, %p36
    %p39 = scmp.ne.s32.totalorder %s24, %s38
    %p40 = scmp.eq.s32.totalorder %s19, 0
    %p41 = por %p39, %p40
    %s42 = ssub.s32 %s13, %s20
    %p43 = scmp.eq.s32.totalorder %s42, 0
    %s45 = sadd.s32 %s44, 1
    %s46 = scalar_select %p43, %s44, %s45
    %p49 = pneg %p43
    %p50 = scmp.eq.s32.totalorder %s13, 1
    %p51 = por %p49, %p50
    %p52 = scmp.ne.s32.totalorder %s44, %s47
    %p53 = scmp.eq.s32.totalorder %s13, 0
    %p54 = por %p52, %p53
    %p55 = scmp.ne.s32.totalorder %s44, %s47
    %p56 = scmp.eq.s32.totalorder %s18, 1
    %p57 = por %p55, %p56
    %p58 = scmp.ne.s32.totalorder %s47, %s48
    %p59 = scmp.eq.s32.totalorder %s18, 0
    %p60 = por %p58, %p59
    %p61 = scmp.ne.s32.totalorder %s47, %s48
    %p62 = scmp.eq.s32.totalorder %s19, 1
    %p63 = por %p61, %p62
    %p65 = scmp.ne.s32.totalorder %s48, %s64
    %p66 = scmp.eq.s32.totalorder %s19, 0
    %p67 = por %p65, %p66
    %s68 = ssub.s32 %s13, %s20
    %p69 = scmp.eq.s32.totalorder %s68, 0
    %s71 = sadd.s32 %s70, 1
    %s72 = scalar_select %p69, %s70, %s71
    %p75 = pneg %p69
    %p76 = scmp.eq.s32.totalorder %s13, 1
    %p77 = por %p75, %p76
    %p78 = scmp.ne.s32.totalorder %s70, %s73
    %p79 = scmp.eq.s32.totalorder %s13, 0
    %p80 = por %p78, %p79
    %p81 = scmp.ne.s32.totalorder %s70, %s73
    %p82 = scmp.eq.s32.totalorder %s18, 1
    %p83 = por %p81, %p82
    %p84 = scmp.ne.s32.totalorder %s73, %s74
    %p85 = scmp.eq.s32.totalorder %s18, 0
    %p86 = por %p84, %p85
    %p87 = scmp.ne.s32.totalorder %s73, %s74
    %p88 = scmp.eq.s32.totalorder %s19, 1
    %p89 = por %p87, %p88
    %p91 = scmp.ne.s32.totalorder %s74, %s90
    %p92 = scmp.eq.s32.totalorder %s19, 0
    %p93 = por %p91, %p92
    %s95 = sadd.s32 %s94, 1
    %p98 = scmp.eq.s32.totalorder %s13, 1
    %p99 = scmp.ne.s32.totalorder %s94, %s96
    %p100 = scmp.eq.s32.totalorder %s13, 0
    %p101 = por %p99, %p100
    %p102 = scmp.ne.s32.totalorder %s94, %s96
    %p103 = scmp.eq.s32.totalorder %s18, 1
    %p104 = por %p102, %p103
    %p105 = scmp.ne.s32.totalorder %s96, %s97
    %p106 = scmp.eq.s32.totalorder %s18, 0
    %p107 = por %p105, %p106
    %p108 = scmp.ne.s32.totalorder %s96, %s97
    %p109 = scmp.eq.s32.totalorder %s19, 1
    %p110 = por %p108, %p109
    %p112 = scmp.ne.s32.totalorder %s97, %s111
    %p113 = scmp.eq.s32.totalorder %s19, 0
    %p114 = por %p112, %p113
    %s116 = sadd.s32 %s115, 1
    %p119 = scmp.eq.s32.totalorder %s13, 1
    %p120 = scmp.ne.s32.totalorder %s115, %s117
    %p121 = scmp.eq.s32.totalorder %s13, 0
    %p122 = por %p120, %p121
    %p123 = scmp.ne.s32.totalorder %s115, %s117
    %p124 = scmp.eq.s32.totalorder %s18, 1
    %p125 = por %p123, %p124
    %p126 = scmp.ne.s32.totalorder %s117, %s118
    %p127 = scmp.eq.s32.totalorder %s18, 0
    %p128 = por %p126, %p127
    %p129 = scmp.ne.s32.totalorder %s117, %s118
    %p130 = scmp.eq.s32.totalorder %s19, 1
    %p131 = por %p129, %p130
    %p133 = scmp.ne.s32.totalorder %s118, %s132
    %p134 = scmp.eq.s32.totalorder %s19, 0
    %p135 = por %p133, %p134
    %s137 = sadd.s32 %s136, 1
    %p140 = scmp.eq.s32.totalorder %s13, 1
    %p141 = scmp.ne.s32.totalorder %s136, %s138
    %p142 = scmp.eq.s32.totalorder %s13, 0
    %p143 = por %p141, %p142
    %p144 = scmp.ne.s32.totalorder %s136, %s138
    %p145 = scmp.eq.s32.totalorder %s18, 1
    %p146 = por %p144, %p145
    %p147 = scmp.ne.s32.totalorder %s138, %s139
    %p148 = scmp.eq.s32.totalorder %s18, 0
    %p149 = por %p147, %p148
    %p150 = scmp.ne.s32.totalorder %s138, %s139
    %p151 = scmp.eq.s32.totalorder %s19, 1
    %p152 = por %p150, %p151
    %p154 = scmp.ne.s32.totalorder %s139, %s153
    %p155 = scmp.eq.s32.totalorder %s19, 0
    %p156 = por %p154, %p155
    %s158 = sadd.s32 %s157, 1
    %p161 = scmp.eq.s32.totalorder %s13, 1
    %p162 = scmp.ne.s32.totalorder %s157, %s159
    %p163 = scmp.eq.s32.totalorder %s13, 0
    %p164 = por %p162, %p163
    %p165 = scmp.ne.s32.totalorder %s157, %s159
    %p166 = scmp.eq.s32.totalorder %s18, 1
    %p167 = por %p165, %p166
    %p168 = scmp.ne.s32.totalorder %s159, %s160
    %p169 = scmp.eq.s32.totalorder %s18, 0
    %p170 = por %p168, %p169
    %p171 = scmp.ne.s32.totalorder %s159, %s160
    %p172 = scmp.eq.s32.totalorder %s19, 1
    %p173 = por %p171, %p172
    %p175 = scmp.ne.s32.totalorder %s160, %s174
    %p176 = scmp.eq.s32.totalorder %s19, 0
    %p177 = por %p175, %p176
    %s179 = sadd.s32 %s178, 1
    %p182 = scmp.eq.s32.totalorder %s13, 1
    %p183 = scmp.ne.s32.totalorder %s178, %s180
    %p184 = scmp.eq.s32.totalorder %s13, 0
    %p185 = por %p183, %p184
    %p186 = scmp.ne.s32.totalorder %s178, %s180
    %p187 = scmp.eq.s32.totalorder %s18, 1
    %p188 = por %p186, %p187
    %p189 = scmp.ne.s32.totalorder %s180, %s181
    %p190 = scmp.eq.s32.totalorder %s18, 0
    %p191 = por %p189, %p190
    %p192 = scmp.ne.s32.totalorder %s180, %s181
    %p193 = scmp.eq.s32.totalorder %s19, 1
    %p194 = por %p192, %p193
    %p196 = scmp.ne.s32.totalorder %s181, %s195
    %p197 = scmp.eq.s32.totalorder %s19, 0
    %p198 = por %p196, %p197
    %p199 = scmp.le.s32.totalorder 1, %s13
    %p200 = scmp.lt.s32.totalorder %s13, 3
    %p201 = pnand %p199, %p200
    %p202 = pneg %p201
    // Predicated region
    $region9: #{tpu_custom_call.1} parent=5 // pred_check
      _
    $region10: #{tpu_custom_call.1} parent=5 // pred_check_branch
      %204 = sbr.rel (%p201) target = $region12
    $region11: #{tpu_custom_call.1} parent=5 // pred_region
      %s205 = ssub.s32 %s13, 1
      // Predicated region
      $region13: #{tpu_custom_call.1} parent=11 // pred_check
        %p206 = pneg %p34
      $region14: #{tpu_custom_call.1} parent=11 // pred_check_branch
        %208 = sbr.rel (%p206) target = $region16
      $region15: #{tpu_custom_call.1} parent=11 // pred_region
        _
      $region16: #{tpu_custom_call.1} parent=11 // pred_fallthru
        _
      // Predicated region
      $region17: #{tpu_custom_call.1} parent=11 // pred_check
        %p209 = pneg %p107
      $region18: #{tpu_custom_call.1} parent=11 // pred_check_branch
        %211 = sbr.rel (%p209) target = $region20
      $region19: #{tpu_custom_call.1} parent=11 // pred_region
        _
      $region20: #{tpu_custom_call.1} parent=11 // pred_fallthru
        _
      // Predicated region
      $region21: #{tpu_custom_call.1} parent=11 // pred_check
        %p212 = pneg %p128
      $region22: #{tpu_custom_call.1} parent=11 // pred_check_branch
        %214 = sbr.rel (%p212) target = $region24
      $region23: #{tpu_custom_call.1} parent=11 // pred_region
        _
      $region24: #{tpu_custom_call.1} parent=11 // pred_fallthru
        _
      // Predicated region
      $region25: #{tpu_custom_call.1} parent=11 // pred_check
        %p215 = pneg %p149
      $region26: #{tpu_custom_call.1} parent=11 // pred_check_branch
        %217 = sbr.rel (%p215) target = $region28
      $region27: #{tpu_custom_call.1} parent=11 // pred_region
        _
      $region28: #{tpu_custom_call.1} parent=11 // pred_fallthru
        _
      // Predicated region
      $region29: #{tpu_custom_call.1} parent=11 // pred_check
        %p218 = pneg %p170
      $region30: #{tpu_custom_call.1} parent=11 // pred_check_branch
        %220 = sbr.rel (%p218) target = $region32
      $region31: #{tpu_custom_call.1} parent=11 // pred_region
        _
      $region32: #{tpu_custom_call.1} parent=11 // pred_fallthru
        _
    $region12: #{tpu_custom_call.1} parent=5 // pred_fallthru
      _
    %p221 = scmp.lt.s32.totalorder %s13, 2
    // Predicated region
    $region33: #{tpu_custom_call.1} parent=5 // pred_check
      %p222 = pneg %p221
    $region34: #{tpu_custom_call.1} parent=5 // pred_check_branch
      %224 = sbr.rel (%p222) target = $region36
    $region35: #{tpu_custom_call.1} parent=5 // pred_region
      // Predicated region
      $region37: #{tpu_custom_call.1} parent=35 // pred_check
        %p225 = pneg %p54
      $region38: #{tpu_custom_call.1} parent=35 // pred_check_branch
        %227 = sbr.rel (%p225) target = $region40
      $region39: #{tpu_custom_call.1} parent=35 // pred_region
        %s228 = smul.u32 64, %s13
        %p229 = scmp.lt.s32.totalorder %s228, 127
        %s230 = scalar_select %p229, %s228, 127
        %s231 = smul.addr %s230, 8
        %s232 = scalar_lea.vmem %s1, %s231
        %s233 = smul.u32 64, %s13
      $region40: #{tpu_custom_call.1} parent=35 // pred_fallthru
        _
      // Predicated region
      $region41: #{tpu_custom_call.1} parent=35 // pred_check
        %p234 = pneg %p80
      $region42: #{tpu_custom_call.1} parent=35 // pred_check_branch
        %236 = sbr.rel (%p234) target = $region44
      $region43: #{tpu_custom_call.1} parent=35 // pred_region
        %s237 = smul.u32 64, %s13
        %p238 = scmp.lt.s32.totalorder %s237, 127
        %s239 = scalar_select %p238, %s237, 127
        %s240 = smul.addr %s239, 8
        %s241 = scalar_lea.vmem %s2, %s240
        %s242 = smul.u32 64, %s13
      $region44: #{tpu_custom_call.1} parent=35 // pred_fallthru
        _
    $region36: #{tpu_custom_call.1} parent=5 // pred_fallthru
      _
    %p243 = scmp.le.s32.totalorder 1, %s13
    %p244 = scmp.lt.s32.totalorder %s13, 3
    %p245 = pnand %p243, %p244
    %p246 = pneg %p245
    // Predicated region
    $region45: #{tpu_custom_call.1} parent=5 // pred_check
      _
    $region46: #{tpu_custom_call.1} parent=5 // pred_check_branch
      %248 = sbr.rel (%p245) target = $region48
    $region47: #{tpu_custom_call.1} parent=5 // pred_region
      %s249 = ssub.s32 %s13, 1
      %p250 = pneg %p34
      %p251 = pneg %p31
      %s252 = smul.u32 64, %s18
      %p253 = scmp.lt.s32.totalorder %s252, 127
      %s254 = scalar_select %p253, %s252, 127
      %s255 = smul.addr %s254, 8
      %s256 = scalar_lea.vmem %s1, %s255
      %p257 = pneg %p60
      %p258 = pneg %p57
      %s259 = smul.u32 64, %s18
      %p260 = scmp.lt.s32.totalorder %s259, 127
      %s261 = scalar_select %p260, %s259, 127
      %s262 = smul.addr %s261, 8
      %s263 = scalar_lea.vmem %s2, %s262
      %p264 = pneg %p86
      %p265 = pneg %p83
      %p266 = pneg %p107
      %p267 = pneg %p104
      %p268 = pneg %p128
      %p269 = pneg %p125
      %p270 = pneg %p149
      %p271 = pneg %p146
      %p272 = pneg %p170
      %p273 = pneg %p167
      %p274 = pneg %p191
      %p275 = pneg %p188
      %s276 = smul.u32 64, %s18
      %p277 = scmp.lt.s32.totalorder %s276, 127
      %s278 = scalar_select %p277, %s276, 127
      %s279 = smul.addr %s278, 8
      %s280 = scalar_lea.vmem %s1, %s279
      %s281 = smul.u32 64, %s18
      %s282 = smul.u32 64, %s18
      %p283 = scmp.lt.s32.totalorder %s282, 127
      %s284 = scalar_select %p283, %s282, 127
      %s285 = smul.addr %s284, 8
      %s286 = scalar_lea.vmem %s2, %s285
      %s287 = smul.u32 64, %s18
      %p289 = scmp.eq.s32.totalorder %s18, 0
      // Predicated region
      $region49: #{tpu_custom_call.1} parent=47 // pred_check
        %p290 = pneg %p289
      $region50: #{tpu_custom_call.1} parent=47 // pred_check_branch
        %292 = sbr.rel (%p290) target = $region52
      $region51: #{tpu_custom_call.1} parent=47 // pred_region
        %v293 = vld [vmem:[%s0] sm:$0xff]
        %v294 = vld [vmem:[%s0 + $0x8] sm:$0xff]
        %v295 = vld [vmem:[%s0 + $0x10] sm:$0xff]
        %v296 = vld [vmem:[%s0 + $0x18] sm:$0xff]
        %v297 = vld [vmem:[%s0 + $0x20] sm:$0xff]
        %v298 = vld [vmem:[%s0 + $0x28] sm:$0xff]
        %v299 = vld [vmem:[%s0 + $0x30] sm:$0xff]
        %v300 = vld [vmem:[%s0 + $0x38] sm:$0xff]
        %v301 = vld [vmem:[%s0 + $0x40] sm:$0xff]
        %v302 = vld [vmem:[%s0 + $0x48] sm:$0xff]
        %v303 = vld [vmem:[%s0 + $0x50] sm:$0xff]
        %v304 = vld [vmem:[%s0 + $0x58] sm:$0xff]
        %v305 = vld [vmem:[%s0 + $0x60] sm:$0xff]
        %v306 = vld [vmem:[%s0 + $0x68] sm:$0xff]
        %v307 = vld [vmem:[%s0 + $0x70] sm:$0xff]
        %v308 = vld [vmem:[%s0 + $0x78] sm:$0xff]
        %v309 = vld [vmem:[%s3] sm:$0xff]
        %v310 = vld [vmem:[%s3 + $0x8] sm:$0xff]
        %v311 = vld [vmem:[%s3 + $0x10] sm:$0xff]
        %v312 = vld [vmem:[%s3 + $0x18] sm:$0xff]
        %v313 = vld [vmem:[%s4] sm:$0x1]
        %v315 = vlaneseq
        %v316 = vshrl.u32 %v315, 7
        %v317 = vsub.s32 0, %v316
        %v318 = vrot.slane %v313, %v317
        %vm320 = vcmask 261120
        %v322 = vsel %vm320, %v293, 0
        %v325 = vsel %vm320, %v294, 0
        %v328 = vsel %vm320, %v295, 0
        %v331 = vsel %vm320, %v296, 0
        %v334 = vsel %vm320, %v297, 0
        %v337 = vsel %vm320, %v298, 0
        %v340 = vsel %vm320, %v299, 0
        %v343 = vsel %vm320, %v300, 0
        %v346 = vsel %vm320, %v301, 0
        %v349 = vsel %vm320, %v302, 0
        %v352 = vsel %vm320, %v303, 0
        %v355 = vsel %vm320, %v304, 0
        %v358 = vsel %vm320, %v305, 0
        %v361 = vsel %vm320, %v306, 0
        %v364 = vsel %vm320, %v307, 0
        %v367 = vsel %vm320, %v308, 0
        %369 = vmatprep.subr.mxu0 0.0
        %370 = vmatpush1.msra.mxu0 %v309
        %371 = vmatprep.subr.mxu0 0.0
        %372 = vmatpush1.msra.mxu0 %v310
        %373 = vmatprep.subr.mxu0 0.0
        %374 = vmatpush1.msra.mxu0 %v311
        %375 = vmatprep.subr.mxu0 0.0
        %376 = vmatpush1.msra.mxu0 %v312
        %377 = vmatprep.subr.mxu0 0.0
        %378 = vmatpush1.msra.mxu0 0.0
        %379 = vmatprep.subr.mxu0 0.0
        %380 = vmatpush1.msra.mxu0 0.0
        %381 = vmatprep.subr.mxu0 0.0
        %382 = vmatpush1.msra.mxu0 0.0
        %383 = vmatprep.subr.mxu0 0.0
        %384 = vmatpush1.msra.mxu0 0.0
        %385 = vmatprep.subr.mxu0 0.0
        %386 = vmatpush1.msra.mxu0 0.0
        %387 = vmatprep.subr.mxu0 0.0
        %388 = vmatpush1.msra.mxu0 0.0
        %389 = vmatprep.subr.mxu0 0.0
        %390 = vmatpush1.msra.mxu0 0.0
        %391 = vmatprep.subr.mxu0 0.0
        %392 = vmatpush1.msra.mxu0 0.0
        %393 = vmatprep.subr.mxu0 0.0
        %394 = vmatpush1.msra.mxu0 0.0
        %395 = vmatprep.subr.mxu0 0.0
        %396 = vmatpush1.msra.mxu0 0.0
        %397 = vmatprep.subr.mxu0 0.0
        %398 = vmatpush1.msra.mxu0 0.0
        %399 = vmatprep.subr.mxu0 0.0
        %400 = vmatpush1.msra.mxu0 0.0
        %401 = vmatprep.subr.mxu0 0.0
        %402 = vmatpush1.msra.mxu0 0.0
        %403 = vmatprep.subr.mxu0 0.0
        %404 = vmatpush1.msra.mxu0 0.0
        %405 = vmatprep.subr.mxu0 0.0
        %406 = vmatpush1.msra.mxu0 0.0
        %407 = vmatprep.subr.mxu0 0.0
        %408 = vmatpush1.msra.mxu0 0.0
        %409 = vmatprep.subr.mxu0 0.0
        %410 = vmatpush1.msra.mxu0 0.0
        %411 = vmatprep.subr.mxu0 0.0
        %412 = vmatpush1.msra.mxu0 0.0
        %413 = vmatprep.subr.mxu0 0.0
        %414 = vmatpush1.msra.mxu0 0.0
        %415 = vmatprep.subr.mxu0 0.0
        %416 = vmatpush1.msra.mxu0 0.0
        %417 = vmatprep.subr.mxu0 0.0
        %418 = vmatpush1.msra.mxu0 0.0
        %419 = vmatprep.subr.mxu0 0.0
        %420 = vmatpush1.msra.mxu0 0.0
        %421 = vmatprep.subr.mxu0 0.0
        %422 = vmatpush1.msra.mxu0 0.0
        %423 = vmatprep.subr.mxu0 0.0
        %424 = vmatpush1.msra.mxu0 0.0
        %425 = vmatprep.subr.mxu0 0.0
        %426 = vmatpush1.msra.mxu0 0.0
        %427 = vmatprep.subr.mxu0 0.0
        %428 = vmatpush1.msra.mxu0 0.0
        %429 = vmatprep.subr.mxu0 0.0
        %430 = vmatpush1.msra.mxu0 0.0
        %431 = vmatprep.subr.mxu0 0.0
        %432 = vmatpush1.msra.mxu0 0.0
        %433 = vmatprep.mubr.f32.mxu0 0.0
        %434 = vmatmul.mubr.f32.gmra.mrb[0].mxu0 %v322
        %v435 = vpop.f32.mrb[0].mxu0
        %v436 = vadd.f32 %v318, %v435
        %v437 = vpop.f32.mrb[0].mxu0
        %438 = vmatprep.mubr.f32.mxu0 0.0
        %439 = vmatmul.mubr.f32.gmra.mrb[0].mxu0 %v325
        %v440 = vpop.f32.mrb[0].mxu0
        %v441 = vadd.f32 %v318, %v440
        %v442 = vpop.f32.mrb[0].mxu0
        %443 = vmatprep.mubr.f32.mxu0 0.0
        %444 = vmatmul.mubr.f32.gmra.mrb[0].mxu0 %v328
        %v445 = vpop.f32.mrb[0].mxu0
        %v446 = vadd.f32 %v318, %v445
        %v447 = vpop.f32.mrb[0].mxu0
        %448 = vmatprep.mubr.f32.mxu0 0.0
        %449 = vmatmul.mubr.f32.gmra.mrb[0].mxu0 %v331
        %v450 = vpop.f32.mrb[0].mxu0
        %v451 = vadd.f32 %v318, %v450
        %v452 = vpop.f32.mrb[0].mxu0
        %453 = vmatprep.mubr.f32.mxu0 0.0
        %454 = vmatmul.mubr.f32.gmra.mrb[0].mxu0 %v334
        %v455 = vpop.f32.mrb[0].mxu0
        %v456 = vadd.f32 %v318, %v455
        %v457 = vpop.f32.mrb[0].mxu0
        %458 = vmatprep.mubr.f32.mxu0 0.0
        %459 = vmatmul.mubr.f32.gmra.mrb[0].mxu0 %v337
        %v460 = vpop.f32.mrb[0].mxu0
        %v461 = vadd.f32 %v318, %v460
        %v462 = vpop.f32.mrb[0].mxu0
        %463 = vmatprep.mubr.f32.mxu0 0.0
        %464 = vmatmul.mubr.f32.gmra.mrb[0].mxu0 %v340
        %v465 = vpop.f32.mrb[0].mxu0
        %v466 = vadd.f32 %v318, %v465
        %v467 = vpop.f32.mrb[0].mxu0
        %468 = vmatprep.mubr.f32.mxu0 0.0
        %469 = vmatmul.mubr.f32.gmra.mrb[0].mxu0 %v343
        %v470 = vpop.f32.mrb[0].mxu0
        %v471 = vadd.f32 %v318, %v470
        %v472 = vpop.f32.mrb[0].mxu0
        %473 = vmatprep.mubr.f32.mxu0 0.0
        %474 = vmatmul.mubr.f32.gmra.mrb[0].mxu0 %v346
        %v475 = vpop.f32.mrb[0].mxu0
        %v476 = vadd.f32 %v318, %v475
        %v477 = vpop.f32.mrb[0].mxu0
        %478 = vmatprep.mubr.f32.mxu0 0.0
        %479 = vmatmul.mubr.f32.gmra.mrb[0].mxu0 %v349
        %v480 = vpop.f32.mrb[0].mxu0
        %v481 = vadd.f32 %v318, %v480
        %v482 = vpop.f32.mrb[0].mxu0
        %483 = vmatprep.mubr.f32.mxu0 0.0
        %484 = vmatmul.mubr.f32.gmra.mrb[0].mxu0 %v352
        %v485 = vpop.f32.mrb[0].mxu0
        %v486 = vadd.f32 %v318, %v485
        %v487 = vpop.f32.mrb[0].mxu0
        %488 = vmatprep.mubr.f32.mxu0 0.0
        %489 = vmatmul.mubr.f32.gmra.mrb[0].mxu0 %v355
        %v490 = vpop.f32.mrb[0].mxu0
        %v491 = vadd.f32 %v318, %v490
        %v492 = vpop.f32.mrb[0].mxu0
        %493 = vmatprep.mubr.f32.mxu0 0.0
        %494 = vmatmul.mubr.f32.gmra.mrb[0].mxu0 %v358
        %v495 = vpop.f32.mrb[0].mxu0
        %v496 = vadd.f32 %v318, %v495
        %v497 = vpop.f32.mrb[0].mxu0
        %498 = vmatprep.mubr.f32.mxu0 0.0
        %499 = vmatmul.mubr.f32.gmra.mrb[0].mxu0 %v361
        %v500 = vpop.f32.mrb[0].mxu0
        %v501 = vadd.f32 %v318, %v500
        %v502 = vpop.f32.mrb[0].mxu0
        %503 = vmatprep.mubr.f32.mxu0 0.0
        %504 = vmatmul.mubr.f32.gmra.mrb[0].mxu0 %v364
        %v505 = vpop.f32.mrb[0].mxu0
        %v506 = vadd.f32 %v318, %v505
        %v507 = vpop.f32.mrb[0].mxu0
        %508 = vmatprep.mubr.f32.mxu0 0.0
        %509 = vmatmul.mubr.f32.gmra.mrb[0].mxu0 %v367
        %v510 = vpop.f32.mrb[0].mxu0
        %v511 = vadd.f32 %v318, %v510
        %v512 = vpop.f32.mrb[0].mxu0
        %513 = vdwg.mxu0
        %514 = vst.msk [vmem:[#allocation2] sm:$0xff] %vm320, %v436
        %515 = vst.msk [vmem:[#allocation2 + $0x8] sm:$0xff] %vm320, %v441
        %516 = vst.msk [vmem:[#allocation2 + $0x10] sm:$0xff] %vm320, %v446
        %517 = vst.msk [vmem:[#allocation2 + $0x18] sm:$0xff] %vm320, %v451
        %518 = vst.msk [vmem:[#allocation2 + $0x20] sm:$0xff] %vm320, %v456
        %519 = vst.msk [vmem:[#allocation2 + $0x28] sm:$0xff] %vm320, %v461
        %520 = vst.msk [vmem:[#allocation2 + $0x30] sm:$0xff] %vm320, %v466
        %521 = vst.msk [vmem:[#allocation2 + $0x38] sm:$0xff] %vm320, %v471
        %522 = vst.msk [vmem:[#allocation2 + $0x40] sm:$0xff] %vm320, %v476
        %523 = vst.msk [vmem:[#allocation2 + $0x48] sm:$0xff] %vm320, %v481
        %524 = vst.msk [vmem:[#allocation2 + $0x50] sm:$0xff] %vm320, %v486
        %525 = vst.msk [vmem:[#allocation2 + $0x58] sm:$0xff] %vm320, %v491
        %526 = vst.msk [vmem:[#allocation2 + $0x60] sm:$0xff] %vm320, %v496
        %527 = vst.msk [vmem:[#allocation2 + $0x68] sm:$0xff] %vm320, %v501
        %528 = vst.msk [vmem:[#allocation2 + $0x70] sm:$0xff] %vm320, %v506
        %529 = vst.msk [vmem:[#allocation2 + $0x78] sm:$0xff] %vm320, %v511
        %v530 = vpack.c.bf16 %v441, %v436
        %v531 = vpack.c.bf16 %v451, %v446
        %v532 = vpack.c.bf16 %v461, %v456
        %v533 = vpack.c.bf16 %v471, %v466
        %v534 = vpack.c.bf16 %v481, %v476
        %v535 = vpack.c.bf16 %v491, %v486
        %v536 = vpack.c.bf16 %v501, %v496
        %v537 = vpack.c.bf16 %v511, %v506
        %546 = vrot.lane.b32.xlu0 %v530, 96
        %v547 = vpop.permute.xlu0 %546
        %548 = vrot.lane.b32.xlu0 %v531, 96
        %v549 = vpop.permute.xlu0 %548
        %550 = vrot.lane.b32.xlu0 %v532, 96
        %v551 = vpop.permute.xlu0 %550
        %552 = vrot.lane.b32.xlu0 %v533, 96
        %v553 = vpop.permute.xlu0 %552
        %554 = vrot.lane.b32.xlu0 %v534, 96
        %v555 = vpop.permute.xlu0 %554
        %556 = vrot.lane.b32.xlu0 %v535, 96
        %v557 = vpop.permute.xlu0 %556
        %558 = vrot.lane.b32.xlu0 %v536, 96
        %v559 = vpop.permute.xlu0 %558
        %560 = vrot.lane.b32.xlu0 %v537, 96
        %v561 = vpop.permute.xlu0 %560
        %vm570 = vcmask 523264
        %571 = vst.msk [vmem:[#allocation3] sm:$0xff] %vm570, %v547
        %572 = vst.msk [vmem:[#allocation3 + $0x8] sm:$0xff] %vm570, %v549
        %573 = vst.msk [vmem:[#allocation3 + $0x10] sm:$0xff] %vm570, %v551
        %574 = vst.msk [vmem:[#allocation3 + $0x18] sm:$0xff] %vm570, %v553
        %575 = vst.msk [vmem:[#allocation3 + $0x20] sm:$0xff] %vm570, %v555
        %576 = vst.msk [vmem:[#allocation3 + $0x28] sm:$0xff] %vm570, %v557
        %577 = vst.msk [vmem:[#allocation3 + $0x30] sm:$0xff] %vm570, %v559
        %578 = vst.msk [vmem:[#allocation3 + $0x38] sm:$0xff] %vm570, %v561
        %579 = vrot.lane.b32.xlu0 %v530, 32
        %v580 = vpop.permute.xlu0 %579
        %581 = vrot.lane.b32.xlu0 %v531, 32
        %v582 = vpop.permute.xlu0 %581
        %583 = vrot.lane.b32.xlu0 %v532, 32
        %v584 = vpop.permute.xlu0 %583
        %585 = vrot.lane.b32.xlu0 %v533, 32
        %v586 = vpop.permute.xlu0 %585
        %587 = vrot.lane.b32.xlu0 %v534, 32
        %v588 = vpop.permute.xlu0 %587
        %589 = vrot.lane.b32.xlu0 %v535, 32
        %v590 = vpop.permute.xlu0 %589
        %591 = vrot.lane.b32.xlu0 %v536, 32
        %v592 = vpop.permute.xlu0 %591
        %593 = vrot.lane.b32.xlu0 %v537, 32
        %v594 = vpop.permute.xlu0 %593
        %603 = vst.msk [vmem:[#allocation4] sm:$0xff] %vm320, %v580
        %604 = vst.msk [vmem:[#allocation4 + $0x8] sm:$0xff] %vm320, %v582
        %605 = vst.msk [vmem:[#allocation4 + $0x10] sm:$0xff] %vm320, %v584
        %606 = vst.msk [vmem:[#allocation4 + $0x18] sm:$0xff] %vm320, %v586
        %607 = vst.msk [vmem:[#allocation4 + $0x20] sm:$0xff] %vm320, %v588
        %608 = vst.msk [vmem:[#allocation4 + $0x28] sm:$0xff] %vm320, %v590
        %609 = vst.msk [vmem:[#allocation4 + $0x30] sm:$0xff] %vm320, %v592
        %610 = vst.msk [vmem:[#allocation4 + $0x38] sm:$0xff] %vm320, %v594
        %611 = vst.msk [vmem:[#allocation5] sm:$0xff] %vm570, 0.0
        %612 = vst.msk [vmem:[#allocation5 + $0x8] sm:$0xff] %vm570, 0.0
        %613 = vst.msk [vmem:[#allocation5 + $0x10] sm:$0xff] %vm570, 0.0
        %614 = vst.msk [vmem:[#allocation5 + $0x18] sm:$0xff] %vm570, 0.0
        %615 = vst.msk [vmem:[#allocation5 + $0x20] sm:$0xff] %vm570, 0.0
        %616 = vst.msk [vmem:[#allocation5 + $0x28] sm:$0xff] %vm570, 0.0
        %617 = vst.msk [vmem:[#allocation5 + $0x30] sm:$0xff] %vm570, 0.0
        %618 = vst.msk [vmem:[#allocation5 + $0x38] sm:$0xff] %vm570, 0.0
        %619 = vst.msk [vmem:[#allocation5 + $0x40] sm:$0xff] %vm570, 0.0
        %620 = vst.msk [vmem:[#allocation5 + $0x48] sm:$0xff] %vm570, 0.0
        %621 = vst.msk [vmem:[#allocation5 + $0x50] sm:$0xff] %vm570, 0.0
        %622 = vst.msk [vmem:[#allocation5 + $0x58] sm:$0xff] %vm570, 0.0
        %623 = vst.msk [vmem:[#allocation5 + $0x60] sm:$0xff] %vm570, 0.0
        %624 = vst.msk [vmem:[#allocation5 + $0x68] sm:$0xff] %vm570, 0.0
        %625 = vst.msk [vmem:[#allocation5 + $0x70] sm:$0xff] %vm570, 0.0
        %626 = vst.msk [vmem:[#allocation5 + $0x78] sm:$0xff] %vm570, 0.0
      $region52: #{tpu_custom_call.1} parent=47 // pred_fallthru
        _
      %v627 = vld [vmem:[%s280] sm:$0xff]
      %v628 = vld [vmem:[%s280 + $0x8] sm:$0xff]
      %v629 = vld [vmem:[%s280 + $0x10] sm:$0xff]
      %v630 = vld [vmem:[%s280 + $0x18] sm:$0xff]
      %v631 = vld [vmem:[%s280 + $0x20] sm:$0xff]
      %v632 = vld [vmem:[%s280 + $0x28] sm:$0xff]
      %v633 = vld [vmem:[%s280 + $0x30] sm:$0xff]
      %v634 = vld [vmem:[%s280 + $0x38] sm:$0xff]
      %v635 = vld [vmem:[%s280 + $0x40] sm:$0xff]
      %v636 = vld [vmem:[%s280 + $0x48] sm:$0xff]
      %v637 = vld [vmem:[%s280 + $0x50] sm:$0xff]
      %v638 = vld [vmem:[%s280 + $0x58] sm:$0xff]
      %v639 = vld [vmem:[%s280 + $0x60] sm:$0xff]
      %v640 = vld [vmem:[%s280 + $0x68] sm:$0xff]
      %v641 = vld [vmem:[%s280 + $0x70] sm:$0xff]
      %v642 = vld [vmem:[%s280 + $0x78] sm:$0xff]
      %v643 = vld [vmem:[%s280 + $0x80] sm:$0xff]
      %v644 = vld [vmem:[%s280 + $0x88] sm:$0xff]
      %v645 = vld [vmem:[%s280 + $0x90] sm:$0xff]
      %v646 = vld [vmem:[%s280 + $0x98] sm:$0xff]
      %v647 = vld [vmem:[%s280 + $0xa0] sm:$0xff]
      %v648 = vld [vmem:[%s280 + $0xa8] sm:$0xff]
      %v649 = vld [vmem:[%s280 + $0xb0] sm:$0xff]
      %v650 = vld [vmem:[%s280 + $0xb8] sm:$0xff]
      %v651 = vld [vmem:[%s280 + $0xc0] sm:$0xff]
      %v652 = vld [vmem:[%s280 + $0xc8] sm:$0xff]
      %v653 = vld [vmem:[%s280 + $0xd0] sm:$0xff]
      %v654 = vld [vmem:[%s280 + $0xd8] sm:$0xff]
      %v655 = vld [vmem:[%s280 + $0xe0] sm:$0xff]
      %v656 = vld [vmem:[%s280 + $0xe8] sm:$0xff]
      %v657 = vld [vmem:[%s280 + $0xf0] sm:$0xff]
      %v658 = vld [vmem:[%s280 + $0xf8] sm:$0xff]
      %v659 = vld [vmem:[%s280 + $0x100] sm:$0xff]
      %v660 = vld [vmem:[%s280 + $0x108] sm:$0xff]
      %v661 = vld [vmem:[%s280 + $0x110] sm:$0xff]
      %v662 = vld [vmem:[%s280 + $0x118] sm:$0xff]
      %v663 = vld [vmem:[%s280 + $0x120] sm:$0xff]
      %v664 = vld [vmem:[%s280 + $0x128] sm:$0xff]
      %v665 = vld [vmem:[%s280 + $0x130] sm:$0xff]
      %v666 = vld [vmem:[%s280 + $0x138] sm:$0xff]
      %v667 = vld [vmem:[%s280 + $0x140] sm:$0xff]
      %v668 = vld [vmem:[%s280 + $0x148] sm:$0xff]
      %v669 = vld [vmem:[%s280 + $0x150] sm:$0xff]
      %v670 = vld [vmem:[%s280 + $0x158] sm:$0xff]
      %v671 = vld [vmem:[%s280 + $0x160] sm:$0xff]
      %v672 = vld [vmem:[%s280 + $0x168] sm:$0xff]
      %v673 = vld [vmem:[%s280 + $0x170] sm:$0xff]
      %v674 = vld [vmem:[%s280 + $0x178] sm:$0xff]
      %v675 = vld [vmem:[%s280 + $0x180] sm:$0xff]
      %v676 = vld [vmem:[%s280 + $0x188] sm:$0xff]
      %v677 = vld [vmem:[%s280 + $0x190] sm:$0xff]
      %v678 = vld [vmem:[%s280 + $0x198] sm:$0xff]
      %v679 = vld [vmem:[%s280 + $0x1a0] sm:$0xff]
      %v680 = vld [vmem:[%s280 + $0x1a8] sm:$0xff]
      %v681 = vld [vmem:[%s280 + $0x1b0] sm:$0xff]
      %v682 = vld [vmem:[%s280 + $0x1b8] sm:$0xff]
      %v683 = vld [vmem:[%s280 + $0x1c0] sm:$0xff]
      %v684 = vld [vmem:[%s280 + $0x1c8] sm:$0xff]
      %v685 = vld [vmem:[%s280 + $0x1d0] sm:$0xff]
      %v686 = vld [vmem:[%s280 + $0x1d8] sm:$0xff]
      %v687 = vld [vmem:[%s280 + $0x1e0] sm:$0xff]
      %v688 = vld [vmem:[%s280 + $0x1e8] sm:$0xff]
      %v689 = vld [vmem:[%s280 + $0x1f0] sm:$0xff]
      %v690 = vld [vmem:[%s280 + $0x1f8] sm:$0xff]
      %v691 = vld [vmem:[%s286] sm:$0xff]
      %v692 = vld [vmem:[%s286 + $0x8] sm:$0xff]
      %v693 = vld [vmem:[%s286 + $0x10] sm:$0xff]
      %v694 = vld [vmem:[%s286 + $0x18] sm:$0xff]
      %v695 = vld [vmem:[%s286 + $0x20] sm:$0xff]
      %v696 = vld [vmem:[%s286 + $0x28] sm:$0xff]
      %v697 = vld [vmem:[%s286 + $0x30] sm:$0xff]
      %v698 = vld [vmem:[%s286 + $0x38] sm:$0xff]
      %v699 = vld [vmem:[%s286 + $0x40] sm:$0xff]
      %v700 = vld [vmem:[%s286 + $0x48] sm:$0xff]
      %v701 = vld [vmem:[%s286 + $0x50] sm:$0xff]
      %v702 = vld [vmem:[%s286 + $0x58] sm:$0xff]
      %v703 = vld [vmem:[%s286 + $0x60] sm:$0xff]
      %v704 = vld [vmem:[%s286 + $0x68] sm:$0xff]
      %v705 = vld [vmem:[%s286 + $0x70] sm:$0xff]
      %v706 = vld [vmem:[%s286 + $0x78] sm:$0xff]
      %v707 = vld [vmem:[%s286 + $0x80] sm:$0xff]
      %v708 = vld [vmem:[%s286 + $0x88] sm:$0xff]
      %v709 = vld [vmem:[%s286 + $0x90] sm:$0xff]
      %v710 = vld [vmem:[%s286 + $0x98] sm:$0xff]
      %v711 = vld [vmem:[%s286 + $0xa0] sm:$0xff]
      %v712 = vld [vmem:[%s286 + $0xa8] sm:$0xff]
      %v713 = vld [vmem:[%s286 + $0xb0] sm:$0xff]
      %v714 = vld [vmem:[%s286 + $0xb8] sm:$0xff]
      %v715 = vld [vmem:[%s286 + $0xc0] sm:$0xff]
      %v716 = vld [vmem:[%s286 + $0xc8] sm:$0xff]
      %v717 = vld [vmem:[%s286 + $0xd0] sm:$0xff]
      %v718 = vld [vmem:[%s286 + $0xd8] sm:$0xff]
      %v719 = vld [vmem:[%s286 + $0xe0] sm:$0xff]
      %v720 = vld [vmem:[%s286 + $0xe8] sm:$0xff]
      %v721 = vld [vmem:[%s286 + $0xf0] sm:$0xff]
      %v722 = vld [vmem:[%s286 + $0xf8] sm:$0xff]
      %v723 = vld [vmem:[%s286 + $0x100] sm:$0xff]
      %v724 = vld [vmem:[%s286 + $0x108] sm:$0xff]
      %v725 = vld [vmem:[%s286 + $0x110] sm:$0xff]
      %v726 = vld [vmem:[%s286 + $0x118] sm:$0xff]
      %v727 = vld [vmem:[%s286 + $0x120] sm:$0xff]
      %v728 = vld [vmem:[%s286 + $0x128] sm:$0xff]
      %v729 = vld [vmem:[%s286 + $0x130] sm:$0xff]
      %v730 = vld [vmem:[%s286 + $0x138] sm:$0xff]
      %v731 = vld [vmem:[%s286 + $0x140] sm:$0xff]
      %v732 = vld [vmem:[%s286 + $0x148] sm:$0xff]
      %v733 = vld [vmem:[%s286 + $0x150] sm:$0xff]
      %v734 = vld [vmem:[%s286 + $0x158] sm:$0xff]
      %v735 = vld [vmem:[%s286 + $0x160] sm:$0xff]
      %v736 = vld [vmem:[%s286 + $0x168] sm:$0xff]
      %v737 = vld [vmem:[%s286 + $0x170] sm:$0xff]
      %v738 = vld [vmem:[%s286 + $0x178] sm:$0xff]
      %v739 = vld [vmem:[%s286 + $0x180] sm:$0xff]
      %v740 = vld [vmem:[%s286 + $0x188] sm:$0xff]
      %v741 = vld [vmem:[%s286 + $0x190] sm:$0xff]
      %v742 = vld [vmem:[%s286 + $0x198] sm:$0xff]
      %v743 = vld [vmem:[%s286 + $0x1a0] sm:$0xff]
      %v744 = vld [vmem:[%s286 + $0x1a8] sm:$0xff]
      %v745 = vld [vmem:[%s286 + $0x1b0] sm:$0xff]
      %v746 = vld [vmem:[%s286 + $0x1b8] sm:$0xff]
      %v747 = vld [vmem:[%s286 + $0x1c0] sm:$0xff]
      %v748 = vld [vmem:[%s286 + $0x1c8] sm:$0xff]
      %v749 = vld [vmem:[%s286 + $0x1d0] sm:$0xff]
      %v750 = vld [vmem:[%s286 + $0x1d8] sm:$0xff]
      %v751 = vld [vmem:[%s286 + $0x1e0] sm:$0xff]
      %v752 = vld [vmem:[%s286 + $0x1e8] sm:$0xff]
      %v753 = vld [vmem:[%s286 + $0x1f0] sm:$0xff]
      %v754 = vld [vmem:[%s286 + $0x1f8] sm:$0xff]
      %v755 = vlaneseq
      %v756 = vand.u32 %v755, 127
      %757 = vset.pattern.permute.xlu0 0
      %758 = vperm.xlu0 %757, %v627
      %v759 = vpop.permute.xlu0 %758
      %760 = vset.pattern.permute.xlu0 0
      %761 = vperm.xlu0 %760, %v628
      %v762 = vpop.permute.xlu0 %761
      %763 = vset.pattern.permute.xlu0 0
      %764 = vperm.xlu0 %763, %v629
      %v765 = vpop.permute.xlu0 %764
      %766 = vset.pattern.permute.xlu0 0
      %767 = vperm.xlu0 %766, %v630
      %v768 = vpop.permute.xlu0 %767
      %769 = vset.pattern.permute.xlu0 0
      %770 = vperm.xlu0 %769, %v631
      %v771 = vpop.permute.xlu0 %770
      %772 = vset.pattern.permute.xlu0 0
      %773 = vperm.xlu0 %772, %v632
      %v774 = vpop.permute.xlu0 %773
      %775 = vset.pattern.permute.xlu0 0
      %776 = vperm.xlu0 %775, %v633
      %v777 = vpop.permute.xlu0 %776
      %778 = vset.pattern.permute.xlu0 0
      %779 = vperm.xlu0 %778, %v634
      %v780 = vpop.permute.xlu0 %779
      %781 = vset.pattern.permute.xlu0 0
      %782 = vperm.xlu0 %781, %v635
      %v783 = vpop.permute.xlu0 %782
      %784 = vset.pattern.permute.xlu0 0
      %785 = vperm.xlu0 %784, %v636
      %v786 = vpop.permute.xlu0 %785
      %787 = vset.pattern.permute.xlu0 0
      %788 = vperm.xlu0 %787, %v637
      %v789 = vpop.permute.xlu0 %788
      %790 = vset.pattern.permute.xlu0 0
      %791 = vperm.xlu0 %790, %v638
      %v792 = vpop.permute.xlu0 %791
      %793 = vset.pattern.permute.xlu0 0
      %794 = vperm.xlu0 %793, %v639
      %v795 = vpop.permute.xlu0 %794
      %796 = vset.pattern.permute.xlu0 0
      %797 = vperm.xlu0 %796, %v640
      %v798 = vpop.permute.xlu0 %797
      %799 = vset.pattern.permute.xlu0 0
      %800 = vperm.xlu0 %799, %v641
      %v801 = vpop.permute.xlu0 %800
      %802 = vset.pattern.permute.xlu0 0
      %803 = vperm.xlu0 %802, %v642
      %v804 = vpop.permute.xlu0 %803
      %805 = vset.pattern.permute.xlu0 0
      %806 = vperm.xlu0 %805, %v643
      %v807 = vpop.permute.xlu0 %806
      %808 = vset.pattern.permute.xlu0 0
      %809 = vperm.xlu0 %808, %v644
      %v810 = vpop.permute.xlu0 %809
      %811 = vset.pattern.permute.xlu0 0
      %812 = vperm.xlu0 %811, %v645
      %v813 = vpop.permute.xlu0 %812
      %814 = vset.pattern.permute.xlu0 0
      %815 = vperm.xlu0 %814, %v646
      %v816 = vpop.permute.xlu0 %815
      %817 = vset.pattern.permute.xlu0 0
      %818 = vperm.xlu0 %817, %v647
      %v819 = vpop.permute.xlu0 %818
      %820 = vset.pattern.permute.xlu0 0
      %821 = vperm.xlu0 %820, %v648
      %v822 = vpop.permute.xlu0 %821
      %823 = vset.pattern.permute.xlu0 0
      %824 = vperm.xlu0 %823, %v649
      %v825 = vpop.permute.xlu0 %824
      %826 = vset.pattern.permute.xlu0 0
      %827 = vperm.xlu0 %826, %v650
      %v828 = vpop.permute.xlu0 %827
      %829 = vset.pattern.permute.xlu0 0
      %830 = vperm.xlu0 %829, %v651
      %v831 = vpop.permute.xlu0 %830
      %832 = vset.pattern.permute.xlu0 0
      %833 = vperm.xlu0 %832, %v652
      %v834 = vpop.permute.xlu0 %833
      %835 = vset.pattern.permute.xlu0 0
      %836 = vperm.xlu0 %835, %v653
      %v837 = vpop.permute.xlu0 %836
      %838 = vset.pattern.permute.xlu0 0
      %839 = vperm.xlu0 %838, %v654
      %v840 = vpop.permute.xlu0 %839
      %841 = vset.pattern.permute.xlu0 0
      %842 = vperm.xlu0 %841, %v655
      %v843 = vpop.permute.xlu0 %842
      %844 = vset.pattern.permute.xlu0 0
      %845 = vperm.xlu0 %844, %v656
      %v846 = vpop.permute.xlu0 %845
      %847 = vset.pattern.permute.xlu0 0
      %848 = vperm.xlu0 %847, %v657
      %v849 = vpop.permute.xlu0 %848
      %850 = vset.pattern.permute.xlu0 0
      %851 = vperm.xlu0 %850, %v658
      %v852 = vpop.permute.xlu0 %851
      %853 = vset.pattern.permute.xlu0 0
      %854 = vperm.xlu0 %853, %v659
      %v855 = vpop.permute.xlu0 %854
      %856 = vset.pattern.permute.xlu0 0
      %857 = vperm.xlu0 %856, %v660
      %v858 = vpop.permute.xlu0 %857
      %859 = vset.pattern.permute.xlu0 0
      %860 = vperm.xlu0 %859, %v661
      %v861 = vpop.permute.xlu0 %860
      %862 = vset.pattern.permute.xlu0 0
      %863 = vperm.xlu0 %862, %v662
      %v864 = vpop.permute.xlu0 %863
      %865 = vset.pattern.permute.xlu0 0
      %866 = vperm.xlu0 %865, %v663
      %v867 = vpop.permute.xlu0 %866
      %868 = vset.pattern.permute.xlu0 0
      %869 = vperm.xlu0 %868, %v664
      %v870 = vpop.permute.xlu0 %869
      %871 = vset.pattern.permute.xlu0 0
      %872 = vperm.xlu0 %871, %v665
      %v873 = vpop.permute.xlu0 %872
      %874 = vset.pattern.permute.xlu0 0
      %875 = vperm.xlu0 %874, %v666
      %v876 = vpop.permute.xlu0 %875
      %877 = vset.pattern.permute.xlu0 0
      %878 = vperm.xlu0 %877, %v667
      %v879 = vpop.permute.xlu0 %878
      %880 = vset.pattern.permute.xlu0 0
      %881 = vperm.xlu0 %880, %v668
      %v882 = vpop.permute.xlu0 %881
      %883 = vset.pattern.permute.xlu0 0
      %884 = vperm.xlu0 %883, %v669
      %v885 = vpop.permute.xlu0 %884
      %886 = vset.pattern.permute.xlu0 0
      %887 = vperm.xlu0 %886, %v670
      %v888 = vpop.permute.xlu0 %887
      %889 = vset.pattern.permute.xlu0 0
      %890 = vperm.xlu0 %889, %v671
      %v891 = vpop.permute.xlu0 %890
      %892 = vset.pattern.permute.xlu0 0
      %893 = vperm.xlu0 %892, %v672
      %v894 = vpop.permute.xlu0 %893
      %895 = vset.pattern.permute.xlu0 0
      %896 = vperm.xlu0 %895, %v673
      %v897 = vpop.permute.xlu0 %896
      %898 = vset.pattern.permute.xlu0 0
      %899 = vperm.xlu0 %898, %v674
      %v900 = vpop.permute.xlu0 %899
      %901 = vset.pattern.permute.xlu0 0
      %902 = vperm.xlu0 %901, %v675
      %v903 = vpop.permute.xlu0 %902
      %904 = vset.pattern.permute.xlu0 0
      %905 = vperm.xlu0 %904, %v676
      %v906 = vpop.permute.xlu0 %905
      %907 = vset.pattern.permute.xlu0 0
      %908 = vperm.xlu0 %907, %v677
      %v909 = vpop.permute.xlu0 %908
      %910 = vset.pattern.permute.xlu0 0
      %911 = vperm.xlu0 %910, %v678
      %v912 = vpop.permute.xlu0 %911
      %913 = vset.pattern.permute.xlu0 0
      %914 = vperm.xlu0 %913, %v679
      %v915 = vpop.permute.xlu0 %914
      %916 = vset.pattern.permute.xlu0 0
      %917 = vperm.xlu0 %916, %v680
      %v918 = vpop.permute.xlu0 %917
      %919 = vset.pattern.permute.xlu0 0
      %920 = vperm.xlu0 %919, %v681
      %v921 = vpop.permute.xlu0 %920
      %922 = vset.pattern.permute.xlu0 0
      %923 = vperm.xlu0 %922, %v682
      %v924 = vpop.permute.xlu0 %923
      %925 = vset.pattern.permute.xlu0 0
      %926 = vperm.xlu0 %925, %v683
      %v927 = vpop.permute.xlu0 %926
      %928 = vset.pattern.permute.xlu0 0
      %929 = vperm.xlu0 %928, %v684
      %v930 = vpop.permute.xlu0 %929
      %931 = vset.pattern.permute.xlu0 0
      %932 = vperm.xlu0 %931, %v685
      %v933 = vpop.permute.xlu0 %932
      %934 = vset.pattern.permute.xlu0 0
      %935 = vperm.xlu0 %934, %v686
      %v936 = vpop.permute.xlu0 %935
      %937 = vset.pattern.permute.xlu0 0
      %938 = vperm.xlu0 %937, %v687
      %v939 = vpop.permute.xlu0 %938
      %940 = vset.pattern.permute.xlu0 0
      %941 = vperm.xlu0 %940, %v688
      %v942 = vpop.permute.xlu0 %941
      %943 = vset.pattern.permute.xlu0 0
      %944 = vperm.xlu0 %943, %v689
      %v945 = vpop.permute.xlu0 %944
      %946 = vset.pattern.permute.xlu0 0
      %947 = vperm.xlu0 %946, %v690
      %v948 = vpop.permute.xlu0 %947
      %vm949 = vcmp.eq.s32.totalorder %v756, %v759
      %vm950 = vcmp.eq.s32.totalorder %v756, %v762
      %vm951 = vcmp.eq.s32.totalorder %v756, %v765
      %vm952 = vcmp.eq.s32.totalorder %v756, %v768
      %vm953 = vcmp.eq.s32.totalorder %v756, %v771
      %vm954 = vcmp.eq.s32.totalorder %v756, %v774
      %vm955 = vcmp.eq.s32.totalorder %v756, %v777
      %vm956 = vcmp.eq.s32.totalorder %v756, %v780
      %vm957 = vcmp.eq.s32.totalorder %v756, %v783
      %vm958 = vcmp.eq.s32.totalorder %v756, %v786
      %vm959 = vcmp.eq.s32.totalorder %v756, %v789
      %vm960 = vcmp.eq.s32.totalorder %v756, %v792
      %vm961 = vcmp.eq.s32.totalorder %v756, %v795
      %vm962 = vcmp.eq.s32.totalorder %v756, %v798
      %vm963 = vcmp.eq.s32.totalorder %v756, %v801
      %vm964 = vcmp.eq.s32.totalorder %v756, %v804
      %vm965 = vcmp.eq.s32.totalorder %v756, %v807
      %vm966 = vcmp.eq.s32.totalorder %v756, %v810
      %vm967 = vcmp.eq.s32.totalorder %v756, %v813
      %vm968 = vcmp.eq.s32.totalorder %v756, %v816
      %vm969 = vcmp.eq.s32.totalorder %v756, %v819
      %vm970 = vcmp.eq.s32.totalorder %v756, %v822
      %vm971 = vcmp.eq.s32.totalorder %v756, %v825
      %vm972 = vcmp.eq.s32.totalorder %v756, %v828
      %vm973 = vcmp.eq.s32.totalorder %v756, %v831
      %vm974 = vcmp.eq.s32.totalorder %v756, %v834
      %vm975 = vcmp.eq.s32.totalorder %v756, %v837
      %vm976 = vcmp.eq.s32.totalorder %v756, %v840
      %vm977 = vcmp.eq.s32.totalorder %v756, %v843
      %vm978 = vcmp.eq.s32.totalorder %v756, %v846
      %vm979 = vcmp.eq.s32.totalorder %v756, %v849
      %vm980 = vcmp.eq.s32.totalorder %v756, %v852
      %vm981 = vcmp.eq.s32.totalorder %v756, %v855
      %vm982 = vcmp.eq.s32.totalorder %v756, %v858
      %vm983 = vcmp.eq.s32.totalorder %v756, %v861
      %vm984 = vcmp.eq.s32.totalorder %v756, %v864
      %vm985 = vcmp.eq.s32.totalorder %v756, %v867
      %vm986 = vcmp.eq.s32.totalorder %v756, %v870
      %vm987 = vcmp.eq.s32.totalorder %v756, %v873
      %vm988 = vcmp.eq.s32.totalorder %v756, %v876
      %vm989 = vcmp.eq.s32.totalorder %v756, %v879
      %vm990 = vcmp.eq.s32.totalorder %v756, %v882
      %vm991 = vcmp.eq.s32.totalorder %v756, %v885
      %vm992 = vcmp.eq.s32.totalorder %v756, %v888
      %vm993 = vcmp.eq.s32.totalorder %v756, %v891
      %vm994 = vcmp.eq.s32.totalorder %v756, %v894
      %vm995 = vcmp.eq.s32.totalorder %v756, %v897
      %vm996 = vcmp.eq.s32.totalorder %v756, %v900
      %vm997 = vcmp.eq.s32.totalorder %v756, %v903
      %vm998 = vcmp.eq.s32.totalorder %v756, %v906
      %vm999 = vcmp.eq.s32.totalorder %v756, %v909
      %vm1000 = vcmp.eq.s32.totalorder %v756, %v912
      %vm1001 = vcmp.eq.s32.totalorder %v756, %v915
      %vm1002 = vcmp.eq.s32.totalorder %v756, %v918
      %vm1003 = vcmp.eq.s32.totalorder %v756, %v921
      %vm1004 = vcmp.eq.s32.totalorder %v756, %v924
      %vm1005 = vcmp.eq.s32.totalorder %v756, %v927
      %vm1006 = vcmp.eq.s32.totalorder %v756, %v930
      %vm1007 = vcmp.eq.s32.totalorder %v756, %v933
      %vm1008 = vcmp.eq.s32.totalorder %v756, %v936
      %vm1009 = vcmp.eq.s32.totalorder %v756, %v939
      %vm1010 = vcmp.eq.s32.totalorder %v756, %v942
      %vm1011 = vcmp.eq.s32.totalorder %v756, %v945
      %vm1012 = vcmp.eq.s32.totalorder %v756, %v948
      %v1013 = vsel %vm949, 1, 0
      %v1014 = vsel %vm950, 1, 0
      %v1015 = vsel %vm951, 1, 0
      %v1016 = vsel %vm952, 1, 0
      %v1017 = vsel %vm953, 1, 0
      %v1018 = vsel %vm954, 1, 0
      %v1019 = vsel %vm955, 1, 0
      %v1020 = vsel %vm956, 1, 0
      %v1021 = vsel %vm957, 1, 0
      %v1022 = vsel %vm958, 1, 0
      %v1023 = vsel %vm959, 1, 0
      %v1024 = vsel %vm960, 1, 0
      %v1025 = vsel %vm961, 1, 0
      %v1026 = vsel %vm962, 1, 0
      %v1027 = vsel %vm963, 1, 0
      %v1028 = vsel %vm964, 1, 0
      %v1029 = vsel %vm965, 1, 0
      %v1030 = vsel %vm966, 1, 0
      %v1031 = vsel %vm967, 1, 0
      %v1032 = vsel %vm968, 1, 0
      %v1033 = vsel %vm969, 1, 0
      %v1034 = vsel %vm970, 1, 0
      %v1035 = vsel %vm971, 1, 0
      %v1036 = vsel %vm972, 1, 0
      %v1037 = vsel %vm973, 1, 0
      %v1038 = vsel %vm974, 1, 0
      %v1039 = vsel %vm975, 1, 0
      %v1040 = vsel %vm976, 1, 0
      %v1041 = vsel %vm977, 1, 0
      %v1042 = vsel %vm978, 1, 0
      %v1043 = vsel %vm979, 1, 0
      %v1044 = vsel %vm980, 1, 0
      %v1045 = vsel %vm981, 1, 0
      %v1046 = vsel %vm982, 1, 0
      %v1047 = vsel %vm983, 1, 0
      %v1048 = vsel %vm984, 1, 0
      %v1049 = vsel %vm985, 1, 0
      %v1050 = vsel %vm986, 1, 0
      %v1051 = vsel %vm987, 1, 0
      %v1052 = vsel %vm988, 1, 0
      %v1053 = vsel %vm989, 1, 0
      %v1054 = vsel %vm990, 1, 0
      %v1055 = vsel %vm991, 1, 0
      %v1056 = vsel %vm992, 1, 0
      %v1057 = vsel %vm993, 1, 0
      %v1058 = vsel %vm994, 1, 0
      %v1059 = vsel %vm995, 1, 0
      %v1060 = vsel %vm996, 1, 0
      %v1061 = vsel %vm997, 1, 0
      %v1062 = vsel %vm998, 1, 0
      %v1063 = vsel %vm999, 1, 0
      %v1064 = vsel %vm1000, 1, 0
      %v1065 = vsel %vm1001, 1, 0
      %v1066 = vsel %vm1002, 1, 0
      %v1067 = vsel %vm1003, 1, 0
      %v1068 = vsel %vm1004, 1, 0
      %v1069 = vsel %vm1005, 1, 0
      %v1070 = vsel %vm1006, 1, 0
      %v1071 = vsel %vm1007, 1, 0
      %v1072 = vsel %vm1008, 1, 0
      %v1073 = vsel %vm1009, 1, 0
      %v1074 = vsel %vm1010, 1, 0
      %v1075 = vsel %vm1011, 1, 0
      %v1076 = vsel %vm1012, 1, 0
      %v1077 = vcvt.s32.f32 %v1013
      %v1078 = vcvt.s32.f32 %v1014
      %v1079 = vcvt.s32.f32 %v1015
      %v1080 = vcvt.s32.f32 %v1016
      %v1081 = vcvt.s32.f32 %v1017
      %v1082 = vcvt.s32.f32 %v1018
      %v1083 = vcvt.s32.f32 %v1019
      %v1084 = vcvt.s32.f32 %v1020
      %v1085 = vcvt.s32.f32 %v1021
      %v1086 = vcvt.s32.f32 %v1022
      %v1087 = vcvt.s32.f32 %v1023
      %v1088 = vcvt.s32.f32 %v1024
      %v1089 = vcvt.s32.f32 %v1025
      %v1090 = vcvt.s32.f32 %v1026
      %v1091 = vcvt.s32.f32 %v1027
      %v1092 = vcvt.s32.f32 %v1028
      %v1093 = vcvt.s32.f32 %v1029
      %v1094 = vcvt.s32.f32 %v1030
      %v1095 = vcvt.s32.f32 %v1031
      %v1096 = vcvt.s32.f32 %v1032
      %v1097 = vcvt.s32.f32 %v1033
      %v1098 = vcvt.s32.f32 %v1034
      %v1099 = vcvt.s32.f32 %v1035
      %v1100 = vcvt.s32.f32 %v1036
      %v1101 = vcvt.s32.f32 %v1037
      %v1102 = vcvt.s32.f32 %v1038
      %v1103 = vcvt.s32.f32 %v1039
      %v1104 = vcvt.s32.f32 %v1040
      %v1105 = vcvt.s32.f32 %v1041
      %v1106 = vcvt.s32.f32 %v1042
      %v1107 = vcvt.s32.f32 %v1043
      %v1108 = vcvt.s32.f32 %v1044
      %v1109 = vcvt.s32.f32 %v1045
      %v1110 = vcvt.s32.f32 %v1046
      %v1111 = vcvt.s32.f32 %v1047
      %v1112 = vcvt.s32.f32 %v1048
      %v1113 = vcvt.s32.f32 %v1049
      %v1114 = vcvt.s32.f32 %v1050
      %v1115 = vcvt.s32.f32 %v1051
      %v1116 = vcvt.s32.f32 %v1052
      %v1117 = vcvt.s32.f32 %v1053
      %v1118 = vcvt.s32.f32 %v1054
      %v1119 = vcvt.s32.f32 %v1055
      %v1120 = vcvt.s32.f32 %v1056
      %v1121 = vcvt.s32.f32 %v1057
      %v1122 = vcvt.s32.f32 %v1058
      %v1123 = vcvt.s32.f32 %v1059
      %v1124 = vcvt.s32.f32 %v1060
      %v1125 = vcvt.s32.f32 %v1061
      %v1126 = vcvt.s32.f32 %v1062
      %v1127 = vcvt.s32.f32 %v1063
      %v1128 = vcvt.s32.f32 %v1064
      %v1129 = vcvt.s32.f32 %v1065
      %v1130 = vcvt.s32.f32 %v1066
      %v1131 = vcvt.s32.f32 %v1067
      %v1132 = vcvt.s32.f32 %v1068
      %v1133 = vcvt.s32.f32 %v1069
      %v1134 = vcvt.s32.f32 %v1070
      %v1135 = vcvt.s32.f32 %v1071
      %v1136 = vcvt.s32.f32 %v1072
      %v1137 = vcvt.s32.f32 %v1073
      %v1138 = vcvt.s32.f32 %v1074
      %v1139 = vcvt.s32.f32 %v1075
      %v1140 = vcvt.s32.f32 %v1076
      %v1141 = vpack.c.bf16 %v1078, %v1077
      %v1142 = vpack.c.bf16 %v1080, %v1079
      %v1143 = vpack.c.bf16 %v1082, %v1081
      %v1144 = vpack.c.bf16 %v1084, %v1083
      %v1145 = vpack.c.bf16 %v1086, %v1085
      %v1146 = vpack.c.bf16 %v1088, %v1087
      %v1147 = vpack.c.bf16 %v1090, %v1089
      %v1148 = vpack.c.bf16 %v1092, %v1091
      %v1149 = vpack.c.bf16 %v1094, %v1093
      %v1150 = vpack.c.bf16 %v1096, %v1095
      %v1151 = vpack.c.bf16 %v1098, %v1097
      %v1152 = vpack.c.bf16 %v1100, %v1099
      %v1153 = vpack.c.bf16 %v1102, %v1101
      %v1154 = vpack.c.bf16 %v1104, %v1103
      %v1155 = vpack.c.bf16 %v1106, %v1105
      %v1156 = vpack.c.bf16 %v1108, %v1107
      %v1157 = vpack.c.bf16 %v1110, %v1109
      %v1158 = vpack.c.bf16 %v1112, %v1111
      %v1159 = vpack.c.bf16 %v1114, %v1113
      %v1160 = vpack.c.bf16 %v1116, %v1115
      %v1161 = vpack.c.bf16 %v1118, %v1117
      %v1162 = vpack.c.bf16 %v1120, %v1119
      %v1163 = vpack.c.bf16 %v1122, %v1121
      %v1164 = vpack.c.bf16 %v1124, %v1123
      %v1165 = vpack.c.bf16 %v1126, %v1125
      %v1166 = vpack.c.bf16 %v1128, %v1127
      %v1167 = vpack.c.bf16 %v1130, %v1129
      %v1168 = vpack.c.bf16 %v1132, %v1131
      %v1169 = vpack.c.bf16 %v1134, %v1133
      %v1170 = vpack.c.bf16 %v1136, %v1135
      %v1171 = vpack.c.bf16 %v1138, %v1137
      %v1172 = vpack.c.bf16 %v1140, %v1139
      %1173 = vset.pattern.permute.xlu0 0
      %1174 = vperm.xlu0 %1173, %v691
      %v1175 = vpop.permute.xlu0 %1174
      %1176 = vset.pattern.permute.xlu0 0
      %1177 = vperm.xlu0 %1176, %v692
      %v1178 = vpop.permute.xlu0 %1177
      %1179 = vset.pattern.permute.xlu0 0
      %1180 = vperm.xlu0 %1179, %v693
      %v1181 = vpop.permute.xlu0 %1180
      %1182 = vset.pattern.permute.xlu0 0
      %1183 = vperm.xlu0 %1182, %v694
      %v1184 = vpop.permute.xlu0 %1183
      %1185 = vset.pattern.permute.xlu0 0
      %1186 = vperm.xlu0 %1185, %v695
      %v1187 = vpop.permute.xlu0 %1186
      %1188 = vset.pattern.permute.xlu0 0
      %1189 = vperm.xlu0 %1188, %v696
      %v1190 = vpop.permute.xlu0 %1189
      %1191 = vset.pattern.permute.xlu0 0
      %1192 = vperm.xlu0 %1191, %v697
      %v1193 = vpop.permute.xlu0 %1192
      %1194 = vset.pattern.permute.xlu0 0
      %1195 = vperm.xlu0 %1194, %v698
      %v1196 = vpop.permute.xlu0 %1195
      %1197 = vset.pattern.permute.xlu0 0
      %1198 = vperm.xlu0 %1197, %v699
      %v1199 = vpop.permute.xlu0 %1198
      %1200 = vset.pattern.permute.xlu0 0
      %1201 = vperm.xlu0 %1200, %v700
      %v1202 = vpop.permute.xlu0 %1201
      %1203 = vset.pattern.permute.xlu0 0
      %1204 = vperm.xlu0 %1203, %v701
      %v1205 = vpop.permute.xlu0 %1204
      %1206 = vset.pattern.permute.xlu0 0
      %1207 = vperm.xlu0 %1206, %v702
      %v1208 = vpop.permute.xlu0 %1207
      %1209 = vset.pattern.permute.xlu0 0
      %1210 = vperm.xlu0 %1209, %v703
      %v1211 = vpop.permute.xlu0 %1210
      %1212 = vset.pattern.permute.xlu0 0
      %1213 = vperm.xlu0 %1212, %v704
      %v1214 = vpop.permute.xlu0 %1213
      %1215 = vset.pattern.permute.xlu0 0
      %1216 = vperm.xlu0 %1215, %v705
      %v1217 = vpop.permute.xlu0 %1216
      %1218 = vset.pattern.permute.xlu0 0
      %1219 = vperm.xlu0 %1218, %v706
      %v1220 = vpop.permute.xlu0 %1219
      %1221 = vset.pattern.permute.xlu0 0
      %1222 = vperm.xlu0 %1221, %v707
      %v1223 = vpop.permute.xlu0 %1222
      %1224 = vset.pattern.permute.xlu0 0
      %1225 = vperm.xlu0 %1224, %v708
      %v1226 = vpop.permute.xlu0 %1225
      %1227 = vset.pattern.permute.xlu0 0
      %1228 = vperm.xlu0 %1227, %v709
      %v1229 = vpop.permute.xlu0 %1228
      %1230 = vset.pattern.permute.xlu0 0
      %1231 = vperm.xlu0 %1230, %v710
      %v1232 = vpop.permute.xlu0 %1231
      %1233 = vset.pattern.permute.xlu0 0
      %1234 = vperm.xlu0 %1233, %v711
      %v1235 = vpop.permute.xlu0 %1234
      %1236 = vset.pattern.permute.xlu0 0
      %1237 = vperm.xlu0 %1236, %v712
      %v1238 = vpop.permute.xlu0 %1237
      %1239 = vset.pattern.permute.xlu0 0
      %1240 = vperm.xlu0 %1239, %v713
      %v1241 = vpop.permute.xlu0 %1240
      %1242 = vset.pattern.permute.xlu0 0
      %1243 = vperm.xlu0 %1242, %v714
      %v1244 = vpop.permute.xlu0 %1243
      %1245 = vset.pattern.permute.xlu0 0
      %1246 = vperm.xlu0 %1245, %v715
      %v1247 = vpop.permute.xlu0 %1246
      %1248 = vset.pattern.permute.xlu0 0
      %1249 = vperm.xlu0 %1248, %v716
      %v1250 = vpop.permute.xlu0 %1249
      %1251 = vset.pattern.permute.xlu0 0
      %1252 = vperm.xlu0 %1251, %v717
      %v1253 = vpop.permute.xlu0 %1252
      %1254 = vset.pattern.permute.xlu0 0
      %1255 = vperm.xlu0 %1254, %v718
      %v1256 = vpop.permute.xlu0 %1255
      %1257 = vset.pattern.permute.xlu0 0
      %1258 = vperm.xlu0 %1257, %v719
      %v1259 = vpop.permute.xlu0 %1258
      %1260 = vset.pattern.permute.xlu0 0
      %1261 = vperm.xlu0 %1260, %v720
      %v1262 = vpop.permute.xlu0 %1261
      %1263 = vset.pattern.permute.xlu0 0
      %1264 = vperm.xlu0 %1263, %v721
      %v1265 = vpop.permute.xlu0 %1264
      %1266 = vset.pattern.permute.xlu0 0
      %1267 = vperm.xlu0 %1266, %v722
      %v1268 = vpop.permute.xlu0 %1267
      %1269 = vset.pattern.permute.xlu0 0
      %1270 = vperm.xlu0 %1269, %v723
      %v1271 = vpop.permute.xlu0 %1270
      %1272 = vset.pattern.permute.xlu0 0
      %1273 = vperm.xlu0 %1272, %v724
      %v1274 = vpop.permute.xlu0 %1273
      %1275 = vset.pattern.permute.xlu0 0
      %1276 = vperm.xlu0 %1275, %v725
      %v1277 = vpop.permute.xlu0 %1276
      %1278 = vset.pattern.permute.xlu0 0
      %1279 = vperm.xlu0 %1278, %v726
      %v1280 = vpop.permute.xlu0 %1279
      %1281 = vset.pattern.permute.xlu0 0
      %1282 = vperm.xlu0 %1281, %v727
      %v1283 = vpop.permute.xlu0 %1282
      %1284 = vset.pattern.permute.xlu0 0
      %1285 = vperm.xlu0 %1284, %v728
      %v1286 = vpop.permute.xlu0 %1285
      %1287 = vset.pattern.permute.xlu0 0
      %1288 = vperm.xlu0 %1287, %v729
      %v1289 = vpop.permute.xlu0 %1288
      %1290 = vset.pattern.permute.xlu0 0
      %1291 = vperm.xlu0 %1290, %v730
      %v1292 = vpop.permute.xlu0 %1291
      %1293 = vset.pattern.permute.xlu0 0
      %1294 = vperm.xlu0 %1293, %v731
      %v1295 = vpop.permute.xlu0 %1294
      %1296 = vset.pattern.permute.xlu0 0
      %1297 = vperm.xlu0 %1296, %v732
      %v1298 = vpop.permute.xlu0 %1297
      %1299 = vset.pattern.permute.xlu0 0
      %1300 = vperm.xlu0 %1299, %v733
      %v1301 = vpop.permute.xlu0 %1300
      %1302 = vset.pattern.permute.xlu0 0
      %1303 = vperm.xlu0 %1302, %v734
      %v1304 = vpop.permute.xlu0 %1303
      %1305 = vset.pattern.permute.xlu0 0
      %1306 = vperm.xlu0 %1305, %v735
      %v1307 = vpop.permute.xlu0 %1306
      %1308 = vset.pattern.permute.xlu0 0
      %1309 = vperm.xlu0 %1308, %v736
      %v1310 = vpop.permute.xlu0 %1309
      %1311 = vset.pattern.permute.xlu0 0
      %1312 = vperm.xlu0 %1311, %v737
      %v1313 = vpop.permute.xlu0 %1312
      %1314 = vset.pattern.permute.xlu0 0
      %1315 = vperm.xlu0 %1314, %v738
      %v1316 = vpop.permute.xlu0 %1315
      %1317 = vset.pattern.permute.xlu0 0
      %1318 = vperm.xlu0 %1317, %v739
      %v1319 = vpop.permute.xlu0 %1318
      %1320 = vset.pattern.permute.xlu0 0
      %1321 = vperm.xlu0 %1320, %v740
      %v1322 = vpop.permute.xlu0 %1321
      %1323 = vset.pattern.permute.xlu0 0
      %1324 = vperm.xlu0 %1323, %v741
      %v1325 = vpop.permute.xlu0 %1324
      %1326 = vset.pattern.permute.xlu0 0
      %1327 = vperm.xlu0 %1326, %v742
      %v1328 = vpop.permute.xlu0 %1327
      %1329 = vset.pattern.permute.xlu0 0
      %1330 = vperm.xlu0 %1329, %v743
      %v1331 = vpop.permute.xlu0 %1330
      %1332 = vset.pattern.permute.xlu0 0
      %1333 = vperm.xlu0 %1332, %v744
      %v1334 = vpop.permute.xlu0 %1333
      %1335 = vset.pattern.permute.xlu0 0
      %1336 = vperm.xlu0 %1335, %v745
      %v1337 = vpop.permute.xlu0 %1336
      %1338 = vset.pattern.permute.xlu0 0
      %1339 = vperm.xlu0 %1338, %v746
      %v1340 = vpop.permute.xlu0 %1339
      %1341 = vset.pattern.permute.xlu0 0
      %1342 = vperm.xlu0 %1341, %v747
      %v1343 = vpop.permute.xlu0 %1342
      %1344 = vset.pattern.permute.xlu0 0
      %1345 = vperm.xlu0 %1344, %v748
      %v1346 = vpop.permute.xlu0 %1345
      %1347 = vset.pattern.permute.xlu0 0
      %1348 = vperm.xlu0 %1347, %v749
      %v1349 = vpop.permute.xlu0 %1348
      %1350 = vset.pattern.permute.xlu0 0
      %1351 = vperm.xlu0 %1350, %v750
      %v1352 = vpop.permute.xlu0 %1351
      %1353 = vset.pattern.permute.xlu0 0
      %1354 = vperm.xlu0 %1353, %v751
      %v1355 = vpop.permute.xlu0 %1354
      %1356 = vset.pattern.permute.xlu0 0
      %1357 = vperm.xlu0 %1356, %v752
      %v1358 = vpop.permute.xlu0 %1357
      %1359 = vset.pattern.permute.xlu0 0
      %1360 = vperm.xlu0 %1359, %v753
      %v1361 = vpop.permute.xlu0 %1360
      %1362 = vset.pattern.permute.xlu0 0
      %1363 = vperm.xlu0 %1362, %v754
      %v1364 = vpop.permute.xlu0 %1363
      %vm1365 = vcmp.eq.s32.totalorder %v756, %v1175
      %vm1366 = vcmp.eq.s32.totalorder %v756, %v1178
      %vm1367 = vcmp.eq.s32.totalorder %v756, %v1181
      %vm1368 = vcmp.eq.s32.totalorder %v756, %v1184
      %vm1369 = vcmp.eq.s32.totalorder %v756, %v1187
      %vm1370 = vcmp.eq.s32.totalorder %v756, %v1190
      %vm1371 = vcmp.eq.s32.totalorder %v756, %v1193
      %vm1372 = vcmp.eq.s32.totalorder %v756, %v1196
      %vm1373 = vcmp.eq.s32.totalorder %v756, %v1199
      %vm1374 = vcmp.eq.s32.totalorder %v756, %v1202
      %vm1375 = vcmp.eq.s32.totalorder %v756, %v1205
      %vm1376 = vcmp.eq.s32.totalorder %v756, %v1208
      %vm1377 = vcmp.eq.s32.totalorder %v756, %v1211
      %vm1378 = vcmp.eq.s32.totalorder %v756, %v1214
      %vm1379 = vcmp.eq.s32.totalorder %v756, %v1217
      %vm1380 = vcmp.eq.s32.totalorder %v756, %v1220
      %vm1381 = vcmp.eq.s32.totalorder %v756, %v1223
      %vm1382 = vcmp.eq.s32.totalorder %v756, %v1226
      %vm1383 = vcmp.eq.s32.totalorder %v756, %v1229
      %vm1384 = vcmp.eq.s32.totalorder %v756, %v1232
      %vm1385 = vcmp.eq.s32.totalorder %v756, %v1235
      %vm1386 = vcmp.eq.s32.totalorder %v756, %v1238
      %vm1387 = vcmp.eq.s32.totalorder %v756, %v1241
      %vm1388 = vcmp.eq.s32.totalorder %v756, %v1244
      %vm1389 = vcmp.eq.s32.totalorder %v756, %v1247
      %vm1390 = vcmp.eq.s32.totalorder %v756, %v1250
      %vm1391 = vcmp.eq.s32.totalorder %v756, %v1253
      %vm1392 = vcmp.eq.s32.totalorder %v756, %v1256
      %vm1393 = vcmp.eq.s32.totalorder %v756, %v1259
      %vm1394 = vcmp.eq.s32.totalorder %v756, %v1262
      %vm1395 = vcmp.eq.s32.totalorder %v756, %v1265
      %vm1396 = vcmp.eq.s32.totalorder %v756, %v1268
      %vm1397 = vcmp.eq.s32.totalorder %v756, %v1271
      %vm1398 = vcmp.eq.s32.totalorder %v756, %v1274
      %vm1399 = vcmp.eq.s32.totalorder %v756, %v1277
      %vm1400 = vcmp.eq.s32.totalorder %v756, %v1280
      %vm1401 = vcmp.eq.s32.totalorder %v756, %v1283
      %vm1402 = vcmp.eq.s32.totalorder %v756, %v1286
      %vm1403 = vcmp.eq.s32.totalorder %v756, %v1289
      %vm1404 = vcmp.eq.s32.totalorder %v756, %v1292
      %vm1405 = vcmp.eq.s32.totalorder %v756, %v1295
      %vm1406 = vcmp.eq.s32.totalorder %v756, %v1298
      %vm1407 = vcmp.eq.s32.totalorder %v756, %v1301
      %vm1408 = vcmp.eq.s32.totalorder %v756, %v1304
      %vm1409 = vcmp.eq.s32.totalorder %v756, %v1307
      %vm1410 = vcmp.eq.s32.totalorder %v756, %v1310
      %vm1411 = vcmp.eq.s32.totalorder %v756, %v1313
      %vm1412 = vcmp.eq.s32.totalorder %v756, %v1316
      %vm1413 = vcmp.eq.s32.totalorder %v756, %v1319
      %vm1414 = vcmp.eq.s32.totalorder %v756, %v1322
      %vm1415 = vcmp.eq.s32.totalorder %v756, %v1325
      %vm1416 = vcmp.eq.s32.totalorder %v756, %v1328
      %vm1417 = vcmp.eq.s32.totalorder %v756, %v1331
      %vm1418 = vcmp.eq.s32.totalorder %v756, %v1334
      %vm1419 = vcmp.eq.s32.totalorder %v756, %v1337
      %vm1420 = vcmp.eq.s32.totalorder %v756, %v1340
      %vm1421 = vcmp.eq.s32.totalorder %v756, %v1343
      %vm1422 = vcmp.eq.s32.totalorder %v756, %v1346
      %vm1423 = vcmp.eq.s32.totalorder %v756, %v1349
      %vm1424 = vcmp.eq.s32.totalorder %v756, %v1352
      %vm1425 = vcmp.eq.s32.totalorder %v756, %v1355
      %vm1426 = vcmp.eq.s32.totalorder %v756, %v1358
      %vm1427 = vcmp.eq.s32.totalorder %v756, %v1361
      %vm1428 = vcmp.eq.s32.totalorder %v756, %v1364
      %v1429 = vsel %vm1365, 1, 0
      %v1430 = vsel %vm1366, 1, 0
      %v1431 = vsel %vm1367, 1, 0
      %v1432 = vsel %vm1368, 1, 0
      %v1433 = vsel %vm1369, 1, 0
      %v1434 = vsel %vm1370, 1, 0
      %v1435 = vsel %vm1371, 1, 0
      %v1436 = vsel %vm1372, 1, 0
      %v1437 = vsel %vm1373, 1, 0
      %v1438 = vsel %vm1374, 1, 0
      %v1439 = vsel %vm1375, 1, 0
      %v1440 = vsel %vm1376, 1, 0
      %v1441 = vsel %vm1377, 1, 0
      %v1442 = vsel %vm1378, 1, 0
      %v1443 = vsel %vm1379, 1, 0
      %v1444 = vsel %vm1380, 1, 0
      %v1445 = vsel %vm1381, 1, 0
      %v1446 = vsel %vm1382, 1, 0
      %v1447 = vsel %vm1383, 1, 0
      %v1448 = vsel %vm1384, 1, 0
      %v1449 = vsel %vm1385, 1, 0
      %v1450 = vsel %vm1386, 1, 0
      %v1451 = vsel %vm1387, 1, 0
      %v1452 = vsel %vm1388, 1, 0
      %v1453 = vsel %vm1389, 1, 0
      %v1454 = vsel %vm1390, 1, 0
      %v1455 = vsel %vm1391, 1, 0
      %v1456 = vsel %vm1392, 1, 0
      %v1457 = vsel %vm1393, 1, 0
      %v1458 = vsel %vm1394, 1, 0
      %v1459 = vsel %vm1395, 1, 0
      %v1460 = vsel %vm1396, 1, 0
      %v1461 = vsel %vm1397, 1, 0
      %v1462 = vsel %vm1398, 1, 0
      %v1463 = vsel %vm1399, 1, 0
      %v1464 = vsel %vm1400, 1, 0
      %v1465 = vsel %vm1401, 1, 0
      %v1466 = vsel %vm1402, 1, 0
      %v1467 = vsel %vm1403, 1, 0
      %v1468 = vsel %vm1404, 1, 0
      %v1469 = vsel %vm1405, 1, 0
      %v1470 = vsel %vm1406, 1, 0
      %v1471 = vsel %vm1407, 1, 0
      %v1472 = vsel %vm1408, 1, 0
      %v1473 = vsel %vm1409, 1, 0
      %v1474 = vsel %vm1410, 1, 0
      %v1475 = vsel %vm1411, 1, 0
      %v1476 = vsel %vm1412, 1, 0
      %v1477 = vsel %vm1413, 1, 0
      %v1478 = vsel %vm1414, 1, 0
      %v1479 = vsel %vm1415, 1, 0
      %v1480 = vsel %vm1416, 1, 0
      %v1481 = vsel %vm1417, 1, 0
      %v1482 = vsel %vm1418, 1, 0
      %v1483 = vsel %vm1419, 1, 0
      %v1484 = vsel %vm1420, 1, 0
      %v1485 = vsel %vm1421, 1, 0
      %v1486 = vsel %vm1422, 1, 0
      %v1487 = vsel %vm1423, 1, 0
      %v1488 = vsel %vm1424, 1, 0
      %v1489 = vsel %vm1425, 1, 0
      %v1490 = vsel %vm1426, 1, 0
      %v1491 = vsel %vm1427, 1, 0
      %v1492 = vsel %vm1428, 1, 0
      %v1493 = vcvt.s32.f32 %v1429
      %v1494 = vcvt.s32.f32 %v1430
      %v1495 = vcvt.s32.f32 %v1431
      %v1496 = vcvt.s32.f32 %v1432
      %v1497 = vcvt.s32.f32 %v1433
      %v1498 = vcvt.s32.f32 %v1434
      %v1499 = vcvt.s32.f32 %v1435
      %v1500 = vcvt.s32.f32 %v1436
      %v1501 = vcvt.s32.f32 %v1437
      %v1502 = vcvt.s32.f32 %v1438
      %v1503 = vcvt.s32.f32 %v1439
      %v1504 = vcvt.s32.f32 %v1440
      %v1505 = vcvt.s32.f32 %v1441
      %v1506 = vcvt.s32.f32 %v1442
      %v1507 = vcvt.s32.f32 %v1443
      %v1508 = vcvt.s32.f32 %v1444
      %v1509 = vcvt.s32.f32 %v1445
      %v1510 = vcvt.s32.f32 %v1446
      %v1511 = vcvt.s32.f32 %v1447
      %v1512 = vcvt.s32.f32 %v1448
      %v1513 = vcvt.s32.f32 %v1449
      %v1514 = vcvt.s32.f32 %v1450
      %v1515 = vcvt.s32.f32 %v1451
      %v1516 = vcvt.s32.f32 %v1452
      %v1517 = vcvt.s32.f32 %v1453
      %v1518 = vcvt.s32.f32 %v1454
      %v1519 = vcvt.s32.f32 %v1455
      %v1520 = vcvt.s32.f32 %v1456
      %v1521 = vcvt.s32.f32 %v1457
      %v1522 = vcvt.s32.f32 %v1458
      %v1523 = vcvt.s32.f32 %v1459
      %v1524 = vcvt.s32.f32 %v1460
      %v1525 = vcvt.s32.f32 %v1461
      %v1526 = vcvt.s32.f32 %v1462
      %v1527 = vcvt.s32.f32 %v1463
      %v1528 = vcvt.s32.f32 %v1464
      %v1529 = vcvt.s32.f32 %v1465
      %v1530 = vcvt.s32.f32 %v1466
      %v1531 = vcvt.s32.f32 %v1467
      %v1532 = vcvt.s32.f32 %v1468
      %v1533 = vcvt.s32.f32 %v1469
      %v1534 = vcvt.s32.f32 %v1470
      %v1535 = vcvt.s32.f32 %v1471
      %v1536 = vcvt.s32.f32 %v1472
      %v1537 = vcvt.s32.f32 %v1473
      %v1538 = vcvt.s32.f32 %v1474
      %v1539 = vcvt.s32.f32 %v1475
      %v1540 = vcvt.s32.f32 %v1476
      %v1541 = vcvt.s32.f32 %v1477
      %v1542 = vcvt.s32.f32 %v1478
      %v1543 = vcvt.s32.f32 %v1479
      %v1544 = vcvt.s32.f32 %v1480
      %v1545 = vcvt.s32.f32 %v1481
      %v1546 = vcvt.s32.f32 %v1482
      %v1547 = vcvt.s32.f32 %v1483
      %v1548 = vcvt.s32.f32 %v1484
      %v1549 = vcvt.s32.f32 %v1485
      %v1550 = vcvt.s32.f32 %v1486
      %v1551 = vcvt.s32.f32 %v1487
      %v1552 = vcvt.s32.f32 %v1488
      %v1553 = vcvt.s32.f32 %v1489
      %v1554 = vcvt.s32.f32 %v1490
      %v1555 = vcvt.s32.f32 %v1491
      %v1556 = vcvt.s32.f32 %v1492
      %v1557 = vpack.c.bf16 %v1494, %v1493
      %v1558 = vpack.c.bf16 %v1496, %v1495
      %v1559 = vpack.c.bf16 %v1498, %v1497
      %v1560 = vpack.c.bf16 %v1500, %v1499
      %v1561 = vpack.c.bf16 %v1502, %v1501
      %v1562 = vpack.c.bf16 %v1504, %v1503
      %v1563 = vpack.c.bf16 %v1506, %v1505
      %v1564 = vpack.c.bf16 %v1508, %v1507
      %v1565 = vpack.c.bf16 %v1510, %v1509
      %v1566 = vpack.c.bf16 %v1512, %v1511
      %v1567 = vpack.c.bf16 %v1514, %v1513
      %v1568 = vpack.c.bf16 %v1516, %v1515
      %v1569 = vpack.c.bf16 %v1518, %v1517
      %v1570 = vpack.c.bf16 %v1520, %v1519
      %v1571 = vpack.c.bf16 %v1522, %v1521
      %v1572 = vpack.c.bf16 %v1524, %v1523
      %v1573 = vpack.c.bf16 %v1526, %v1525
      %v1574 = vpack.c.bf16 %v1528, %v1527
      %v1575 = vpack.c.bf16 %v1530, %v1529
      %v1576 = vpack.c.bf16 %v1532, %v1531
      %v1577 = vpack.c.bf16 %v1534, %v1533
      %v1578 = vpack.c.bf16 %v1536, %v1535
      %v1579 = vpack.c.bf16 %v1538, %v1537
      %v1580 = vpack.c.bf16 %v1540, %v1539
      %v1581 = vpack.c.bf16 %v1542, %v1541
      %v1582 = vpack.c.bf16 %v1544, %v1543
      %v1583 = vpack.c.bf16 %v1546, %v1545
      %v1584 = vpack.c.bf16 %v1548, %v1547
      %v1585 = vpack.c.bf16 %v1550, %v1549
      %v1586 = vpack.c.bf16 %v1552, %v1551
      %v1587 = vpack.c.bf16 %v1554, %v1553
      %v1588 = vpack.c.bf16 %v1556, %v1555
      %v1589 = vld [vmem:[#allocation3] sm:$0xff]
      %v1590 = vld [vmem:[#allocation3 + $0x8] sm:$0xff]
      %v1591 = vld [vmem:[#allocation3 + $0x10] sm:$0xff]
      %v1592 = vld [vmem:[#allocation3 + $0x18] sm:$0xff]
      %v1593 = vld [vmem:[#allocation3 + $0x20] sm:$0xff]
      %v1594 = vld [vmem:[#allocation3 + $0x28] sm:$0xff]
      %v1595 = vld [vmem:[#allocation3 + $0x30] sm:$0xff]
      %v1596 = vld [vmem:[#allocation3 + $0x38] sm:$0xff]
      %1597 = vmatprep.subr.bf16.mxu0 0
      %1598 = vmatpush1.bf16.msra.mxu0 %v1589
      %1599 = vmatprep.subr.bf16.mxu0 0
      %1600 = vmatpush1.bf16.msra.mxu0 %v1590
      %1601 = vmatprep.subr.bf16.mxu0 0
      %1602 = vmatpush1.bf16.msra.mxu0 %v1591
      %1603 = vmatprep.subr.bf16.mxu0 0
      %1604 = vmatpush1.bf16.msra.mxu0 %v1592
      %1605 = vmatprep.subr.bf16.mxu0 0
      %1606 = vmatpush1.bf16.msra.mxu0 %v1593
      %1607 = vmatprep.subr.bf16.mxu0 0
      %1608 = vmatpush1.bf16.msra.mxu0 %v1594
      %1609 = vmatprep.subr.bf16.mxu0 0
      %1610 = vmatpush1.bf16.msra.mxu0 %v1595
      %1611 = vmatprep.subr.bf16.mxu0 0
      %1612 = vmatpush1.bf16.msra.mxu0 %v1596
      %1613 = vmatprep.subr.bf16.mxu0 0
      %1614 = vmatpush1.bf16.msra.mxu0 0
      %1615 = vmatprep.subr.bf16.mxu0 0
      %1616 = vmatpush1.bf16.msra.mxu0 0
      %1617 = vmatprep.subr.bf16.mxu0 0
      %1618 = vmatpush1.bf16.msra.mxu0 0
      %1619 = vmatprep.subr.bf16.mxu0 0
      %1620 = vmatpush1.bf16.msra.mxu0 0
      %1621 = vmatprep.subr.bf16.mxu0 0
      %1622 = vmatpush1.bf16.msra.mxu0 0
      %1623 = vmatprep.subr.bf16.mxu0 0
      %1624 = vmatpush1.bf16.msra.mxu0 0
      %1625 = vmatprep.subr.bf16.mxu0 0
      %1626 = vmatpush1.bf16.msra.mxu0 0
      %1627 = vmatprep.subr.bf16.mxu0 0
      %1628 = vmatpush1.bf16.msra.mxu0 0
      %1629 = vmatprep.mubr.bf16.mxu0 0
      %1630 = vmatmul.mubr.bf16.gmra.mrb[0].mxu0 %v1141
      %v1631 = vpop.f32.mrb[0].mxu0
      %v1632 = vadd.f32 0.0, %v1631
      %v1633 = vpop.f32.mrb[0].mxu0
      %v1634 = vpop.f32.mrb[0].mxu0
      %v1635 = vadd.f32 0.0, %v1634
      %v1636 = vpop.f32.mrb[0].mxu0
      %1637 = vmatprep.mubr.bf16.mxu0 0
      %1638 = vmatmul.mubr.bf16.gmra.mrb[0].mxu0 %v1142
      %v1639 = vpop.f32.mrb[0].mxu0
      %v1640 = vadd.f32 0.0, %v1639
      %v1641 = vpop.f32.mrb[0].mxu0
      %v1642 = vpop.f32.mrb[0].mxu0
      %v1643 = vadd.f32 0.0, %v1642
      %v1644 = vpop.f32.mrb[0].mxu0
      %1645 = vmatprep.mubr.bf16.mxu0 0
      %1646 = vmatmul.mubr.bf16.gmra.mrb[0].mxu0 %v1143
      %v1647 = vpop.f32.mrb[0].mxu0
      %v1648 = vadd.f32 0.0, %v1647
      %v1649 = vpop.f32.mrb[0].mxu0
      %v1650 = vpop.f32.mrb[0].mxu0
      %v1651 = vadd.f32 0.0, %v1650
      %v1652 = vpop.f32.mrb[0].mxu0
      %1653 = vmatprep.mubr.bf16.mxu0 0
      %1654 = vmatmul.mubr.bf16.gmra.mrb[0].mxu0 %v1144
      %v1655 = vpop.f32.mrb[0].mxu0
      %v1656 = vadd.f32 0.0, %v1655
      %v1657 = vpop.f32.mrb[0].mxu0
      %v1658 = vpop.f32.mrb[0].mxu0
      %v1659 = vadd.f32 0.0, %v1658
      %v1660 = vpop.f32.mrb[0].mxu0
      %1661 = vmatprep.mubr.bf16.mxu0 0
      %1662 = vmatmul.mubr.bf16.gmra.mrb[0].mxu0 %v1145
      %v1663 = vpop.f32.mrb[0].mxu0
      %v1664 = vadd.f32 0.0, %v1663
      %v1665 = vpop.f32.mrb[0].mxu0
      %v1666 = vpop.f32.mrb[0].mxu0
      %v1667 = vadd.f32 0.0, %v1666
      %v1668 = vpop.f32.mrb[0].mxu0
      %1669 = vmatprep.mubr.bf16.mxu0 0
      %1670 = vmatmul.mubr.bf16.gmra.mrb[0].mxu0 %v1146
      %v1671 = vpop.f32.mrb[0].mxu0
      %v1672 = vadd.f32 0.0, %v1671
      %v1673 = vpop.f32.mrb[0].mxu0
      %v1674 = vpop.f32.mrb[0].mxu0
      %v1675 = vadd.f32 0.0, %v1674
      %v1676 = vpop.f32.mrb[0].mxu0
      %1677 = vmatprep.mubr.bf16.mxu0 0
      %1678 = vmatmul.mubr.bf16.gmra.mrb[0].mxu0 %v1147
      %v1679 = vpop.f32.mrb[0].mxu0
      %v1680 = vadd.f32 0.0, %v1679
      %v1681 = vpop.f32.mrb[0].mxu0
      %v1682 = vpop.f32.mrb[0].mxu0
      %v1683 = vadd.f32 0.0, %v1682
      %v1684 = vpop.f32.mrb[0].mxu0
      %1685 = vmatprep.mubr.bf16.mxu0 0
      %1686 = vmatmul.mubr.bf16.gmra.mrb[0].mxu0 %v1148
      %v1687 = vpop.f32.mrb[0].mxu0
      %v1688 = vadd.f32 0.0, %v1687
      %v1689 = vpop.f32.mrb[0].mxu0
      %v1690 = vpop.f32.mrb[0].mxu0
      %v1691 = vadd.f32 0.0, %v1690
      %v1692 = vpop.f32.mrb[0].mxu0
      %1693 = vmatprep.mubr.bf16.mxu0 0
      %1694 = vmatmul.mubr.bf16.gmra.mrb[0].mxu0 %v1149
      %v1695 = vpop.f32.mrb[0].mxu0
      %v1696 = vadd.f32 0.0, %v1695
      %v1697 = vpop.f32.mrb[0].mxu0
      %v1698 = vpop.f32.mrb[0].mxu0
      %v1699 = vadd.f32 0.0, %v1698
      %v1700 = vpop.f32.mrb[0].mxu0
      %1701 = vmatprep.mubr.bf16.mxu0 0
      %1702 = vmatmul.mubr.bf16.gmra.mrb[0].mxu0 %v1150
      %v1703 = vpop.f32.mrb[0].mxu0
      %v1704 = vadd.f32 0.0, %v1703
      %v1705 = vpop.f32.mrb[0].mxu0
      %v1706 = vpop.f32.mrb[0].mxu0
      %v1707 = vadd.f32 0.0, %v1706
      %v1708 = vpop.f32.mrb[0].mxu0
      %1709 = vmatprep.mubr.bf16.mxu0 0
      %1710 = vmatmul.mubr.bf16.gmra.mrb[0].mxu0 %v1151
      %v1711 = vpop.f32.mrb[0].mxu0
      %v1712 = vadd.f32 0.0, %v1711
      %v1713 = vpop.f32.mrb[0].mxu0
      %v1714 = vpop.f32.mrb[0].mxu0
      %v1715 = vadd.f32 0.0, %v1714
      %v1716 = vpop.f32.mrb[0].mxu0
      %1717 = vmatprep.mubr.bf16.mxu0 0
      %1718 = vmatmul.mubr.bf16.gmra.mrb[0].mxu0 %v1152
      %v1719 = vpop.f32.mrb[0].mxu0
      %v1720 = vadd.f32 0.0, %v1719
      %v1721 = vpop.f32.mrb[0].mxu0
      %v1722 = vpop.f32.mrb[0].mxu0
      %v1723 = vadd.f32 0.0, %v1722
      %v1724 = vpop.f32.mrb[0].mxu0
      %1725 = vmatprep.mubr.bf16.mxu0 0
      %1726 = vmatmul.mubr.bf16.gmra.mrb[0].mxu0 %v1153
      %v1727 = vpop.f32.mrb[0].mxu0
      %v1728 = vadd.f32 0.0, %v1727
      %v1729 = vpop.f32.mrb[0].mxu0
      %v1730 = vpop.f32.mrb[0].mxu0
      %v1731 = vadd.f32 0.0, %v1730
      %v1732 = vpop.f32.mrb[0].mxu0
      %1733 = vmatprep.mubr.bf16.mxu0 0
      %1734 = vmatmul.mubr.bf16.gmra.mrb[0].mxu0 %v1154
      %v1735 = vpop.f32.mrb[0].mxu0
      %v1736 = vadd.f32 0.0, %v1735
      %v1737 = vpop.f32.mrb[0].mxu0
      %v1738 = vpop.f32.mrb[0].mxu0
      %v1739 = vadd.f32 0.0, %v1738
      %v1740 = vpop.f32.mrb[0].mxu0
      %1741 = vmatprep.mubr.bf16.mxu0 0
      %1742 = vmatmul.mubr.bf16.gmra.mrb[0].mxu0 %v1155
      %v1743 = vpop.f32.mrb[0].mxu0
      %v1744 = vadd.f32 0.0, %v1743
      %v1745 = vpop.f32.mrb[0].mxu0
      %v1746 = vpop.f32.mrb[0].mxu0
      %v1747 = vadd.f32 0.0, %v1746
      %v1748 = vpop.f32.mrb[0].mxu0
      %1749 = vmatprep.mubr.bf16.mxu0 0
      %1750 = vmatmul.mubr.bf16.gmra.mrb[0].mxu0 %v1156
      %v1751 = vpop.f32.mrb[0].mxu0
      %v1752 = vadd.f32 0.0, %v1751
      %v1753 = vpop.f32.mrb[0].mxu0
      %v1754 = vpop.f32.mrb[0].mxu0
      %v1755 = vadd.f32 0.0, %v1754
      %v1756 = vpop.f32.mrb[0].mxu0
      %1757 = vmatprep.mubr.bf16.mxu0 0
      %1758 = vmatmul.mubr.bf16.gmra.mrb[0].mxu0 %v1157
      %v1759 = vpop.f32.mrb[0].mxu0
      %v1760 = vadd.f32 0.0, %v1759
      %v1761 = vpop.f32.mrb[0].mxu0
      %v1762 = vpop.f32.mrb[0].mxu0
      %v1763 = vadd.f32 0.0, %v1762
      %v1764 = vpop.f32.mrb[0].mxu0
      %1765 = vmatprep.mubr.bf16.mxu0 0
      %1766 = vmatmul.mubr.bf16.gmra.mrb[0].mxu0 %v1158
      %v1767 = vpop.f32.mrb[0].mxu0
      %v1768 = vadd.f32 0.0, %v1767
      %v1769 = vpop.f32.mrb[0].mxu0
      %v1770 = vpop.f32.mrb[0].mxu0
      %v1771 = vadd.f32 0.0, %v1770
      %v1772 = vpop.f32.mrb[0].mxu0
      %1773 = vmatprep.mubr.bf16.mxu0 0
      %1774 = vmatmul.mubr.bf16.gmra.mrb[0].mxu0 %v1159
      %v1775 = vpop.f32.mrb[0].mxu0
      %v1776 = vadd.f32 0.0, %v1775
      %v1777 = vpop.f32.mrb[0].mxu0
      %v1778 = vpop.f32.mrb[0].mxu0
      %v1779 = vadd.f32 0.0, %v1778
      %v1780 = vpop.f32.mrb[0].mxu0
      %1781 = vmatprep.mubr.bf16.mxu0 0
      %1782 = vmatmul.mubr.bf16.gmra.mrb[0].mxu0 %v1160
      %v1783 = vpop.f32.mrb[0].mxu0
      %v1784 = vadd.f32 0.0, %v1783
      %v1785 = vpop.f32.mrb[0].mxu0
      %v1786 = vpop.f32.mrb[0].mxu0
      %v1787 = vadd.f32 0.0, %v1786
      %v1788 = vpop.f32.mrb[0].mxu0
      %1789 = vmatprep.mubr.bf16.mxu0 0
      %1790 = vmatmul.mubr.bf16.gmra.mrb[0].mxu0 %v1161
      %v1791 = vpop.f32.mrb[0].mxu0
      %v1792 = vadd.f32 0.0, %v1791
      %v1793 = vpop.f32.mrb[0].mxu0
      %v1794 = vpop.f32.mrb[0].mxu0
      %v1795 = vadd.f32 0.0, %v1794
      %v1796 = vpop.f32.mrb[0].mxu0
      %1797 = vmatprep.mubr.bf16.mxu0 0
      %1798 = vmatmul.mubr.bf16.gmra.mrb[0].mxu0 %v1162
      %v1799 = vpop.f32.mrb[0].mxu0
      %v1800 = vadd.f32 0.0, %v1799
      %v1801 = vpop.f32.mrb[0].mxu0
      %v1802 = vpop.f32.mrb[0].mxu0
      %v1803 = vadd.f32 0.0, %v1802
      %v1804 = vpop.f32.mrb[0].mxu0
      %1805 = vmatprep.mubr.bf16.mxu0 0
      %1806 = vmatmul.mubr.bf16.gmra.mrb[0].mxu0 %v1163
      %v1807 = vpop.f32.mrb[0].mxu0
      %v1808 = vadd.f32 0.0, %v1807
      %v1809 = vpop.f32.mrb[0].mxu0
      %v1810 = vpop.f32.mrb[0].mxu0
      %v1811 = vadd.f32 0.0, %v1810
      %v1812 = vpop.f32.mrb[0].mxu0
      %1813 = vmatprep.mubr.bf16.mxu0 0
      %1814 = vmatmul.mubr.bf16.gmra.mrb[0].mxu0 %v1164
      %v1815 = vpop.f32.mrb[0].mxu0
      %v1816 = vadd.f32 0.0, %v1815
      %v1817 = vpop.f32.mrb[0].mxu0
      %v1818 = vpop.f32.mrb[0].mxu0
      %v1819 = vadd.f32 0.0, %v1818
      %v1820 = vpop.f32.mrb[0].mxu0
      %1821 = vmatprep.mubr.bf16.mxu0 0
      %1822 = vmatmul.mubr.bf16.gmra.mrb[0].mxu0 %v1165
      %v1823 = vpop.f32.mrb[0].mxu0
      %v1824 = vadd.f32 0.0, %v1823
      %v1825 = vpop.f32.mrb[0].mxu0
      %v1826 = vpop.f32.mrb[0].mxu0
      %v1827 = vadd.f32 0.0, %v1826
      %v1828 = vpop.f32.mrb[0].mxu0
      %1829 = vmatprep.mubr.bf16.mxu0 0
      %1830 = vmatmul.mubr.bf16.gmra.mrb[0].mxu0 %v1166
      %v1831 = vpop.f32.mrb[0].mxu0
      %v1832 = vadd.f32 0.0, %v1831
      %v1833 = vpop.f32.mrb[0].mxu0
      %v1834 = vpop.f32.mrb[0].mxu0
      %v1835 = vadd.f32 0.0, %v1834
      %v1836 = vpop.f32.mrb[0].mxu0
      %1837 = vmatprep.mubr.bf16.mxu0 0
      %1838 = vmatmul.mubr.bf16.gmra.mrb[0].mxu0 %v1167
      %v1839 = vpop.f32.mrb[0].mxu0
      %v1840 = vadd.f32 0.0, %v1839
      %v1841 = vpop.f32.mrb[0].mxu0
      %v1842 = vpop.f32.mrb[0].mxu0
      %v1843 = vadd.f32 0.0, %v1842
      %v1844 = vpop.f32.mrb[0].mxu0
      %1845 = vmatprep.mubr.bf16.mxu0 0
      %1846 = vmatmul.mubr.bf16.gmra.mrb[0].mxu0 %v1168
      %v1847 = vpop.f32.mrb[0].mxu0
      %v1848 = vadd.f32 0.0, %v1847
      %v1849 = vpop.f32.mrb[0].mxu0
      %v1850 = vpop.f32.mrb[0].mxu0
      %v1851 = vadd.f32 0.0, %v1850
      %v1852 = vpop.f32.mrb[0].mxu0
      %1853 = vmatprep.mubr.bf16.mxu0 0
      %1854 = vmatmul.mubr.bf16.gmra.mrb[0].mxu0 %v1169
      %v1855 = vpop.f32.mrb[0].mxu0
      %v1856 = vadd.f32 0.0, %v1855
      %v1857 = vpop.f32.mrb[0].mxu0
      %v1858 = vpop.f32.mrb[0].mxu0
      %v1859 = vadd.f32 0.0, %v1858
      %v1860 = vpop.f32.mrb[0].mxu0
      %1861 = vmatprep.mubr.bf16.mxu0 0
      %1862 = vmatmul.mubr.bf16.gmra.mrb[0].mxu0 %v1170
      %v1863 = vpop.f32.mrb[0].mxu0
      %v1864 = vadd.f32 0.0, %v1863
      %v1865 = vpop.f32.mrb[0].mxu0
      %v1866 = vpop.f32.mrb[0].mxu0
      %v1867 = vadd.f32 0.0, %v1866
      %v1868 = vpop.f32.mrb[0].mxu0
      %1869 = vmatprep.mubr.bf16.mxu0 0
      %1870 = vmatmul.mubr.bf16.gmra.mrb[0].mxu0 %v1171
      %v1871 = vpop.f32.mrb[0].mxu0
      %v1872 = vadd.f32 0.0, %v1871
      %v1873 = vpop.f32.mrb[0].mxu0
      %v1874 = vpop.f32.mrb[0].mxu0
      %v1875 = vadd.f32 0.0, %v1874
      %v1876 = vpop.f32.mrb[0].mxu0
      %1877 = vmatprep.mubr.bf16.mxu0 0
      %1878 = vmatmul.mubr.bf16.gmra.mrb[0].mxu0 %v1172
      %v1879 = vpop.f32.mrb[0].mxu0
      %v1880 = vadd.f32 0.0, %v1879
      %v1881 = vpop.f32.mrb[0].mxu0
      %v1882 = vpop.f32.mrb[0].mxu0
      %v1883 = vadd.f32 0.0, %v1882
      %v1884 = vpop.f32.mrb[0].mxu0
      %1885 = vdwg.mxu0
      %v1886 = vld [vmem:[#allocation4] sm:$0xff]
      %v1887 = vld [vmem:[#allocation4 + $0x8] sm:$0xff]
      %v1888 = vld [vmem:[#allocation4 + $0x10] sm:$0xff]
      %v1889 = vld [vmem:[#allocation4 + $0x18] sm:$0xff]
      %v1890 = vld [vmem:[#allocation4 + $0x20] sm:$0xff]
      %v1891 = vld [vmem:[#allocation4 + $0x28] sm:$0xff]
      %v1892 = vld [vmem:[#allocation4 + $0x30] sm:$0xff]
      %v1893 = vld [vmem:[#allocation4 + $0x38] sm:$0xff]
      %1894 = vmatprep.subr.bf16.mxu0 0
      %1895 = vmatpush1.bf16.msra.mxu0 %v1886
      %1896 = vmatprep.subr.bf16.mxu0 0
      %1897 = vmatpush1.bf16.msra.mxu0 %v1887
      %1898 = vmatprep.subr.bf16.mxu0 0
      %1899 = vmatpush1.bf16.msra.mxu0 %v1888
      %1900 = vmatprep.subr.bf16.mxu0 0
      %1901 = vmatpush1.bf16.msra.mxu0 %v1889
      %1902 = vmatprep.subr.bf16.mxu0 0
      %1903 = vmatpush1.bf16.msra.mxu0 %v1890
      %1904 = vmatprep.subr.bf16.mxu0 0
      %1905 = vmatpush1.bf16.msra.mxu0 %v1891
      %1906 = vmatprep.subr.bf16.mxu0 0
      %1907 = vmatpush1.bf16.msra.mxu0 %v1892
      %1908 = vmatprep.subr.bf16.mxu0 0
      %1909 = vmatpush1.bf16.msra.mxu0 %v1893
      %1910 = vmatprep.subr.bf16.mxu0 0
      %1911 = vmatpush1.bf16.msra.mxu0 0
      %1912 = vmatprep.subr.bf16.mxu0 0
      %1913 = vmatpush1.bf16.msra.mxu0 0
      %1914 = vmatprep.subr.bf16.mxu0 0
      %1915 = vmatpush1.bf16.msra.mxu0 0
      %1916 = vmatprep.subr.bf16.mxu0 0
      %1917 = vmatpush1.bf16.msra.mxu0 0
      %1918 = vmatprep.subr.bf16.mxu0 0
      %1919 = vmatpush1.bf16.msra.mxu0 0
      %1920 = vmatprep.subr.bf16.mxu0 0
      %1921 = vmatpush1.bf16.msra.mxu0 0
      %1922 = vmatprep.subr.bf16.mxu0 0
      %1923 = vmatpush1.bf16.msra.mxu0 0
      %1924 = vmatprep.subr.bf16.mxu0 0
      %1925 = vmatpush1.bf16.msra.mxu0 0
      %1926 = vmatprep.mubr.bf16.mxu0 0
      %1927 = vmatmul.mubr.bf16.gmra.mrb[0].mxu0 %v1557
      %v1928 = vpop.f32.mrb[0].mxu0
      %v1929 = vadd.f32 0.0, %v1928
      %v1930 = vpop.f32.mrb[0].mxu0
      %v1931 = vpop.f32.mrb[0].mxu0
      %v1932 = vadd.f32 0.0, %v1931
      %v1933 = vpop.f32.mrb[0].mxu0
      %1934 = vmatprep.mubr.bf16.mxu0 0
      %1935 = vmatmul.mubr.bf16.gmra.mrb[0].mxu0 %v1558
      %v1936 = vpop.f32.mrb[0].mxu0
      %v1937 = vadd.f32 0.0, %v1936
      %v1938 = vpop.f32.mrb[0].mxu0
      %v1939 = vpop.f32.mrb[0].mxu0
      %v1940 = vadd.f32 0.0, %v1939
      %v1941 = vpop.f32.mrb[0].mxu0
      %1942 = vmatprep.mubr.bf16.mxu0 0
      %1943 = vmatmul.mubr.bf16.gmra.mrb[0].mxu0 %v1559
      %v1944 = vpop.f32.mrb[0].mxu0
      %v1945 = vadd.f32 0.0, %v1944
      %v1946 = vpop.f32.mrb[0].mxu0
      %v1947 = vpop.f32.mrb[0].mxu0
      %v1948 = vadd.f32 0.0, %v1947
      %v1949 = vpop.f32.mrb[0].mxu0
      %1950 = vmatprep.mubr.bf16.mxu0 0
      %1951 = vmatmul.mubr.bf16.gmra.mrb[0].mxu0 %v1560
      %v1952 = vpop.f32.mrb[0].mxu0
      %v1953 = vadd.f32 0.0, %v1952
      %v1954 = vpop.f32.mrb[0].mxu0
      %v1955 = vpop.f32.mrb[0].mxu0
      %v1956 = vadd.f32 0.0, %v1955
      %v1957 = vpop.f32.mrb[0].mxu0
      %1958 = vmatprep.mubr.bf16.mxu0 0
      %1959 = vmatmul.mubr.bf16.gmra.mrb[0].mxu0 %v1561
      %v1960 = vpop.f32.mrb[0].mxu0
      %v1961 = vadd.f32 0.0, %v1960
      %v1962 = vpop.f32.mrb[0].mxu0
      %v1963 = vpop.f32.mrb[0].mxu0
      %v1964 = vadd.f32 0.0, %v1963
      %v1965 = vpop.f32.mrb[0].mxu0
      %1966 = vmatprep.mubr.bf16.mxu0 0
      %1967 = vmatmul.mubr.bf16.gmra.mrb[0].mxu0 %v1562
      %v1968 = vpop.f32.mrb[0].mxu0
      %v1969 = vadd.f32 0.0, %v1968
      %v1970 = vpop.f32.mrb[0].mxu0
      %v1971 = vpop.f32.mrb[0].mxu0
      %v1972 = vadd.f32 0.0, %v1971
      %v1973 = vpop.f32.mrb[0].mxu0
      %1974 = vmatprep.mubr.bf16.mxu0 0
      %1975 = vmatmul.mubr.bf16.gmra.mrb[0].mxu0 %v1563
      %v1976 = vpop.f32.mrb[0].mxu0
      %v1977 = vadd.f32 0.0, %v1976
      %v1978 = vpop.f32.mrb[0].mxu0
      %v1979 = vpop.f32.mrb[0].mxu0
      %v1980 = vadd.f32 0.0, %v1979
      %v1981 = vpop.f32.mrb[0].mxu0
      %1982 = vmatprep.mubr.bf16.mxu0 0
      %1983 = vmatmul.mubr.bf16.gmra.mrb[0].mxu0 %v1564
      %v1984 = vpop.f32.mrb[0].mxu0
      %v1985 = vadd.f32 0.0, %v1984
      %v1986 = vpop.f32.mrb[0].mxu0
      %v1987 = vpop.f32.mrb[0].mxu0
      %v1988 = vadd.f32 0.0, %v1987
      %v1989 = vpop.f32.mrb[0].mxu0
      %1990 = vmatprep.mubr.bf16.mxu0 0
      %1991 = vmatmul.mubr.bf16.gmra.mrb[0].mxu0 %v1565
      %v1992 = vpop.f32.mrb[0].mxu0
      %v1993 = vadd.f32 0.0, %v1992
      %v1994 = vpop.f32.mrb[0].mxu0
      %v1995 = vpop.f32.mrb[0].mxu0
      %v1996 = vadd.f32 0.0, %v1995
      %v1997 = vpop.f32.mrb[0].mxu0
      %1998 = vmatprep.mubr.bf16.mxu0 0
      %1999 = vmatmul.mubr.bf16.gmra.mrb[0].mxu0 %v1566
      %v2000 = vpop.f32.mrb[0].mxu0
      %v2001 = vadd.f32 0.0, %v2000
      %v2002 = vpop.f32.mrb[0].mxu0
      %v2003 = vpop.f32.mrb[0].mxu0
      %v2004 = vadd.f32 0.0, %v2003
      %v2005 = vpop.f32.mrb[0].mxu0
      %2006 = vmatprep.mubr.bf16.mxu0 0
      %2007 = vmatmul.mubr.bf16.gmra.mrb[0].mxu0 %v1567
      %v2008 = vpop.f32.mrb[0].mxu0
      %v2009 = vadd.f32 0.0, %v2008
      %v2010 = vpop.f32.mrb[0].mxu0
      %v2011 = vpop.f32.mrb[0].mxu0
      %v2012 = vadd.f32 0.0, %v2011
      %v2013 = vpop.f32.mrb[0].mxu0
      %2014 = vmatprep.mubr.bf16.mxu0 0
      %2015 = vmatmul.mubr.bf16.gmra.mrb[0].mxu0 %v1568
      %v2016 = vpop.f32.mrb[0].mxu0
      %v2017 = vadd.f32 0.0, %v2016
      %v2018 = vpop.f32.mrb[0].mxu0
      %v2019 = vpop.f32.mrb[0].mxu0
      %v2020 = vadd.f32 0.0, %v2019
      %v2021 = vpop.f32.mrb[0].mxu0
      %2022 = vmatprep.mubr.bf16.mxu0 0
      %2023 = vmatmul.mubr.bf16.gmra.mrb[0].mxu0 %v1569
      %v2024 = vpop.f32.mrb[0].mxu0
      %v2025 = vadd.f32 0.0, %v2024
      %v2026 = vpop.f32.mrb[0].mxu0
      %v2027 = vpop.f32.mrb[0].mxu0
      %v2028 = vadd.f32 0.0, %v2027
      %v2029 = vpop.f32.mrb[0].mxu0
      %2030 = vmatprep.mubr.bf16.mxu0 0
      %2031 = vmatmul.mubr.bf16.gmra.mrb[0].mxu0 %v1570
      %v2032 = vpop.f32.mrb[0].mxu0
      %v2033 = vadd.f32 0.0, %v2032
      %v2034 = vpop.f32.mrb[0].mxu0
      %v2035 = vpop.f32.mrb[0].mxu0
      %v2036 = vadd.f32 0.0, %v2035
      %v2037 = vpop.f32.mrb[0].mxu0
      %2038 = vmatprep.mubr.bf16.mxu0 0
      %2039 = vmatmul.mubr.bf16.gmra.mrb[0].mxu0 %v1571
      %v2040 = vpop.f32.mrb[0].mxu0
      %v2041 = vadd.f32 0.0, %v2040
      %v2042 = vpop.f32.mrb[0].mxu0
      %v2043 = vpop.f32.mrb[0].mxu0
      %v2044 = vadd.f32 0.0, %v2043
      %v2045 = vpop.f32.mrb[0].mxu0
      %2046 = vmatprep.mubr.bf16.mxu0 0
      %2047 = vmatmul.mubr.bf16.gmra.mrb[0].mxu0 %v1572
      %v2048 = vpop.f32.mrb[0].mxu0
      %v2049 = vadd.f32 0.0, %v2048
      %v2050 = vpop.f32.mrb[0].mxu0
      %v2051 = vpop.f32.mrb[0].mxu0
      %v2052 = vadd.f32 0.0, %v2051
      %v2053 = vpop.f32.mrb[0].mxu0
      %2054 = vmatprep.mubr.bf16.mxu0 0
      %2055 = vmatmul.mubr.bf16.gmra.mrb[0].mxu0 %v1573
      %v2056 = vpop.f32.mrb[0].mxu0
      %v2057 = vadd.f32 0.0, %v2056
      %v2058 = vpop.f32.mrb[0].mxu0
      %v2059 = vpop.f32.mrb[0].mxu0
      %v2060 = vadd.f32 0.0, %v2059
      %v2061 = vpop.f32.mrb[0].mxu0
      %2062 = vmatprep.mubr.bf16.mxu0 0
      %2063 = vmatmul.mubr.bf16.gmra.mrb[0].mxu0 %v1574
      %v2064 = vpop.f32.mrb[0].mxu0
      %v2065 = vadd.f32 0.0, %v2064
      %v2066 = vpop.f32.mrb[0].mxu0
      %v2067 = vpop.f32.mrb[0].mxu0
      %v2068 = vadd.f32 0.0, %v2067
      %v2069 = vpop.f32.mrb[0].mxu0
      %2070 = vmatprep.mubr.bf16.mxu0 0
      %2071 = vmatmul.mubr.bf16.gmra.mrb[0].mxu0 %v1575
      %v2072 = vpop.f32.mrb[0].mxu0
      %v2073 = vadd.f32 0.0, %v2072
      %v2074 = vpop.f32.mrb[0].mxu0
      %v2075 = vpop.f32.mrb[0].mxu0
      %v2076 = vadd.f32 0.0, %v2075
      %v2077 = vpop.f32.mrb[0].mxu0
      %2078 = vmatprep.mubr.bf16.mxu0 0
      %2079 = vmatmul.mubr.bf16.gmra.mrb[0].mxu0 %v1576
      %v2080 = vpop.f32.mrb[0].mxu0
      %v2081 = vadd.f32 0.0, %v2080
      %v2082 = vpop.f32.mrb[0].mxu0
      %v2083 = vpop.f32.mrb[0].mxu0
      %v2084 = vadd.f32 0.0, %v2083
      %v2085 = vpop.f32.mrb[0].mxu0
      %2086 = vmatprep.mubr.bf16.mxu0 0
      %2087 = vmatmul.mubr.bf16.gmra.mrb[0].mxu0 %v1577
      %v2088 = vpop.f32.mrb[0].mxu0
      %v2089 = vadd.f32 0.0, %v2088
      %v2090 = vpop.f32.mrb[0].mxu0
      %v2091 = vpop.f32.mrb[0].mxu0
      %v2092 = vadd.f32 0.0, %v2091
      %v2093 = vpop.f32.mrb[0].mxu0
      %2094 = vmatprep.mubr.bf16.mxu0 0
      %2095 = vmatmul.mubr.bf16.gmra.mrb[0].mxu0 %v1578
      %v2096 = vpop.f32.mrb[0].mxu0
      %v2097 = vadd.f32 0.0, %v2096
      %v2098 = vpop.f32.mrb[0].mxu0
      %v2099 = vpop.f32.mrb[0].mxu0
      %v2100 = vadd.f32 0.0, %v2099
      %v2101 = vpop.f32.mrb[0].mxu0
      %2102 = vmatprep.mubr.bf16.mxu0 0
      %2103 = vmatmul.mubr.bf16.gmra.mrb[0].mxu0 %v1579
      %v2104 = vpop.f32.mrb[0].mxu0
      %v2105 = vadd.f32 0.0, %v2104
      %v2106 = vpop.f32.mrb[0].mxu0
      %v2107 = vpop.f32.mrb[0].mxu0
      %v2108 = vadd.f32 0.0, %v2107
      %v2109 = vpop.f32.mrb[0].mxu0
      %2110 = vmatprep.mubr.bf16.mxu0 0
      %2111 = vmatmul.mubr.bf16.gmra.mrb[0].mxu0 %v1580
      %v2112 = vpop.f32.mrb[0].mxu0
      %v2113 = vadd.f32 0.0, %v2112
      %v2114 = vpop.f32.mrb[0].mxu0
      %v2115 = vpop.f32.mrb[0].mxu0
      %v2116 = vadd.f32 0.0, %v2115
      %v2117 = vpop.f32.mrb[0].mxu0
      %2118 = vmatprep.mubr.bf16.mxu0 0
      %2119 = vmatmul.mubr.bf16.gmra.mrb[0].mxu0 %v1581
      %v2120 = vpop.f32.mrb[0].mxu0
      %v2121 = vadd.f32 0.0, %v2120
      %v2122 = vpop.f32.mrb[0].mxu0
      %v2123 = vpop.f32.mrb[0].mxu0
      %v2124 = vadd.f32 0.0, %v2123
      %v2125 = vpop.f32.mrb[0].mxu0
      %2126 = vmatprep.mubr.bf16.mxu0 0
      %2127 = vmatmul.mubr.bf16.gmra.mrb[0].mxu0 %v1582
      %v2128 = vpop.f32.mrb[0].mxu0
      %v2129 = vadd.f32 0.0, %v2128
      %v2130 = vpop.f32.mrb[0].mxu0
      %v2131 = vpop.f32.mrb[0].mxu0
      %v2132 = vadd.f32 0.0, %v2131
      %v2133 = vpop.f32.mrb[0].mxu0
      %2134 = vmatprep.mubr.bf16.mxu0 0
      %2135 = vmatmul.mubr.bf16.gmra.mrb[0].mxu0 %v1583
      %v2136 = vpop.f32.mrb[0].mxu0
      %v2137 = vadd.f32 0.0, %v2136
      %v2138 = vpop.f32.mrb[0].mxu0
      %v2139 = vpop.f32.mrb[0].mxu0
      %v2140 = vadd.f32 0.0, %v2139
      %v2141 = vpop.f32.mrb[0].mxu0
      %2142 = vmatprep.mubr.bf16.mxu0 0
      %2143 = vmatmul.mubr.bf16.gmra.mrb[0].mxu0 %v1584
      %v2144 = vpop.f32.mrb[0].mxu0
      %v2145 = vadd.f32 0.0, %v2144
      %v2146 = vpop.f32.mrb[0].mxu0
      %v2147 = vpop.f32.mrb[0].mxu0
      %v2148 = vadd.f32 0.0, %v2147
      %v2149 = vpop.f32.mrb[0].mxu0
      %2150 = vmatprep.mubr.bf16.mxu0 0
      %2151 = vmatmul.mubr.bf16.gmra.mrb[0].mxu0 %v1585
      %v2152 = vpop.f32.mrb[0].mxu0
      %v2153 = vadd.f32 0.0, %v2152
      %v2154 = vpop.f32.mrb[0].mxu0
      %v2155 = vpop.f32.mrb[0].mxu0
      %v2156 = vadd.f32 0.0, %v2155
      %v2157 = vpop.f32.mrb[0].mxu0
      %2158 = vmatprep.mubr.bf16.mxu0 0
      %2159 = vmatmul.mubr.bf16.gmra.mrb[0].mxu0 %v1586
      %v2160 = vpop.f32.mrb[0].mxu0
      %v2161 = vadd.f32 0.0, %v2160
      %v2162 = vpop.f32.mrb[0].mxu0
      %v2163 = vpop.f32.mrb[0].mxu0
      %v2164 = vadd.f32 0.0, %v2163
      %v2165 = vpop.f32.mrb[0].mxu0
      %2166 = vmatprep.mubr.bf16.mxu0 0
      %2167 = vmatmul.mubr.bf16.gmra.mrb[0].mxu0 %v1587
      %v2168 = vpop.f32.mrb[0].mxu0
      %v2169 = vadd.f32 0.0, %v2168
      %v2170 = vpop.f32.mrb[0].mxu0
      %v2171 = vpop.f32.mrb[0].mxu0
      %v2172 = vadd.f32 0.0, %v2171
      %v2173 = vpop.f32.mrb[0].mxu0
      %2174 = vmatprep.mubr.bf16.mxu0 0
      %2175 = vmatmul.mubr.bf16.gmra.mrb[0].mxu0 %v1588
      %v2176 = vpop.f32.mrb[0].mxu0
      %v2177 = vadd.f32 0.0, %v2176
      %v2178 = vpop.f32.mrb[0].mxu0
      %v2179 = vpop.f32.mrb[0].mxu0
      %v2180 = vadd.f32 0.0, %v2179
      %v2181 = vpop.f32.mrb[0].mxu0
      %2182 = vdwg.mxu0
      %2247 = vrot.lane.b32.xlu0 %v1929, 32
      %v2248 = vpop.permute.xlu0 %2247
      %2249 = vrot.lane.b32.xlu0 %v1932, 32
      %v2250 = vpop.permute.xlu0 %2249
      %2251 = vrot.lane.b32.xlu0 %v1937, 32
      %v2252 = vpop.permute.xlu0 %2251
      %2253 = vrot.lane.b32.xlu0 %v1940, 32
      %v2254 = vpop.permute.xlu0 %2253
      %2255 = vrot.lane.b32.xlu0 %v1945, 32
      %v2256 = vpop.permute.xlu0 %2255
      %2257 = vrot.lane.b32.xlu0 %v1948, 32
      %v2258 = vpop.permute.xlu0 %2257
      %2259 = vrot.lane.b32.xlu0 %v1953, 32
      %v2260 = vpop.permute.xlu0 %2259
      %2261 = vrot.lane.b32.xlu0 %v1956, 32
      %v2262 = vpop.permute.xlu0 %2261
      %2263 = vrot.lane.b32.xlu0 %v1961, 32
      %v2264 = vpop.permute.xlu0 %2263
      %2265 = vrot.lane.b32.xlu0 %v1964, 32
      %v2266 = vpop.permute.xlu0 %2265
      %2267 = vrot.lane.b32.xlu0 %v1969, 32
      %v2268 = vpop.permute.xlu0 %2267
      %2269 = vrot.lane.b32.xlu0 %v1972, 32
      %v2270 = vpop.permute.xlu0 %2269
      %2271 = vrot.lane.b32.xlu0 %v1977, 32
      %v2272 = vpop.permute.xlu0 %2271
      %2273 = vrot.lane.b32.xlu0 %v1980, 32
      %v2274 = vpop.permute.xlu0 %2273
      %2275 = vrot.lane.b32.xlu0 %v1985, 32
      %v2276 = vpop.permute.xlu0 %2275
      %2277 = vrot.lane.b32.xlu0 %v1988, 32
      %v2278 = vpop.permute.xlu0 %2277
      %2279 = vrot.lane.b32.xlu0 %v1993, 32
      %v2280 = vpop.permute.xlu0 %2279
      %2281 = vrot.lane.b32.xlu0 %v1996, 32
      %v2282 = vpop.permute.xlu0 %2281
      %2283 = vrot.lane.b32.xlu0 %v2001, 32
      %v2284 = vpop.permute.xlu0 %2283
      %2285 = vrot.lane.b32.xlu0 %v2004, 32
      %v2286 = vpop.permute.xlu0 %2285
      %2287 = vrot.lane.b32.xlu0 %v2009, 32
      %v2288 = vpop.permute.xlu0 %2287
      %2289 = vrot.lane.b32.xlu0 %v2012, 32
      %v2290 = vpop.permute.xlu0 %2289
      %2291 = vrot.lane.b32.xlu0 %v2017, 32
      %v2292 = vpop.permute.xlu0 %2291
      %2293 = vrot.lane.b32.xlu0 %v2020, 32
      %v2294 = vpop.permute.xlu0 %2293
      %2295 = vrot.lane.b32.xlu0 %v2025, 32
      %v2296 = vpop.permute.xlu0 %2295
      %2297 = vrot.lane.b32.xlu0 %v2028, 32
      %v2298 = vpop.permute.xlu0 %2297
      %2299 = vrot.lane.b32.xlu0 %v2033, 32
      %v2300 = vpop.permute.xlu0 %2299
      %2301 = vrot.lane.b32.xlu0 %v2036, 32
      %v2302 = vpop.permute.xlu0 %2301
      %2303 = vrot.lane.b32.xlu0 %v2041, 32
      %v2304 = vpop.permute.xlu0 %2303
      %2305 = vrot.lane.b32.xlu0 %v2044, 32
      %v2306 = vpop.permute.xlu0 %2305
      %2307 = vrot.lane.b32.xlu0 %v2049, 32
      %v2308 = vpop.permute.xlu0 %2307
      %2309 = vrot.lane.b32.xlu0 %v2052, 32
      %v2310 = vpop.permute.xlu0 %2309
      %2311 = vrot.lane.b32.xlu0 %v2057, 32
      %v2312 = vpop.permute.xlu0 %2311
      %2313 = vrot.lane.b32.xlu0 %v2060, 32
      %v2314 = vpop.permute.xlu0 %2313
      %2315 = vrot.lane.b32.xlu0 %v2065, 32
      %v2316 = vpop.permute.xlu0 %2315
      %2317 = vrot.lane.b32.xlu0 %v2068, 32
      %v2318 = vpop.permute.xlu0 %2317
      %2319 = vrot.lane.b32.xlu0 %v2073, 32
      %v2320 = vpop.permute.xlu0 %2319
      %2321 = vrot.lane.b32.xlu0 %v2076, 32
      %v2322 = vpop.permute.xlu0 %2321
      %2323 = vrot.lane.b32.xlu0 %v2081, 32
      %v2324 = vpop.permute.xlu0 %2323
      %2325 = vrot.lane.b32.xlu0 %v2084, 32
      %v2326 = vpop.permute.xlu0 %2325
      %2327 = vrot.lane.b32.xlu0 %v2089, 32
      %v2328 = vpop.permute.xlu0 %2327
      %2329 = vrot.lane.b32.xlu0 %v2092, 32
      %v2330 = vpop.permute.xlu0 %2329
      %2331 = vrot.lane.b32.xlu0 %v2097, 32
      %v2332 = vpop.permute.xlu0 %2331
      %2333 = vrot.lane.b32.xlu0 %v2100, 32
      %v2334 = vpop.permute.xlu0 %2333
      %2335 = vrot.lane.b32.xlu0 %v2105, 32
      %v2336 = vpop.permute.xlu0 %2335
      %2337 = vrot.lane.b32.xlu0 %v2108, 32
      %v2338 = vpop.permute.xlu0 %2337
      %2339 = vrot.lane.b32.xlu0 %v2113, 32
      %v2340 = vpop.permute.xlu0 %2339
      %2341 = vrot.lane.b32.xlu0 %v2116, 32
      %v2342 = vpop.permute.xlu0 %2341
      %2343 = vrot.lane.b32.xlu0 %v2121, 32
      %v2344 = vpop.permute.xlu0 %2343
      %2345 = vrot.lane.b32.xlu0 %v2124, 32
      %v2346 = vpop.permute.xlu0 %2345
      %2347 = vrot.lane.b32.xlu0 %v2129, 32
      %v2348 = vpop.permute.xlu0 %2347
      %2349 = vrot.lane.b32.xlu0 %v2132, 32
      %v2350 = vpop.permute.xlu0 %2349
      %2351 = vrot.lane.b32.xlu0 %v2137, 32
      %v2352 = vpop.permute.xlu0 %2351
      %2353 = vrot.lane.b32.xlu0 %v2140, 32
      %v2354 = vpop.permute.xlu0 %2353
      %2355 = vrot.lane.b32.xlu0 %v2145, 32
      %v2356 = vpop.permute.xlu0 %2355
      %2357 = vrot.lane.b32.xlu0 %v2148, 32
      %v2358 = vpop.permute.xlu0 %2357
      %2359 = vrot.lane.b32.xlu0 %v2153, 32
      %v2360 = vpop.permute.xlu0 %2359
      %2361 = vrot.lane.b32.xlu0 %v2156, 32
      %v2362 = vpop.permute.xlu0 %2361
      %2363 = vrot.lane.b32.xlu0 %v2161, 32
      %v2364 = vpop.permute.xlu0 %2363
      %2365 = vrot.lane.b32.xlu0 %v2164, 32
      %v2366 = vpop.permute.xlu0 %2365
      %2367 = vrot.lane.b32.xlu0 %v2169, 32
      %v2368 = vpop.permute.xlu0 %2367
      %2369 = vrot.lane.b32.xlu0 %v2172, 32
      %v2370 = vpop.permute.xlu0 %2369
      %2371 = vrot.lane.b32.xlu0 %v2177, 32
      %v2372 = vpop.permute.xlu0 %2371
      %2373 = vrot.lane.b32.xlu0 %v2180, 32
      %v2374 = vpop.permute.xlu0 %2373
      %v2439 = vadd.f32 %v1632, %v2248
      %v2440 = vadd.f32 %v1635, %v2250
      %v2441 = vadd.f32 %v1640, %v2252
      %v2442 = vadd.f32 %v1643, %v2254
      %v2443 = vadd.f32 %v1648, %v2256
      %v2444 = vadd.f32 %v1651, %v2258
      %v2445 = vadd.f32 %v1656, %v2260
      %v2446 = vadd.f32 %v1659, %v2262
      %v2447 = vadd.f32 %v1664, %v2264
      %v2448 = vadd.f32 %v1667, %v2266
      %v2449 = vadd.f32 %v1672, %v2268
      %v2450 = vadd.f32 %v1675, %v2270
      %v2451 = vadd.f32 %v1680, %v2272
      %v2452 = vadd.f32 %v1683, %v2274
      %v2453 = vadd.f32 %v1688, %v2276
      %v2454 = vadd.f32 %v1691, %v2278
      %v2455 = vadd.f32 %v1696, %v2280
      %v2456 = vadd.f32 %v1699, %v2282
      %v2457 = vadd.f32 %v1704, %v2284
      %v2458 = vadd.f32 %v1707, %v2286
      %v2459 = vadd.f32 %v1712, %v2288
      %v2460 = vadd.f32 %v1715, %v2290
      %v2461 = vadd.f32 %v1720, %v2292
      %v2462 = vadd.f32 %v1723, %v2294
      %v2463 = vadd.f32 %v1728, %v2296
      %v2464 = vadd.f32 %v1731, %v2298
      %v2465 = vadd.f32 %v1736, %v2300
      %v2466 = vadd.f32 %v1739, %v2302
      %v2467 = vadd.f32 %v1744, %v2304
      %v2468 = vadd.f32 %v1747, %v2306
      %v2469 = vadd.f32 %v1752, %v2308
      %v2470 = vadd.f32 %v1755, %v2310
      %v2471 = vadd.f32 %v1760, %v2312
      %v2472 = vadd.f32 %v1763, %v2314
      %v2473 = vadd.f32 %v1768, %v2316
      %v2474 = vadd.f32 %v1771, %v2318
      %v2475 = vadd.f32 %v1776, %v2320
      %v2476 = vadd.f32 %v1779, %v2322
      %v2477 = vadd.f32 %v1784, %v2324
      %v2478 = vadd.f32 %v1787, %v2326
      %v2479 = vadd.f32 %v1792, %v2328
      %v2480 = vadd.f32 %v1795, %v2330
      %v2481 = vadd.f32 %v1800, %v2332
      %v2482 = vadd.f32 %v1803, %v2334
      %v2483 = vadd.f32 %v1808, %v2336
      %v2484 = vadd.f32 %v1811, %v2338
      %v2485 = vadd.f32 %v1816, %v2340
      %v2486 = vadd.f32 %v1819, %v2342
      %v2487 = vadd.f32 %v1824, %v2344
      %v2488 = vadd.f32 %v1827, %v2346
      %v2489 = vadd.f32 %v1832, %v2348
      %v2490 = vadd.f32 %v1835, %v2350
      %v2491 = vadd.f32 %v1840, %v2352
      %v2492 = vadd.f32 %v1843, %v2354
      %v2493 = vadd.f32 %v1848, %v2356
      %v2494 = vadd.f32 %v1851, %v2358
      %v2495 = vadd.f32 %v1856, %v2360
      %v2496 = vadd.f32 %v1859, %v2362
      %v2497 = vadd.f32 %v1864, %v2364
      %v2498 = vadd.f32 %v1867, %v2366
      %v2499 = vadd.f32 %v1872, %v2368
      %v2500 = vadd.f32 %v1875, %v2370
      %v2501 = vadd.f32 %v1880, %v2372
      %v2502 = vadd.f32 %v1883, %v2374
      %v2503 = vxor.u32 %v2439, 2147483648
      %v2504 = vxor.u32 %v2440, 2147483648
      %v2505 = vxor.u32 %v2441, 2147483648
      %v2506 = vxor.u32 %v2442, 2147483648
      %v2507 = vxor.u32 %v2443, 2147483648
      %v2508 = vxor.u32 %v2444, 2147483648
      %v2509 = vxor.u32 %v2445, 2147483648
      %v2510 = vxor.u32 %v2446, 2147483648
      %v2511 = vxor.u32 %v2447, 2147483648
      %v2512 = vxor.u32 %v2448, 2147483648
      %v2513 = vxor.u32 %v2449, 2147483648
      %v2514 = vxor.u32 %v2450, 2147483648
      %v2515 = vxor.u32 %v2451, 2147483648
      %v2516 = vxor.u32 %v2452, 2147483648
      %v2517 = vxor.u32 %v2453, 2147483648
      %v2518 = vxor.u32 %v2454, 2147483648
      %v2519 = vxor.u32 %v2455, 2147483648
      %v2520 = vxor.u32 %v2456, 2147483648
      %v2521 = vxor.u32 %v2457, 2147483648
      %v2522 = vxor.u32 %v2458, 2147483648
      %v2523 = vxor.u32 %v2459, 2147483648
      %v2524 = vxor.u32 %v2460, 2147483648
      %v2525 = vxor.u32 %v2461, 2147483648
      %v2526 = vxor.u32 %v2462, 2147483648
      %v2527 = vxor.u32 %v2463, 2147483648
      %v2528 = vxor.u32 %v2464, 2147483648
      %v2529 = vxor.u32 %v2465, 2147483648
      %v2530 = vxor.u32 %v2466, 2147483648
      %v2531 = vxor.u32 %v2467, 2147483648
      %v2532 = vxor.u32 %v2468, 2147483648
      %v2533 = vxor.u32 %v2469, 2147483648
      %v2534 = vxor.u32 %v2470, 2147483648
      %v2535 = vxor.u32 %v2471, 2147483648
      %v2536 = vxor.u32 %v2472, 2147483648
      %v2537 = vxor.u32 %v2473, 2147483648
      %v2538 = vxor.u32 %v2474, 2147483648
      %v2539 = vxor.u32 %v2475, 2147483648
      %v2540 = vxor.u32 %v2476, 2147483648
      %v2541 = vxor.u32 %v2477, 2147483648
      %v2542 = vxor.u32 %v2478, 2147483648
      %v2543 = vxor.u32 %v2479, 2147483648
      %v2544 = vxor.u32 %v2480, 2147483648
      %v2545 = vxor.u32 %v2481, 2147483648
      %v2546 = vxor.u32 %v2482, 2147483648
      %v2547 = vxor.u32 %v2483, 2147483648
      %v2548 = vxor.u32 %v2484, 2147483648
      %v2549 = vxor.u32 %v2485, 2147483648
      %v2550 = vxor.u32 %v2486, 2147483648
      %v2551 = vxor.u32 %v2487, 2147483648
      %v2552 = vxor.u32 %v2488, 2147483648
      %v2553 = vxor.u32 %v2489, 2147483648
      %v2554 = vxor.u32 %v2490, 2147483648
      %v2555 = vxor.u32 %v2491, 2147483648
      %v2556 = vxor.u32 %v2492, 2147483648
      %v2557 = vxor.u32 %v2493, 2147483648
      %v2558 = vxor.u32 %v2494, 2147483648
      %v2559 = vxor.u32 %v2495, 2147483648
      %v2560 = vxor.u32 %v2496, 2147483648
      %v2561 = vxor.u32 %v2497, 2147483648
      %v2562 = vxor.u32 %v2498, 2147483648
      %v2563 = vxor.u32 %v2499, 2147483648
      %v2564 = vxor.u32 %v2500, 2147483648
      %v2565 = vxor.u32 %v2501, 2147483648
      %v2566 = vxor.u32 %v2502, 2147483648
      %v2567 = vmul.f32 %v2503, 1.442695
      %v2568 = vpow.pop %v2567
      %v2569 = vmul.f32 %v2504, 1.442695
      %v2570 = vpow.pop %v2569
      %v2571 = vmul.f32 %v2505, 1.442695
      %v2572 = vpow.pop %v2571
      %v2573 = vmul.f32 %v2506, 1.442695
      %v2574 = vpow.pop %v2573
      %v2575 = vmul.f32 %v2507, 1.442695
      %v2576 = vpow.pop %v2575
      %v2577 = vmul.f32 %v2508, 1.442695
      %v2578 = vpow.pop %v2577
      %v2579 = vmul.f32 %v2509, 1.442695
      %v2580 = vpow.pop %v2579
      %v2581 = vmul.f32 %v2510, 1.442695
      %v2582 = vpow.pop %v2581
      %v2583 = vmul.f32 %v2511, 1.442695
      %v2584 = vpow.pop %v2583
      %v2585 = vmul.f32 %v2512, 1.442695
      %v2586 = vpow.pop %v2585
      %v2587 = vmul.f32 %v2513, 1.442695
      %v2588 = vpow.pop %v2587
      %v2589 = vmul.f32 %v2514, 1.442695
      %v2590 = vpow.pop %v2589
      %v2591 = vmul.f32 %v2515, 1.442695
      %v2592 = vpow.pop %v2591
      %v2593 = vmul.f32 %v2516, 1.442695
      %v2594 = vpow.pop %v2593
      %v2595 = vmul.f32 %v2517, 1.442695
      %v2596 = vpow.pop %v2595
      %v2597 = vmul.f32 %v2518, 1.442695
      %v2598 = vpow.pop %v2597
      %v2599 = vmul.f32 %v2519, 1.442695
      %v2600 = vpow.pop %v2599
      %v2601 = vmul.f32 %v2520, 1.442695
      %v2602 = vpow.pop %v2601
      %v2603 = vmul.f32 %v2521, 1.442695
      %v2604 = vpow.pop %v2603
      %v2605 = vmul.f32 %v2522, 1.442695
      %v2606 = vpow.pop %v2605
      %v2607 = vmul.f32 %v2523, 1.442695
      %v2608 = vpow.pop %v2607
      %v2609 = vmul.f32 %v2524, 1.442695
      %v2610 = vpow.pop %v2609
      %v2611 = vmul.f32 %v2525, 1.442695
      %v2612 = vpow.pop %v2611
      %v2613 = vmul.f32 %v2526, 1.442695
      %v2614 = vpow.pop %v2613
      %v2615 = vmul.f32 %v2527, 1.442695
      %v2616 = vpow.pop %v2615
      %v2617 = vmul.f32 %v2528, 1.442695
      %v2618 = vpow.pop %v2617
      %v2619 = vmul.f32 %v2529, 1.442695
      %v2620 = vpow.pop %v2619
      %v2621 = vmul.f32 %v2530, 1.442695
      %v2622 = vpow.pop %v2621
      %v2623 = vmul.f32 %v2531, 1.442695
      %v2624 = vpow.pop %v2623
      %v2625 = vmul.f32 %v2532, 1.442695
      %v2626 = vpow.pop %v2625
      %v2627 = vmul.f32 %v2533, 1.442695
      %v2628 = vpow.pop %v2627
      %v2629 = vmul.f32 %v2534, 1.442695
      %v2630 = vpow.pop %v2629
      %v2631 = vmul.f32 %v2535, 1.442695
      %v2632 = vpow.pop %v2631
      %v2633 = vmul.f32 %v2536, 1.442695
      %v2634 = vpow.pop %v2633
      %v2635 = vmul.f32 %v2537, 1.442695
      %v2636 = vpow.pop %v2635
      %v2637 = vmul.f32 %v2538, 1.442695
      %v2638 = vpow.pop %v2637
      %v2639 = vmul.f32 %v2539, 1.442695
      %v2640 = vpow.pop %v2639
      %v2641 = vmul.f32 %v2540, 1.442695
      %v2642 = vpow.pop %v2641
      %v2643 = vmul.f32 %v2541, 1.442695
      %v2644 = vpow.pop %v2643
      %v2645 = vmul.f32 %v2542, 1.442695
      %v2646 = vpow.pop %v2645
      %v2647 = vmul.f32 %v2543, 1.442695
      %v2648 = vpow.pop %v2647
      %v2649 = vmul.f32 %v2544, 1.442695
      %v2650 = vpow.pop %v2649
      %v2651 = vmul.f32 %v2545, 1.442695
      %v2652 = vpow.pop %v2651
      %v2653 = vmul.f32 %v2546, 1.442695
      %v2654 = vpow.pop %v2653
      %v2655 = vmul.f32 %v2547, 1.442695
      %v2656 = vpow.pop %v2655
      %v2657 = vmul.f32 %v2548, 1.442695
      %v2658 = vpow.pop %v2657
      %v2659 = vmul.f32 %v2549, 1.442695
      %v2660 = vpow.pop %v2659
      %v2661 = vmul.f32 %v2550, 1.442695
      %v2662 = vpow.pop %v2661
      %v2663 = vmul.f32 %v2551, 1.442695
      %v2664 = vpow.pop %v2663
      %v2665 = vmul.f32 %v2552, 1.442695
      %v2666 = vpow.pop %v2665
      %v2667 = vmul.f32 %v2553, 1.442695
      %v2668 = vpow.pop %v2667
      %v2669 = vmul.f32 %v2554, 1.442695
      %v2670 = vpow.pop %v2669
      %v2671 = vmul.f32 %v2555, 1.442695
      %v2672 = vpow.pop %v2671
      %v2673 = vmul.f32 %v2556, 1.442695
      %v2674 = vpow.pop %v2673
      %v2675 = vmul.f32 %v2557, 1.442695
      %v2676 = vpow.pop %v2675
      %v2677 = vmul.f32 %v2558, 1.442695
      %v2678 = vpow.pop %v2677
      %v2679 = vmul.f32 %v2559, 1.442695
      %v2680 = vpow.pop %v2679
      %v2681 = vmul.f32 %v2560, 1.442695
      %v2682 = vpow.pop %v2681
      %v2683 = vmul.f32 %v2561, 1.442695
      %v2684 = vpow.pop %v2683
      %v2685 = vmul.f32 %v2562, 1.442695
      %v2686 = vpow.pop %v2685
      %v2687 = vmul.f32 %v2563, 1.442695
      %v2688 = vpow.pop %v2687
      %v2689 = vmul.f32 %v2564, 1.442695
      %v2690 = vpow.pop %v2689
      %v2691 = vmul.f32 %v2565, 1.442695
      %v2692 = vpow.pop %v2691
      %v2693 = vmul.f32 %v2566, 1.442695
      %v2694 = vpow.pop %v2693
      %v2695 = vadd.f32 %v2568, 1.0
      %v2696 = vadd.f32 %v2570, 1.0
      %v2697 = vadd.f32 %v2572, 1.0
      %v2698 = vadd.f32 %v2574, 1.0
      %v2699 = vadd.f32 %v2576, 1.0
      %v2700 = vadd.f32 %v2578, 1.0
      %v2701 = vadd.f32 %v2580, 1.0
      %v2702 = vadd.f32 %v2582, 1.0
      %v2703 = vadd.f32 %v2584, 1.0
      %v2704 = vadd.f32 %v2586, 1.0
      %v2705 = vadd.f32 %v2588, 1.0
      %v2706 = vadd.f32 %v2590, 1.0
      %v2707 = vadd.f32 %v2592, 1.0
      %v2708 = vadd.f32 %v2594, 1.0
      %v2709 = vadd.f32 %v2596, 1.0
      %v2710 = vadd.f32 %v2598, 1.0
      %v2711 = vadd.f32 %v2600, 1.0
      %v2712 = vadd.f32 %v2602, 1.0
      %v2713 = vadd.f32 %v2604, 1.0
      %v2714 = vadd.f32 %v2606, 1.0
      %v2715 = vadd.f32 %v2608, 1.0
      %v2716 = vadd.f32 %v2610, 1.0
      %v2717 = vadd.f32 %v2612, 1.0
      %v2718 = vadd.f32 %v2614, 1.0
      %v2719 = vadd.f32 %v2616, 1.0
      %v2720 = vadd.f32 %v2618, 1.0
      %v2721 = vadd.f32 %v2620, 1.0
      %v2722 = vadd.f32 %v2622, 1.0
      %v2723 = vadd.f32 %v2624, 1.0
      %v2724 = vadd.f32 %v2626, 1.0
      %v2725 = vadd.f32 %v2628, 1.0
      %v2726 = vadd.f32 %v2630, 1.0
      %v2727 = vadd.f32 %v2632, 1.0
      %v2728 = vadd.f32 %v2634, 1.0
      %v2729 = vadd.f32 %v2636, 1.0
      %v2730 = vadd.f32 %v2638, 1.0
      %v2731 = vadd.f32 %v2640, 1.0
      %v2732 = vadd.f32 %v2642, 1.0
      %v2733 = vadd.f32 %v2644, 1.0
      %v2734 = vadd.f32 %v2646, 1.0
      %v2735 = vadd.f32 %v2648, 1.0
      %v2736 = vadd.f32 %v2650, 1.0
      %v2737 = vadd.f32 %v2652, 1.0
      %v2738 = vadd.f32 %v2654, 1.0
      %v2739 = vadd.f32 %v2656, 1.0
      %v2740 = vadd.f32 %v2658, 1.0
      %v2741 = vadd.f32 %v2660, 1.0
      %v2742 = vadd.f32 %v2662, 1.0
      %v2743 = vadd.f32 %v2664, 1.0
      %v2744 = vadd.f32 %v2666, 1.0
      %v2745 = vadd.f32 %v2668, 1.0
      %v2746 = vadd.f32 %v2670, 1.0
      %v2747 = vadd.f32 %v2672, 1.0
      %v2748 = vadd.f32 %v2674, 1.0
      %v2749 = vadd.f32 %v2676, 1.0
      %v2750 = vadd.f32 %v2678, 1.0
      %v2751 = vadd.f32 %v2680, 1.0
      %v2752 = vadd.f32 %v2682, 1.0
      %v2753 = vadd.f32 %v2684, 1.0
      %v2754 = vadd.f32 %v2686, 1.0
      %v2755 = vadd.f32 %v2688, 1.0
      %v2756 = vadd.f32 %v2690, 1.0
      %v2757 = vadd.f32 %v2692, 1.0
      %v2758 = vadd.f32 %v2694, 1.0
      %v2759 = vrcp.pop %v2695
      %v2760 = vmul.f32 1.0, %v2759
      %v2761 = vrcp.pop %v2696
      %v2762 = vmul.f32 1.0, %v2761
      %v2763 = vrcp.pop %v2697
      %v2764 = vmul.f32 1.0, %v2763
      %v2765 = vrcp.pop %v2698
      %v2766 = vmul.f32 1.0, %v2765
      %v2767 = vrcp.pop %v2699
      %v2768 = vmul.f32 1.0, %v2767
      %v2769 = vrcp.pop %v2700
      %v2770 = vmul.f32 1.0, %v2769
      %v2771 = vrcp.pop %v2701
      %v2772 = vmul.f32 1.0, %v2771
      %v2773 = vrcp.pop %v2702
      %v2774 = vmul.f32 1.0, %v2773
      %v2775 = vrcp.pop %v2703
      %v2776 = vmul.f32 1.0, %v2775
      %v2777 = vrcp.pop %v2704
      %v2778 = vmul.f32 1.0, %v2777
      %v2779 = vrcp.pop %v2705
      %v2780 = vmul.f32 1.0, %v2779
      %v2781 = vrcp.pop %v2706
      %v2782 = vmul.f32 1.0, %v2781
      %v2783 = vrcp.pop %v2707
      %v2784 = vmul.f32 1.0, %v2783
      %v2785 = vrcp.pop %v2708
      %v2786 = vmul.f32 1.0, %v2785
      %v2787 = vrcp.pop %v2709
      %v2788 = vmul.f32 1.0, %v2787
      %v2789 = vrcp.pop %v2710
      %v2790 = vmul.f32 1.0, %v2789
      %v2791 = vrcp.pop %v2711
      %v2792 = vmul.f32 1.0, %v2791
      %v2793 = vrcp.pop %v2712
      %v2794 = vmul.f32 1.0, %v2793
      %v2795 = vrcp.pop %v2713
      %v2796 = vmul.f32 1.0, %v2795
      %v2797 = vrcp.pop %v2714
      %v2798 = vmul.f32 1.0, %v2797
      %v2799 = vrcp.pop %v2715
      %v2800 = vmul.f32 1.0, %v2799
      %v2801 = vrcp.pop %v2716
      %v2802 = vmul.f32 1.0, %v2801
      %v2803 = vrcp.pop %v2717
      %v2804 = vmul.f32 1.0, %v2803
      %v2805 = vrcp.pop %v2718
      %v2806 = vmul.f32 1.0, %v2805
      %v2807 = vrcp.pop %v2719
      %v2808 = vmul.f32 1.0, %v2807
      %v2809 = vrcp.pop %v2720
      %v2810 = vmul.f32 1.0, %v2809
      %v2811 = vrcp.pop %v2721
      %v2812 = vmul.f32 1.0, %v2811
      %v2813 = vrcp.pop %v2722
      %v2814 = vmul.f32 1.0, %v2813
      %v2815 = vrcp.pop %v2723
      %v2816 = vmul.f32 1.0, %v2815
      %v2817 = vrcp.pop %v2724
      %v2818 = vmul.f32 1.0, %v2817
      %v2819 = vrcp.pop %v2725
      %v2820 = vmul.f32 1.0, %v2819
      %v2821 = vrcp.pop %v2726
      %v2822 = vmul.f32 1.0, %v2821
      %v2823 = vrcp.pop %v2727
      %v2824 = vmul.f32 1.0, %v2823
      %v2825 = vrcp.pop %v2728
      %v2826 = vmul.f32 1.0, %v2825
      %v2827 = vrcp.pop %v2729
      %v2828 = vmul.f32 1.0, %v2827
      %v2829 = vrcp.pop %v2730
      %v2830 = vmul.f32 1.0, %v2829
      %v2831 = vrcp.pop %v2731
      %v2832 = vmul.f32 1.0, %v2831
      %v2833 = vrcp.pop %v2732
      %v2834 = vmul.f32 1.0, %v2833
      %v2835 = vrcp.pop %v2733
      %v2836 = vmul.f32 1.0, %v2835
      %v2837 = vrcp.pop %v2734
      %v2838 = vmul.f32 1.0, %v2837
      %v2839 = vrcp.pop %v2735
      %v2840 = vmul.f32 1.0, %v2839
      %v2841 = vrcp.pop %v2736
      %v2842 = vmul.f32 1.0, %v2841
      %v2843 = vrcp.pop %v2737
      %v2844 = vmul.f32 1.0, %v2843
      %v2845 = vrcp.pop %v2738
      %v2846 = vmul.f32 1.0, %v2845
      %v2847 = vrcp.pop %v2739
      %v2848 = vmul.f32 1.0, %v2847
      %v2849 = vrcp.pop %v2740
      %v2850 = vmul.f32 1.0, %v2849
      %v2851 = vrcp.pop %v2741
      %v2852 = vmul.f32 1.0, %v2851
      %v2853 = vrcp.pop %v2742
      %v2854 = vmul.f32 1.0, %v2853
      %v2855 = vrcp.pop %v2743
      %v2856 = vmul.f32 1.0, %v2855
      %v2857 = vrcp.pop %v2744
      %v2858 = vmul.f32 1.0, %v2857
      %v2859 = vrcp.pop %v2745
      %v2860 = vmul.f32 1.0, %v2859
      %v2861 = vrcp.pop %v2746
      %v2862 = vmul.f32 1.0, %v2861
      %v2863 = vrcp.pop %v2747
      %v2864 = vmul.f32 1.0, %v2863
      %v2865 = vrcp.pop %v2748
      %v2866 = vmul.f32 1.0, %v2865
      %v2867 = vrcp.pop %v2749
      %v2868 = vmul.f32 1.0, %v2867
      %v2869 = vrcp.pop %v2750
      %v2870 = vmul.f32 1.0, %v2869
      %v2871 = vrcp.pop %v2751
      %v2872 = vmul.f32 1.0, %v2871
      %v2873 = vrcp.pop %v2752
      %v2874 = vmul.f32 1.0, %v2873
      %v2875 = vrcp.pop %v2753
      %v2876 = vmul.f32 1.0, %v2875
      %v2877 = vrcp.pop %v2754
      %v2878 = vmul.f32 1.0, %v2877
      %v2879 = vrcp.pop %v2755
      %v2880 = vmul.f32 1.0, %v2879
      %v2881 = vrcp.pop %v2756
      %v2882 = vmul.f32 1.0, %v2881
      %v2883 = vrcp.pop %v2757
      %v2884 = vmul.f32 1.0, %v2883
      %v2885 = vrcp.pop %v2758
      %v2886 = vmul.f32 1.0, %v2885
      %2951 = vrot.lane.b32.xlu0 %v2760, 96
      %v2952 = vpop.permute.xlu0 %2951
      %2953 = vrot.lane.b32.xlu0 %v2762, 96
      %v2954 = vpop.permute.xlu0 %2953
      %2955 = vrot.lane.b32.xlu0 %v2764, 96
      %v2956 = vpop.permute.xlu0 %2955
      %2957 = vrot.lane.b32.xlu0 %v2766, 96
      %v2958 = vpop.permute.xlu0 %2957
      %2959 = vrot.lane.b32.xlu0 %v2768, 96
      %v2960 = vpop.permute.xlu0 %2959
      %2961 = vrot.lane.b32.xlu0 %v2770, 96
      %v2962 = vpop.permute.xlu0 %2961
      %2963 = vrot.lane.b32.xlu0 %v2772, 96
      %v2964 = vpop.permute.xlu0 %2963
      %2965 = vrot.lane.b32.xlu0 %v2774, 96
      %v2966 = vpop.permute.xlu0 %2965
      %2967 = vrot.lane.b32.xlu0 %v2776, 96
      %v2968 = vpop.permute.xlu0 %2967
      %2969 = vrot.lane.b32.xlu0 %v2778, 96
      %v2970 = vpop.permute.xlu0 %2969
      %2971 = vrot.lane.b32.xlu0 %v2780, 96
      %v2972 = vpop.permute.xlu0 %2971
      %2973 = vrot.lane.b32.xlu0 %v2782, 96
      %v2974 = vpop.permute.xlu0 %2973
      %2975 = vrot.lane.b32.xlu0 %v2784, 96
      %v2976 = vpop.permute.xlu0 %2975
      %2977 = vrot.lane.b32.xlu0 %v2786, 96
      %v2978 = vpop.permute.xlu0 %2977
      %2979 = vrot.lane.b32.xlu0 %v2788, 96
      %v2980 = vpop.permute.xlu0 %2979
      %2981 = vrot.lane.b32.xlu0 %v2790, 96
      %v2982 = vpop.permute.xlu0 %2981
      %2983 = vrot.lane.b32.xlu0 %v2792, 96
      %v2984 = vpop.permute.xlu0 %2983
      %2985 = vrot.lane.b32.xlu0 %v2794, 96
      %v2986 = vpop.permute.xlu0 %2985
      %2987 = vrot.lane.b32.xlu0 %v2796, 96
      %v2988 = vpop.permute.xlu0 %2987
      %2989 = vrot.lane.b32.xlu0 %v2798, 96
      %v2990 = vpop.permute.xlu0 %2989
      %2991 = vrot.lane.b32.xlu0 %v2800, 96
      %v2992 = vpop.permute.xlu0 %2991
      %2993 = vrot.lane.b32.xlu0 %v2802, 96
      %v2994 = vpop.permute.xlu0 %2993
      %2995 = vrot.lane.b32.xlu0 %v2804, 96
      %v2996 = vpop.permute.xlu0 %2995
      %2997 = vrot.lane.b32.xlu0 %v2806, 96
      %v2998 = vpop.permute.xlu0 %2997
      %2999 = vrot.lane.b32.xlu0 %v2808, 96
      %v3000 = vpop.permute.xlu0 %2999
      %3001 = vrot.lane.b32.xlu0 %v2810, 96
      %v3002 = vpop.permute.xlu0 %3001
      %3003 = vrot.lane.b32.xlu0 %v2812, 96
      %v3004 = vpop.permute.xlu0 %3003
      %3005 = vrot.lane.b32.xlu0 %v2814, 96
      %v3006 = vpop.permute.xlu0 %3005
      %3007 = vrot.lane.b32.xlu0 %v2816, 96
      %v3008 = vpop.permute.xlu0 %3007
      %3009 = vrot.lane.b32.xlu0 %v2818, 96
      %v3010 = vpop.permute.xlu0 %3009
      %3011 = vrot.lane.b32.xlu0 %v2820, 96
      %v3012 = vpop.permute.xlu0 %3011
      %3013 = vrot.lane.b32.xlu0 %v2822, 96
      %v3014 = vpop.permute.xlu0 %3013
      %3015 = vrot.lane.b32.xlu0 %v2824, 96
      %v3016 = vpop.permute.xlu0 %3015
      %3017 = vrot.lane.b32.xlu0 %v2826, 96
      %v3018 = vpop.permute.xlu0 %3017
      %3019 = vrot.lane.b32.xlu0 %v2828, 96
      %v3020 = vpop.permute.xlu0 %3019
      %3021 = vrot.lane.b32.xlu0 %v2830, 96
      %v3022 = vpop.permute.xlu0 %3021
      %3023 = vrot.lane.b32.xlu0 %v2832, 96
      %v3024 = vpop.permute.xlu0 %3023
      %3025 = vrot.lane.b32.xlu0 %v2834, 96
      %v3026 = vpop.permute.xlu0 %3025
      %3027 = vrot.lane.b32.xlu0 %v2836, 96
      %v3028 = vpop.permute.xlu0 %3027
      %3029 = vrot.lane.b32.xlu0 %v2838, 96
      %v3030 = vpop.permute.xlu0 %3029
      %3031 = vrot.lane.b32.xlu0 %v2840, 96
      %v3032 = vpop.permute.xlu0 %3031
      %3033 = vrot.lane.b32.xlu0 %v2842, 96
      %v3034 = vpop.permute.xlu0 %3033
      %3035 = vrot.lane.b32.xlu0 %v2844, 96
      %v3036 = vpop.permute.xlu0 %3035
      %3037 = vrot.lane.b32.xlu0 %v2846, 96
      %v3038 = vpop.permute.xlu0 %3037
      %3039 = vrot.lane.b32.xlu0 %v2848, 96
      %v3040 = vpop.permute.xlu0 %3039
      %3041 = vrot.lane.b32.xlu0 %v2850, 96
      %v3042 = vpop.permute.xlu0 %3041
      %3043 = vrot.lane.b32.xlu0 %v2852, 96
      %v3044 = vpop.permute.xlu0 %3043
      %3045 = vrot.lane.b32.xlu0 %v2854, 96
      %v3046 = vpop.permute.xlu0 %3045
      %3047 = vrot.lane.b32.xlu0 %v2856, 96
      %v3048 = vpop.permute.xlu0 %3047
      %3049 = vrot.lane.b32.xlu0 %v2858, 96
      %v3050 = vpop.permute.xlu0 %3049
      %3051 = vrot.lane.b32.xlu0 %v2860, 96
      %v3052 = vpop.permute.xlu0 %3051
      %3053 = vrot.lane.b32.xlu0 %v2862, 96
      %v3054 = vpop.permute.xlu0 %3053
      %3055 = vrot.lane.b32.xlu0 %v2864, 96
      %v3056 = vpop.permute.xlu0 %3055
      %3057 = vrot.lane.b32.xlu0 %v2866, 96
      %v3058 = vpop.permute.xlu0 %3057
      %3059 = vrot.lane.b32.xlu0 %v2868, 96
      %v3060 = vpop.permute.xlu0 %3059
      %3061 = vrot.lane.b32.xlu0 %v2870, 96
      %v3062 = vpop.permute.xlu0 %3061
      %3063 = vrot.lane.b32.xlu0 %v2872, 96
      %v3064 = vpop.permute.xlu0 %3063
      %3065 = vrot.lane.b32.xlu0 %v2874, 96
      %v3066 = vpop.permute.xlu0 %3065
      %3067 = vrot.lane.b32.xlu0 %v2876, 96
      %v3068 = vpop.permute.xlu0 %3067
      %3069 = vrot.lane.b32.xlu0 %v2878, 96
      %v3070 = vpop.permute.xlu0 %3069
      %3071 = vrot.lane.b32.xlu0 %v2880, 96
      %v3072 = vpop.permute.xlu0 %3071
      %3073 = vrot.lane.b32.xlu0 %v2882, 96
      %v3074 = vpop.permute.xlu0 %3073
      %3075 = vrot.lane.b32.xlu0 %v2884, 96
      %v3076 = vpop.permute.xlu0 %3075
      %3077 = vrot.lane.b32.xlu0 %v2886, 96
      %v3078 = vpop.permute.xlu0 %3077
      %v3143 = vmul.f32 %v1632, %v2952
      %v3144 = vmul.f32 %v1635, %v2954
      %v3145 = vmul.f32 %v1640, %v2956
      %v3146 = vmul.f32 %v1643, %v2958
      %v3147 = vmul.f32 %v1648, %v2960
      %v3148 = vmul.f32 %v1651, %v2962
      %v3149 = vmul.f32 %v1656, %v2964
      %v3150 = vmul.f32 %v1659, %v2966
      %v3151 = vmul.f32 %v1664, %v2968
      %v3152 = vmul.f32 %v1667, %v2970
      %v3153 = vmul.f32 %v1672, %v2972
      %v3154 = vmul.f32 %v1675, %v2974
      %v3155 = vmul.f32 %v1680, %v2976
      %v3156 = vmul.f32 %v1683, %v2978
      %v3157 = vmul.f32 %v1688, %v2980
      %v3158 = vmul.f32 %v1691, %v2982
      %v3159 = vmul.f32 %v1696, %v2984
      %v3160 = vmul.f32 %v1699, %v2986
      %v3161 = vmul.f32 %v1704, %v2988
      %v3162 = vmul.f32 %v1707, %v2990
      %v3163 = vmul.f32 %v1712, %v2992
      %v3164 = vmul.f32 %v1715, %v2994
      %v3165 = vmul.f32 %v1720, %v2996
      %v3166 = vmul.f32 %v1723, %v2998
      %v3167 = vmul.f32 %v1728, %v3000
      %v3168 = vmul.f32 %v1731, %v3002
      %v3169 = vmul.f32 %v1736, %v3004
      %v3170 = vmul.f32 %v1739, %v3006
      %v3171 = vmul.f32 %v1744, %v3008
      %v3172 = vmul.f32 %v1747, %v3010
      %v3173 = vmul.f32 %v1752, %v3012
      %v3174 = vmul.f32 %v1755, %v3014
      %v3175 = vmul.f32 %v1760, %v3016
      %v3176 = vmul.f32 %v1763, %v3018
      %v3177 = vmul.f32 %v1768, %v3020
      %v3178 = vmul.f32 %v1771, %v3022
      %v3179 = vmul.f32 %v1776, %v3024
      %v3180 = vmul.f32 %v1779, %v3026
      %v3181 = vmul.f32 %v1784, %v3028
      %v3182 = vmul.f32 %v1787, %v3030
      %v3183 = vmul.f32 %v1792, %v3032
      %v3184 = vmul.f32 %v1795, %v3034
      %v3185 = vmul.f32 %v1800, %v3036
      %v3186 = vmul.f32 %v1803, %v3038
      %v3187 = vmul.f32 %v1808, %v3040
      %v3188 = vmul.f32 %v1811, %v3042
      %v3189 = vmul.f32 %v1816, %v3044
      %v3190 = vmul.f32 %v1819, %v3046
      %v3191 = vmul.f32 %v1824, %v3048
      %v3192 = vmul.f32 %v1827, %v3050
      %v3193 = vmul.f32 %v1832, %v3052
      %v3194 = vmul.f32 %v1835, %v3054
      %v3195 = vmul.f32 %v1840, %v3056
      %v3196 = vmul.f32 %v1843, %v3058
      %v3197 = vmul.f32 %v1848, %v3060
      %v3198 = vmul.f32 %v1851, %v3062
      %v3199 = vmul.f32 %v1856, %v3064
      %v3200 = vmul.f32 %v1859, %v3066
      %v3201 = vmul.f32 %v1864, %v3068
      %v3202 = vmul.f32 %v1867, %v3070
      %v3203 = vmul.f32 %v1872, %v3072
      %v3204 = vmul.f32 %v1875, %v3074
      %v3205 = vmul.f32 %v1880, %v3076
      %v3206 = vmul.f32 %v1883, %v3078
      %vm3207 = vcmask 261120
      %v3208 = vsel %vm3207, %v3143, %v2760
      %v3209 = vsel %vm3207, %v3144, %v2762
      %v3210 = vsel %vm3207, %v3145, %v2764
      %v3211 = vsel %vm3207, %v3146, %v2766
      %v3212 = vsel %vm3207, %v3147, %v2768
      %v3213 = vsel %vm3207, %v3148, %v2770
      %v3214 = vsel %vm3207, %v3149, %v2772
      %v3215 = vsel %vm3207, %v3150, %v2774
      %v3216 = vsel %vm3207, %v3151, %v2776
      %v3217 = vsel %vm3207, %v3152, %v2778
      %v3218 = vsel %vm3207, %v3153, %v2780
      %v3219 = vsel %vm3207, %v3154, %v2782
      %v3220 = vsel %vm3207, %v3155, %v2784
      %v3221 = vsel %vm3207, %v3156, %v2786
      %v3222 = vsel %vm3207, %v3157, %v2788
      %v3223 = vsel %vm3207, %v3158, %v2790
      %v3224 = vsel %vm3207, %v3159, %v2792
      %v3225 = vsel %vm3207, %v3160, %v2794
      %v3226 = vsel %vm3207, %v3161, %v2796
      %v3227 = vsel %vm3207, %v3162, %v2798
      %v3228 = vsel %vm3207, %v3163, %v2800
      %v3229 = vsel %vm3207, %v3164, %v2802
      %v3230 = vsel %vm3207, %v3165, %v2804
      %v3231 = vsel %vm3207, %v3166, %v2806
      %v3232 = vsel %vm3207, %v3167, %v2808
      %v3233 = vsel %vm3207, %v3168, %v2810
      %v3234 = vsel %vm3207, %v3169, %v2812
      %v3235 = vsel %vm3207, %v3170, %v2814
      %v3236 = vsel %vm3207, %v3171, %v2816
      %v3237 = vsel %vm3207, %v3172, %v2818
      %v3238 = vsel %vm3207, %v3173, %v2820
      %v3239 = vsel %vm3207, %v3174, %v2822
      %v3240 = vsel %vm3207, %v3175, %v2824
      %v3241 = vsel %vm3207, %v3176, %v2826
      %v3242 = vsel %vm3207, %v3177, %v2828
      %v3243 = vsel %vm3207, %v3178, %v2830
      %v3244 = vsel %vm3207, %v3179, %v2832
      %v3245 = vsel %vm3207, %v3180, %v2834
      %v3246 = vsel %vm3207, %v3181, %v2836
      %v3247 = vsel %vm3207, %v3182, %v2838
      %v3248 = vsel %vm3207, %v3183, %v2840
      %v3249 = vsel %vm3207, %v3184, %v2842
      %v3250 = vsel %vm3207, %v3185, %v2844
      %v3251 = vsel %vm3207, %v3186, %v2846
      %v3252 = vsel %vm3207, %v3187, %v2848
      %v3253 = vsel %vm3207, %v3188, %v2850
      %v3254 = vsel %vm3207, %v3189, %v2852
      %v3255 = vsel %vm3207, %v3190, %v2854
      %v3256 = vsel %vm3207, %v3191, %v2856
      %v3257 = vsel %vm3207, %v3192, %v2858
      %v3258 = vsel %vm3207, %v3193, %v2860
      %v3259 = vsel %vm3207, %v3194, %v2862
      %v3260 = vsel %vm3207, %v3195, %v2864
      %v3261 = vsel %vm3207, %v3196, %v2866
      %v3262 = vsel %vm3207, %v3197, %v2868
      %v3263 = vsel %vm3207, %v3198, %v2870
      %v3264 = vsel %vm3207, %v3199, %v2872
      %v3265 = vsel %vm3207, %v3200, %v2874
      %v3266 = vsel %vm3207, %v3201, %v2876
      %v3267 = vsel %vm3207, %v3202, %v2878
      %v3268 = vsel %vm3207, %v3203, %v2880
      %v3269 = vsel %vm3207, %v3204, %v2882
      %v3270 = vsel %vm3207, %v3205, %v2884
      %v3271 = vsel %vm3207, %v3206, %v2886
      %v3272 = vpack.c.bf16 %v3209, %v3208
      %v3273 = vpack.c.bf16 %v3211, %v3210
      %v3274 = vpack.c.bf16 %v3213, %v3212
      %v3275 = vpack.c.bf16 %v3215, %v3214
      %v3276 = vpack.c.bf16 %v3217, %v3216
      %v3277 = vpack.c.bf16 %v3219, %v3218
      %v3278 = vpack.c.bf16 %v3221, %v3220
      %v3279 = vpack.c.bf16 %v3223, %v3222
      %v3280 = vpack.c.bf16 %v3225, %v3224
      %v3281 = vpack.c.bf16 %v3227, %v3226
      %v3282 = vpack.c.bf16 %v3229, %v3228
      %v3283 = vpack.c.bf16 %v3231, %v3230
      %v3284 = vpack.c.bf16 %v3233, %v3232
      %v3285 = vpack.c.bf16 %v3235, %v3234
      %v3286 = vpack.c.bf16 %v3237, %v3236
      %v3287 = vpack.c.bf16 %v3239, %v3238
      %v3288 = vpack.c.bf16 %v3241, %v3240
      %v3289 = vpack.c.bf16 %v3243, %v3242
      %v3290 = vpack.c.bf16 %v3245, %v3244
      %v3291 = vpack.c.bf16 %v3247, %v3246
      %v3292 = vpack.c.bf16 %v3249, %v3248
      %v3293 = vpack.c.bf16 %v3251, %v3250
      %v3294 = vpack.c.bf16 %v3253, %v3252
      %v3295 = vpack.c.bf16 %v3255, %v3254
      %v3296 = vpack.c.bf16 %v3257, %v3256
      %v3297 = vpack.c.bf16 %v3259, %v3258
      %v3298 = vpack.c.bf16 %v3261, %v3260
      %v3299 = vpack.c.bf16 %v3263, %v3262
      %v3300 = vpack.c.bf16 %v3265, %v3264
      %v3301 = vpack.c.bf16 %v3267, %v3266
      %v3302 = vpack.c.bf16 %v3269, %v3268
      %v3303 = vpack.c.bf16 %v3271, %v3270
      %v3304 = vld [vmem:[#allocation5] sm:$0xff]
      %v3305 = vld [vmem:[#allocation5 + $0x8] sm:$0xff]
      %v3306 = vld [vmem:[#allocation5 + $0x10] sm:$0xff]
      %v3307 = vld [vmem:[#allocation5 + $0x18] sm:$0xff]
      %v3308 = vld [vmem:[#allocation5 + $0x20] sm:$0xff]
      %v3309 = vld [vmem:[#allocation5 + $0x28] sm:$0xff]
      %v3310 = vld [vmem:[#allocation5 + $0x30] sm:$0xff]
      %v3311 = vld [vmem:[#allocation5 + $0x38] sm:$0xff]
      %v3312 = vld [vmem:[#allocation5 + $0x40] sm:$0xff]
      %v3313 = vld [vmem:[#allocation5 + $0x48] sm:$0xff]
      %v3314 = vld [vmem:[#allocation5 + $0x50] sm:$0xff]
      %v3315 = vld [vmem:[#allocation5 + $0x58] sm:$0xff]
      %v3316 = vld [vmem:[#allocation5 + $0x60] sm:$0xff]
      %v3317 = vld [vmem:[#allocation5 + $0x68] sm:$0xff]
      %v3318 = vld [vmem:[#allocation5 + $0x70] sm:$0xff]
      %v3319 = vld [vmem:[#allocation5 + $0x78] sm:$0xff]
      %3320 = vxpose.xlu0.c.b16.start [1/8] %v1557, 128
      %3321 = vxpose.xlu0.c.b16.cont [2/8] %v1558, 128
      %3322 = vxpose.xlu0.c.b16.cont [3/8] %v1559, 128
      %3323 = vxpose.xlu0.c.b16.cont [4/8] %v1560, 128
      %3324 = vxpose.xlu0.c.b16.cont [5/8] %v1561, 128
      %3325 = vxpose.xlu0.c.b16.cont [6/8] %v1562, 128
      %3326 = vxpose.xlu0.c.b16.cont [7/8] %v1563, 128
      %3327 = vxpose.xlu0.c.b16.end [8/8] %v1564, 128
      %v3328 = vpop.trf.xlu0
      %v3329 = vpop.trf.xlu0
      %v3330 = vpop.trf.xlu0
      %v3331 = vpop.trf.xlu0
      %v3332 = vpop.trf.xlu0
      %v3333 = vpop.trf.xlu0
      %v3334 = vpop.trf.xlu0
      %v3335 = vpop.trf.xlu0
      %3336 = vxpose.xlu0.c.b16.start [1/8] %v1565, 128
      %3337 = vxpose.xlu0.c.b16.cont [2/8] %v1566, 128
      %3338 = vxpose.xlu0.c.b16.cont [3/8] %v1567, 128
      %3339 = vxpose.xlu0.c.b16.cont [4/8] %v1568, 128
      %3340 = vxpose.xlu0.c.b16.cont [5/8] %v1569, 128
      %3341 = vxpose.xlu0.c.b16.cont [6/8] %v1570, 128
      %3342 = vxpose.xlu0.c.b16.cont [7/8] %v1571, 128
      %3343 = vxpose.xlu0.c.b16.end [8/8] %v1572, 128
      %v3344 = vpop.trf.xlu0
      %v3345 = vpop.trf.xlu0
      %v3346 = vpop.trf.xlu0
      %v3347 = vpop.trf.xlu0
      %v3348 = vpop.trf.xlu0
      %v3349 = vpop.trf.xlu0
      %v3350 = vpop.trf.xlu0
      %v3351 = vpop.trf.xlu0
      %3352 = vxpose.xlu0.c.b16.start [1/8] %v1573, 128
      %3353 = vxpose.xlu0.c.b16.cont [2/8] %v1574, 128
      %3354 = vxpose.xlu0.c.b16.cont [3/8] %v1575, 128
      %3355 = vxpose.xlu0.c.b16.cont [4/8] %v1576, 128
      %3356 = vxpose.xlu0.c.b16.cont [5/8] %v1577, 128
      %3357 = vxpose.xlu0.c.b16.cont [6/8] %v1578, 128
      %3358 = vxpose.xlu0.c.b16.cont [7/8] %v1579, 128
      %3359 = vxpose.xlu0.c.b16.end [8/8] %v1580, 128
      %v3360 = vpop.trf.xlu0
      %v3361 = vpop.trf.xlu0
      %v3362 = vpop.trf.xlu0
      %v3363 = vpop.trf.xlu0
      %v3364 = vpop.trf.xlu0
      %v3365 = vpop.trf.xlu0
      %v3366 = vpop.trf.xlu0
      %v3367 = vpop.trf.xlu0
      %3368 = vxpose.xlu0.c.b16.start [1/8] %v1581, 128
      %3369 = vxpose.xlu0.c.b16.cont [2/8] %v1582, 128
      %3370 = vxpose.xlu0.c.b16.cont [3/8] %v1583, 128
      %3371 = vxpose.xlu0.c.b16.cont [4/8] %v1584, 128
      %3372 = vxpose.xlu0.c.b16.cont [5/8] %v1585, 128
      %3373 = vxpose.xlu0.c.b16.cont [6/8] %v1586, 128
      %3374 = vxpose.xlu0.c.b16.cont [7/8] %v1587, 128
      %3375 = vxpose.xlu0.c.b16.end [8/8] %v1588, 128
      %v3376 = vpop.trf.xlu0
      %v3377 = vpop.trf.xlu0
      %v3378 = vpop.trf.xlu0
      %v3379 = vpop.trf.xlu0
      %v3380 = vpop.trf.xlu0
      %v3381 = vpop.trf.xlu0
      %v3382 = vpop.trf.xlu0
      %v3383 = vpop.trf.xlu0
      %3384 = vmatprep.subr.bf16.mxu0 0
      %3385 = vmatpush1.bf16.msra.mxu0 %v3272
      %3386 = vmatprep.subr.bf16.mxu0 0
      %3387 = vmatpush1.bf16.msra.mxu0 %v3273
      %3388 = vmatprep.subr.bf16.mxu0 0
      %3389 = vmatpush1.bf16.msra.mxu0 %v3274
      %3390 = vmatprep.subr.bf16.mxu0 0
      %3391 = vmatpush1.bf16.msra.mxu0 %v3275
      %3392 = vmatprep.subr.bf16.mxu0 0
      %3393 = vmatpush1.bf16.msra.mxu0 %v3276
      %3394 = vmatprep.subr.bf16.mxu0 0
      %3395 = vmatpush1.bf16.msra.mxu0 %v3277
      %3396 = vmatprep.subr.bf16.mxu0 0
      %3397 = vmatpush1.bf16.msra.mxu0 %v3278
      %3398 = vmatprep.subr.bf16.mxu0 0
      %3399 = vmatpush1.bf16.msra.mxu0 %v3279
      %3400 = vmatprep.subr.bf16.mxu0 0
      %3401 = vmatpush1.bf16.msra.mxu0 %v3280
      %3402 = vmatprep.subr.bf16.mxu0 0
      %3403 = vmatpush1.bf16.msra.mxu0 %v3281
      %3404 = vmatprep.subr.bf16.mxu0 0
      %3405 = vmatpush1.bf16.msra.mxu0 %v3282
      %3406 = vmatprep.subr.bf16.mxu0 0
      %3407 = vmatpush1.bf16.msra.mxu0 %v3283
      %3408 = vmatprep.subr.bf16.mxu0 0
      %3409 = vmatpush1.bf16.msra.mxu0 %v3284
      %3410 = vmatprep.subr.bf16.mxu0 0
      %3411 = vmatpush1.bf16.msra.mxu0 %v3285
      %3412 = vmatprep.subr.bf16.mxu0 0
      %3413 = vmatpush1.bf16.msra.mxu0 %v3286
      %3414 = vmatprep.subr.bf16.mxu0 0
      %3415 = vmatpush1.bf16.msra.mxu0 %v3287
      %3416 = vmatprep.mubr.bf16.mxu0 %v3344
      %3417 = vmatmul.mubr.bf16.gmra.mrb[0].mxu0 %v3328
      %v3418 = vpop.f32.mrb[0].mxu0
      %v3419 = vadd.f32 0.0, %v3418
      %v3420 = vpop.f32.mrb[0].mxu0
      %v3421 = vpop.f32.mrb[0].mxu0
      %v3422 = vadd.f32 0.0, %v3421
      %v3423 = vpop.f32.mrb[0].mxu0
      %3424 = vmatprep.mubr.bf16.mxu0 %v3345
      %3425 = vmatmul.mubr.bf16.gmra.mrb[0].mxu0 %v3329
      %v3426 = vpop.f32.mrb[0].mxu0
      %v3427 = vadd.f32 0.0, %v3426
      %v3428 = vpop.f32.mrb[0].mxu0
      %v3429 = vpop.f32.mrb[0].mxu0
      %v3430 = vadd.f32 0.0, %v3429
      %v3431 = vpop.f32.mrb[0].mxu0
      %3432 = vmatprep.mubr.bf16.mxu0 %v3346
      %3433 = vmatmul.mubr.bf16.gmra.mrb[0].mxu0 %v3330
      %v3434 = vpop.f32.mrb[0].mxu0
      %v3435 = vadd.f32 0.0, %v3434
      %v3436 = vpop.f32.mrb[0].mxu0
      %v3437 = vpop.f32.mrb[0].mxu0
      %v3438 = vadd.f32 0.0, %v3437
      %v3439 = vpop.f32.mrb[0].mxu0
      %3440 = vmatprep.mubr.bf16.mxu0 %v3347
      %3441 = vmatmul.mubr.bf16.gmra.mrb[0].mxu0 %v3331
      %v3442 = vpop.f32.mrb[0].mxu0
      %v3443 = vadd.f32 0.0, %v3442
      %v3444 = vpop.f32.mrb[0].mxu0
      %v3445 = vpop.f32.mrb[0].mxu0
      %v3446 = vadd.f32 0.0, %v3445
      %v3447 = vpop.f32.mrb[0].mxu0
      %3448 = vmatprep.mubr.bf16.mxu0 %v3348
      %3449 = vmatmul.mubr.bf16.gmra.mrb[0].mxu0 %v3332
      %v3450 = vpop.f32.mrb[0].mxu0
      %v3451 = vadd.f32 0.0, %v3450
      %v3452 = vpop.f32.mrb[0].mxu0
      %v3453 = vpop.f32.mrb[0].mxu0
      %v3454 = vadd.f32 0.0, %v3453
      %v3455 = vpop.f32.mrb[0].mxu0
      %3456 = vmatprep.mubr.bf16.mxu0 %v3349
      %3457 = vmatmul.mubr.bf16.gmra.mrb[0].mxu0 %v3333
      %v3458 = vpop.f32.mrb[0].mxu0
      %v3459 = vadd.f32 0.0, %v3458
      %v3460 = vpop.f32.mrb[0].mxu0
      %v3461 = vpop.f32.mrb[0].mxu0
      %v3462 = vadd.f32 0.0, %v3461
      %v3463 = vpop.f32.mrb[0].mxu0
      %3464 = vmatprep.mubr.bf16.mxu0 %v3350
      %3465 = vmatmul.mubr.bf16.gmra.mrb[0].mxu0 %v3334
      %v3466 = vpop.f32.mrb[0].mxu0
      %v3467 = vadd.f32 0.0, %v3466
      %v3468 = vpop.f32.mrb[0].mxu0
      %v3469 = vpop.f32.mrb[0].mxu0
      %v3470 = vadd.f32 0.0, %v3469
      %v3471 = vpop.f32.mrb[0].mxu0
      %3472 = vmatprep.mubr.bf16.mxu0 %v3351
      %3473 = vmatmul.mubr.bf16.gmra.mrb[0].mxu0 %v3335
      %v3474 = vpop.f32.mrb[0].mxu0
      %v3475 = vadd.f32 0.0, %v3474
      %v3476 = vpop.f32.mrb[0].mxu0
      %v3477 = vpop.f32.mrb[0].mxu0
      %v3478 = vadd.f32 0.0, %v3477
      %v3479 = vpop.f32.mrb[0].mxu0
      %3480 = vdwg.mxu0
      %3481 = vmatprep.subr.bf16.mxu0 0
      %3482 = vmatpush1.bf16.msra.mxu0 %v3288
      %3483 = vmatprep.subr.bf16.mxu0 0
      %3484 = vmatpush1.bf16.msra.mxu0 %v3289
      %3485 = vmatprep.subr.bf16.mxu0 0
      %3486 = vmatpush1.bf16.msra.mxu0 %v3290
      %3487 = vmatprep.subr.bf16.mxu0 0
      %3488 = vmatpush1.bf16.msra.mxu0 %v3291
      %3489 = vmatprep.subr.bf16.mxu0 0
      %3490 = vmatpush1.bf16.msra.mxu0 %v3292
      %3491 = vmatprep.subr.bf16.mxu0 0
      %3492 = vmatpush1.bf16.msra.mxu0 %v3293
      %3493 = vmatprep.subr.bf16.mxu0 0
      %3494 = vmatpush1.bf16.msra.mxu0 %v3294
      %3495 = vmatprep.subr.bf16.mxu0 0
      %3496 = vmatpush1.bf16.msra.mxu0 %v3295
      %3497 = vmatprep.subr.bf16.mxu0 0
      %3498 = vmatpush1.bf16.msra.mxu0 %v3296
      %3499 = vmatprep.subr.bf16.mxu0 0
      %3500 = vmatpush1.bf16.msra.mxu0 %v3297
      %3501 = vmatprep.subr.bf16.mxu0 0
      %3502 = vmatpush1.bf16.msra.mxu0 %v3298
      %3503 = vmatprep.subr.bf16.mxu0 0
      %3504 = vmatpush1.bf16.msra.mxu0 %v3299
      %3505 = vmatprep.subr.bf16.mxu0 0
      %3506 = vmatpush1.bf16.msra.mxu0 %v3300
      %3507 = vmatprep.subr.bf16.mxu0 0
      %3508 = vmatpush1.bf16.msra.mxu0 %v3301
      %3509 = vmatprep.subr.bf16.mxu0 0
      %3510 = vmatpush1.bf16.msra.mxu0 %v3302
      %3511 = vmatprep.subr.bf16.mxu0 0
      %3512 = vmatpush1.bf16.msra.mxu0 %v3303
      %3513 = vmatprep.mubr.bf16.mxu0 %v3376
      %3514 = vmatmul.mubr.bf16.gmra.mrb[0].mxu0 %v3360
      %v3515 = vpop.f32.mrb[0].mxu0
      %v3516 = vadd.f32 %v3419, %v3515
      %v3517 = vpop.f32.mrb[0].mxu0
      %v3518 = vpop.f32.mrb[0].mxu0
      %v3519 = vadd.f32 %v3422, %v3518
      %v3520 = vpop.f32.mrb[0].mxu0
      %3521 = vmatprep.mubr.bf16.mxu0 %v3377
      %3522 = vmatmul.mubr.bf16.gmra.mrb[0].mxu0 %v3361
      %v3523 = vpop.f32.mrb[0].mxu0
      %v3524 = vadd.f32 %v3427, %v3523
      %v3525 = vpop.f32.mrb[0].mxu0
      %v3526 = vpop.f32.mrb[0].mxu0
      %v3527 = vadd.f32 %v3430, %v3526
      %v3528 = vpop.f32.mrb[0].mxu0
      %3529 = vmatprep.mubr.bf16.mxu0 %v3378
      %3530 = vmatmul.mubr.bf16.gmra.mrb[0].mxu0 %v3362
      %v3531 = vpop.f32.mrb[0].mxu0
      %v3532 = vadd.f32 %v3435, %v3531
      %v3533 = vpop.f32.mrb[0].mxu0
      %v3534 = vpop.f32.mrb[0].mxu0
      %v3535 = vadd.f32 %v3438, %v3534
      %v3536 = vpop.f32.mrb[0].mxu0
      %3537 = vmatprep.mubr.bf16.mxu0 %v3379
      %3538 = vmatmul.mubr.bf16.gmra.mrb[0].mxu0 %v3363
      %v3539 = vpop.f32.mrb[0].mxu0
      %v3540 = vadd.f32 %v3443, %v3539
      %v3541 = vpop.f32.mrb[0].mxu0
      %v3542 = vpop.f32.mrb[0].mxu0
      %v3543 = vadd.f32 %v3446, %v3542
      %v3544 = vpop.f32.mrb[0].mxu0
      %3545 = vmatprep.mubr.bf16.mxu0 %v3380
      %3546 = vmatmul.mubr.bf16.gmra.mrb[0].mxu0 %v3364
      %v3547 = vpop.f32.mrb[0].mxu0
      %v3548 = vadd.f32 %v3451, %v3547
      %v3549 = vpop.f32.mrb[0].mxu0
      %v3550 = vpop.f32.mrb[0].mxu0
      %v3551 = vadd.f32 %v3454, %v3550
      %v3552 = vpop.f32.mrb[0].mxu0
      %3553 = vmatprep.mubr.bf16.mxu0 %v3381
      %3554 = vmatmul.mubr.bf16.gmra.mrb[0].mxu0 %v3365
      %v3555 = vpop.f32.mrb[0].mxu0
      %v3556 = vadd.f32 %v3459, %v3555
      %v3557 = vpop.f32.mrb[0].mxu0
      %v3558 = vpop.f32.mrb[0].mxu0
      %v3559 = vadd.f32 %v3462, %v3558
      %v3560 = vpop.f32.mrb[0].mxu0
      %3561 = vmatprep.mubr.bf16.mxu0 %v3382
      %3562 = vmatmul.mubr.bf16.gmra.mrb[0].mxu0 %v3366
      %v3563 = vpop.f32.mrb[0].mxu0
      %v3564 = vadd.f32 %v3467, %v3563
      %v3565 = vpop.f32.mrb[0].mxu0
      %v3566 = vpop.f32.mrb[0].mxu0
      %v3567 = vadd.f32 %v3470, %v3566
      %v3568 = vpop.f32.mrb[0].mxu0
      %3569 = vmatprep.mubr.bf16.mxu0 %v3383
      %3570 = vmatmul.mubr.bf16.gmra.mrb[0].mxu0 %v3367
      %v3571 = vpop.f32.mrb[0].mxu0
      %v3572 = vadd.f32 %v3475, %v3571
      %v3573 = vpop.f32.mrb[0].mxu0
      %v3574 = vpop.f32.mrb[0].mxu0
      %v3575 = vadd.f32 %v3478, %v3574
      %v3576 = vpop.f32.mrb[0].mxu0
      %3577 = vdwg.mxu0
      %v3578 = vadd.f32 %v3304, %v3516
      %v3579 = vadd.f32 %v3305, %v3519
      %v3580 = vadd.f32 %v3306, %v3524
      %v3581 = vadd.f32 %v3307, %v3527
      %v3582 = vadd.f32 %v3308, %v3532
      %v3583 = vadd.f32 %v3309, %v3535
      %v3584 = vadd.f32 %v3310, %v3540
      %v3585 = vadd.f32 %v3311, %v3543
      %v3586 = vadd.f32 %v3312, %v3548
      %v3587 = vadd.f32 %v3313, %v3551
      %v3588 = vadd.f32 %v3314, %v3556
      %v3589 = vadd.f32 %v3315, %v3559
      %v3590 = vadd.f32 %v3316, %v3564
      %v3591 = vadd.f32 %v3317, %v3567
      %v3592 = vadd.f32 %v3318, %v3572
      %v3593 = vadd.f32 %v3319, %v3575
      %vm3594 = vcmask 523264
      %3595 = vst.msk [vmem:[#allocation5] sm:$0xff] %vm3594, %v3578
      %3596 = vst.msk [vmem:[#allocation5 + $0x8] sm:$0xff] %vm3594, %v3579
      %3597 = vst.msk [vmem:[#allocation5 + $0x10] sm:$0xff] %vm3594, %v3580
      %3598 = vst.msk [vmem:[#allocation5 + $0x18] sm:$0xff] %vm3594, %v3581
      %3599 = vst.msk [vmem:[#allocation5 + $0x20] sm:$0xff] %vm3594, %v3582
      %3600 = vst.msk [vmem:[#allocation5 + $0x28] sm:$0xff] %vm3594, %v3583
      %3601 = vst.msk [vmem:[#allocation5 + $0x30] sm:$0xff] %vm3594, %v3584
      %3602 = vst.msk [vmem:[#allocation5 + $0x38] sm:$0xff] %vm3594, %v3585
      %3603 = vst.msk [vmem:[#allocation5 + $0x40] sm:$0xff] %vm3594, %v3586
      %3604 = vst.msk [vmem:[#allocation5 + $0x48] sm:$0xff] %vm3594, %v3587
      %3605 = vst.msk [vmem:[#allocation5 + $0x50] sm:$0xff] %vm3594, %v3588
      %3606 = vst.msk [vmem:[#allocation5 + $0x58] sm:$0xff] %vm3594, %v3589
      %3607 = vst.msk [vmem:[#allocation5 + $0x60] sm:$0xff] %vm3594, %v3590
      %3608 = vst.msk [vmem:[#allocation5 + $0x68] sm:$0xff] %vm3594, %v3591
      %3609 = vst.msk [vmem:[#allocation5 + $0x70] sm:$0xff] %vm3594, %v3592
      %3610 = vst.msk [vmem:[#allocation5 + $0x78] sm:$0xff] %vm3594, %v3593
      %p3611 = scmp.eq.s32.totalorder %s18, 1
      // Predicated region
      $region53: #{tpu_custom_call.1} parent=47 // pred_check
        %p3612 = pneg %p3611
      $region54: #{tpu_custom_call.1} parent=47 // pred_check_branch
        %3614 = sbr.rel (%p3612) target = $region56
      $region55: #{tpu_custom_call.1} parent=47 // pred_region
        %v3615 = vld [vmem:[#allocation5] sm:$0xff]
        %v3616 = vld [vmem:[#allocation5 + $0x8] sm:$0xff]
        %v3617 = vld [vmem:[#allocation5 + $0x10] sm:$0xff]
        %v3618 = vld [vmem:[#allocation5 + $0x18] sm:$0xff]
        %v3619 = vld [vmem:[#allocation5 + $0x20] sm:$0xff]
        %v3620 = vld [vmem:[#allocation5 + $0x28] sm:$0xff]
        %v3621 = vld [vmem:[#allocation5 + $0x30] sm:$0xff]
        %v3622 = vld [vmem:[#allocation5 + $0x38] sm:$0xff]
        %v3623 = vld [vmem:[#allocation5 + $0x40] sm:$0xff]
        %v3624 = vld [vmem:[#allocation5 + $0x48] sm:$0xff]
        %v3625 = vld [vmem:[#allocation5 + $0x50] sm:$0xff]
        %v3626 = vld [vmem:[#allocation5 + $0x58] sm:$0xff]
        %v3627 = vld [vmem:[#allocation5 + $0x60] sm:$0xff]
        %v3628 = vld [vmem:[#allocation5 + $0x68] sm:$0xff]
        %v3629 = vld [vmem:[#allocation5 + $0x70] sm:$0xff]
        %v3630 = vld [vmem:[#allocation5 + $0x78] sm:$0xff]
        %v3631 = vld [vmem:[#allocation2] sm:$0xff]
        %v3632 = vld [vmem:[#allocation2 + $0x8] sm:$0xff]
        %v3633 = vld [vmem:[#allocation2 + $0x10] sm:$0xff]
        %v3634 = vld [vmem:[#allocation2 + $0x18] sm:$0xff]
        %v3635 = vld [vmem:[#allocation2 + $0x20] sm:$0xff]
        %v3636 = vld [vmem:[#allocation2 + $0x28] sm:$0xff]
        %v3637 = vld [vmem:[#allocation2 + $0x30] sm:$0xff]
        %v3638 = vld [vmem:[#allocation2 + $0x38] sm:$0xff]
        %v3639 = vld [vmem:[#allocation2 + $0x40] sm:$0xff]
        %v3640 = vld [vmem:[#allocation2 + $0x48] sm:$0xff]
        %v3641 = vld [vmem:[#allocation2 + $0x50] sm:$0xff]
        %v3642 = vld [vmem:[#allocation2 + $0x58] sm:$0xff]
        %v3643 = vld [vmem:[#allocation2 + $0x60] sm:$0xff]
        %v3644 = vld [vmem:[#allocation2 + $0x68] sm:$0xff]
        %v3645 = vld [vmem:[#allocation2 + $0x70] sm:$0xff]
        %v3646 = vld [vmem:[#allocation2 + $0x78] sm:$0xff]
        %v3647 = vadd.f32 %v3615, 1e-06
        %v3648 = vadd.f32 %v3616, 1e-06
        %v3649 = vadd.f32 %v3617, 1e-06
        %v3650 = vadd.f32 %v3618, 1e-06
        %v3651 = vadd.f32 %v3619, 1e-06
        %v3652 = vadd.f32 %v3620, 1e-06
        %v3653 = vadd.f32 %v3621, 1e-06
        %v3654 = vadd.f32 %v3622, 1e-06
        %v3655 = vadd.f32 %v3623, 1e-06
        %v3656 = vadd.f32 %v3624, 1e-06
        %v3657 = vadd.f32 %v3625, 1e-06
        %v3658 = vadd.f32 %v3626, 1e-06
        %v3659 = vadd.f32 %v3627, 1e-06
        %v3660 = vadd.f32 %v3628, 1e-06
        %v3661 = vadd.f32 %v3629, 1e-06
        %v3662 = vadd.f32 %v3630, 1e-06
        %v3663 = vrcp.pop %v3647
        %v3664 = vrcp.pop %v3648
        %v3665 = vrcp.pop %v3649
        %v3666 = vrcp.pop %v3650
        %v3667 = vrcp.pop %v3651
        %v3668 = vrcp.pop %v3652
        %v3669 = vrcp.pop %v3653
        %v3670 = vrcp.pop %v3654
        %v3671 = vrcp.pop %v3655
        %v3672 = vrcp.pop %v3656
        %v3673 = vrcp.pop %v3657
        %v3674 = vrcp.pop %v3658
        %v3675 = vrcp.pop %v3659
        %v3676 = vrcp.pop %v3660
        %v3677 = vrcp.pop %v3661
        %v3678 = vrcp.pop %v3662
        %3695 = vrot.lane.b32.xlu0 %v3663, 96
        %v3696 = vpop.permute.xlu0 %3695
        %3697 = vrot.lane.b32.xlu0 %v3664, 96
        %v3698 = vpop.permute.xlu0 %3697
        %3699 = vrot.lane.b32.xlu0 %v3665, 96
        %v3700 = vpop.permute.xlu0 %3699
        %3701 = vrot.lane.b32.xlu0 %v3666, 96
        %v3702 = vpop.permute.xlu0 %3701
        %3703 = vrot.lane.b32.xlu0 %v3667, 96
        %v3704 = vpop.permute.xlu0 %3703
        %3705 = vrot.lane.b32.xlu0 %v3668, 96
        %v3706 = vpop.permute.xlu0 %3705
        %3707 = vrot.lane.b32.xlu0 %v3669, 96
        %v3708 = vpop.permute.xlu0 %3707
        %3709 = vrot.lane.b32.xlu0 %v3670, 96
        %v3710 = vpop.permute.xlu0 %3709
        %3711 = vrot.lane.b32.xlu0 %v3671, 96
        %v3712 = vpop.permute.xlu0 %3711
        %3713 = vrot.lane.b32.xlu0 %v3672, 96
        %v3714 = vpop.permute.xlu0 %3713
        %3715 = vrot.lane.b32.xlu0 %v3673, 96
        %v3716 = vpop.permute.xlu0 %3715
        %3717 = vrot.lane.b32.xlu0 %v3674, 96
        %v3718 = vpop.permute.xlu0 %3717
        %3719 = vrot.lane.b32.xlu0 %v3675, 96
        %v3720 = vpop.permute.xlu0 %3719
        %3721 = vrot.lane.b32.xlu0 %v3676, 96
        %v3722 = vpop.permute.xlu0 %3721
        %3723 = vrot.lane.b32.xlu0 %v3677, 96
        %v3724 = vpop.permute.xlu0 %3723
        %3725 = vrot.lane.b32.xlu0 %v3678, 96
        %v3726 = vpop.permute.xlu0 %3725
        %v3743 = vmul.f32 %v3615, %v3696
        %v3744 = vmul.f32 %v3616, %v3698
        %v3745 = vmul.f32 %v3617, %v3700
        %v3746 = vmul.f32 %v3618, %v3702
        %v3747 = vmul.f32 %v3619, %v3704
        %v3748 = vmul.f32 %v3620, %v3706
        %v3749 = vmul.f32 %v3621, %v3708
        %v3750 = vmul.f32 %v3622, %v3710
        %v3751 = vmul.f32 %v3623, %v3712
        %v3752 = vmul.f32 %v3624, %v3714
        %v3753 = vmul.f32 %v3625, %v3716
        %v3754 = vmul.f32 %v3626, %v3718
        %v3755 = vmul.f32 %v3627, %v3720
        %v3756 = vmul.f32 %v3628, %v3722
        %v3757 = vmul.f32 %v3629, %v3724
        %v3758 = vmul.f32 %v3630, %v3726
        %v3759 = vadd.f32 %v3631, %v3743
        %v3760 = vadd.f32 %v3632, %v3744
        %v3761 = vadd.f32 %v3633, %v3745
        %v3762 = vadd.f32 %v3634, %v3746
        %v3763 = vadd.f32 %v3635, %v3747
        %v3764 = vadd.f32 %v3636, %v3748
        %v3765 = vadd.f32 %v3637, %v3749
        %v3766 = vadd.f32 %v3638, %v3750
        %v3767 = vadd.f32 %v3639, %v3751
        %v3768 = vadd.f32 %v3640, %v3752
        %v3769 = vadd.f32 %v3641, %v3753
        %v3770 = vadd.f32 %v3642, %v3754
        %v3771 = vadd.f32 %v3643, %v3755
        %v3772 = vadd.f32 %v3644, %v3756
        %v3773 = vadd.f32 %v3645, %v3757
        %v3774 = vadd.f32 %v3646, %v3758
        %v3775 = vld [vmem:[%s5] sm:$0x1]
        %v3777 = vlaneseq
        %v3778 = vshrl.u32 %v3777, 7
        %v3779 = vsub.s32 0, %v3778
        %v3780 = vrot.slane %v3775, %v3779
        %v3782 = vmul.f32 %v3759, %v3780
        %v3783 = vmul.f32 %v3760, %v3780
        %v3784 = vmul.f32 %v3761, %v3780
        %v3785 = vmul.f32 %v3762, %v3780
        %v3786 = vmul.f32 %v3763, %v3780
        %v3787 = vmul.f32 %v3764, %v3780
        %v3788 = vmul.f32 %v3765, %v3780
        %v3789 = vmul.f32 %v3766, %v3780
        %v3790 = vmul.f32 %v3767, %v3780
        %v3791 = vmul.f32 %v3768, %v3780
        %v3792 = vmul.f32 %v3769, %v3780
        %v3793 = vmul.f32 %v3770, %v3780
        %v3794 = vmul.f32 %v3771, %v3780
        %v3795 = vmul.f32 %v3772, %v3780
        %v3796 = vmul.f32 %v3773, %v3780
        %v3797 = vmul.f32 %v3774, %v3780
        %v3798 = vld [vmem:[%s6] sm:$0x1]
        %v3800 = vlaneseq
        %v3801 = vshrl.u32 %v3800, 7
        %v3802 = vsub.s32 0, %v3801
        %v3803 = vrot.slane %v3798, %v3802
        %v3805 = vadd.f32 %v3782, %v3803
        %v3806 = vadd.f32 %v3783, %v3803
        %v3807 = vadd.f32 %v3784, %v3803
        %v3808 = vadd.f32 %v3785, %v3803
        %v3809 = vadd.f32 %v3786, %v3803
        %v3810 = vadd.f32 %v3787, %v3803
        %v3811 = vadd.f32 %v3788, %v3803
        %v3812 = vadd.f32 %v3789, %v3803
        %v3813 = vadd.f32 %v3790, %v3803
        %v3814 = vadd.f32 %v3791, %v3803
        %v3815 = vadd.f32 %v3792, %v3803
        %v3816 = vadd.f32 %v3793, %v3803
        %v3817 = vadd.f32 %v3794, %v3803
        %v3818 = vadd.f32 %v3795, %v3803
        %v3819 = vadd.f32 %v3796, %v3803
        %v3820 = vadd.f32 %v3797, %v3803
        %v3821 = vmax.f32 %v3805, 0.0
        %v3822 = vmax.f32 %v3806, 0.0
        %v3823 = vmax.f32 %v3807, 0.0
        %v3824 = vmax.f32 %v3808, 0.0
        %v3825 = vmax.f32 %v3809, 0.0
        %v3826 = vmax.f32 %v3810, 0.0
        %v3827 = vmax.f32 %v3811, 0.0
        %v3828 = vmax.f32 %v3812, 0.0
        %v3829 = vmax.f32 %v3813, 0.0
        %v3830 = vmax.f32 %v3814, 0.0
        %v3831 = vmax.f32 %v3815, 0.0
        %v3832 = vmax.f32 %v3816, 0.0
        %v3833 = vmax.f32 %v3817, 0.0
        %v3834 = vmax.f32 %v3818, 0.0
        %v3835 = vmax.f32 %v3819, 0.0
        %v3836 = vmax.f32 %v3820, 0.0
        %v3837 = vld [vmem:[%s0] sm:$0xff]
        %v3838 = vld [vmem:[%s0 + $0x8] sm:$0xff]
        %v3839 = vld [vmem:[%s0 + $0x10] sm:$0xff]
        %v3840 = vld [vmem:[%s0 + $0x18] sm:$0xff]
        %v3841 = vld [vmem:[%s0 + $0x20] sm:$0xff]
        %v3842 = vld [vmem:[%s0 + $0x28] sm:$0xff]
        %v3843 = vld [vmem:[%s0 + $0x30] sm:$0xff]
        %v3844 = vld [vmem:[%s0 + $0x38] sm:$0xff]
        %v3845 = vld [vmem:[%s0 + $0x40] sm:$0xff]
        %v3846 = vld [vmem:[%s0 + $0x48] sm:$0xff]
        %v3847 = vld [vmem:[%s0 + $0x50] sm:$0xff]
        %v3848 = vld [vmem:[%s0 + $0x58] sm:$0xff]
        %v3849 = vld [vmem:[%s0 + $0x60] sm:$0xff]
        %v3850 = vld [vmem:[%s0 + $0x68] sm:$0xff]
        %v3851 = vld [vmem:[%s0 + $0x70] sm:$0xff]
        %v3852 = vld [vmem:[%s0 + $0x78] sm:$0xff]
        %v3853 = vadd.f32 %v3837, %v3821
        %v3854 = vadd.f32 %v3838, %v3822
        %v3855 = vadd.f32 %v3839, %v3823
        %v3856 = vadd.f32 %v3840, %v3824
        %v3857 = vadd.f32 %v3841, %v3825
        %v3858 = vadd.f32 %v3842, %v3826
        %v3859 = vadd.f32 %v3843, %v3827
        %v3860 = vadd.f32 %v3844, %v3828
        %v3861 = vadd.f32 %v3845, %v3829
        %v3862 = vadd.f32 %v3846, %v3830
        %v3863 = vadd.f32 %v3847, %v3831
        %v3864 = vadd.f32 %v3848, %v3832
        %v3865 = vadd.f32 %v3849, %v3833
        %v3866 = vadd.f32 %v3850, %v3834
        %v3867 = vadd.f32 %v3851, %v3835
        %v3868 = vadd.f32 %v3852, %v3836
        %3869 = vst.msk [vmem:[%s7] sm:$0xff] %vm3207, %v3853
        %3870 = vst.msk [vmem:[%s7 + $0x8] sm:$0xff] %vm3207, %v3854
        %3871 = vst.msk [vmem:[%s7 + $0x10] sm:$0xff] %vm3207, %v3855
        %3872 = vst.msk [vmem:[%s7 + $0x18] sm:$0xff] %vm3207, %v3856
        %3873 = vst.msk [vmem:[%s7 + $0x20] sm:$0xff] %vm3207, %v3857
        %3874 = vst.msk [vmem:[%s7 + $0x28] sm:$0xff] %vm3207, %v3858
        %3875 = vst.msk [vmem:[%s7 + $0x30] sm:$0xff] %vm3207, %v3859
        %3876 = vst.msk [vmem:[%s7 + $0x38] sm:$0xff] %vm3207, %v3860
        %3877 = vst.msk [vmem:[%s7 + $0x40] sm:$0xff] %vm3207, %v3861
        %3878 = vst.msk [vmem:[%s7 + $0x48] sm:$0xff] %vm3207, %v3862
        %3879 = vst.msk [vmem:[%s7 + $0x50] sm:$0xff] %vm3207, %v3863
        %3880 = vst.msk [vmem:[%s7 + $0x58] sm:$0xff] %vm3207, %v3864
        %3881 = vst.msk [vmem:[%s7 + $0x60] sm:$0xff] %vm3207, %v3865
        %3882 = vst.msk [vmem:[%s7 + $0x68] sm:$0xff] %vm3207, %v3866
        %3883 = vst.msk [vmem:[%s7 + $0x70] sm:$0xff] %vm3207, %v3867
        %3884 = vst.msk [vmem:[%s7 + $0x78] sm:$0xff] %vm3207, %v3868
      $region56: #{tpu_custom_call.1} parent=47 // pred_fallthru
        _
      // Predicated region
      $region57: #{tpu_custom_call.1} parent=47 // pred_check
        %p3885 = pneg %p188
      $region58: #{tpu_custom_call.1} parent=47 // pred_check_branch
        %3887 = sbr.rel (%p3885) target = $region60
      $region59: #{tpu_custom_call.1} parent=47 // pred_region
        _
      $region60: #{tpu_custom_call.1} parent=47 // pred_fallthru
        _
      // Predicated region
      $region61: #{tpu_custom_call.1} parent=47 // pred_check
        %p3888 = pneg %p188
      $region62: #{tpu_custom_call.1} parent=47 // pred_check_branch
        %3890 = sbr.rel (%p3888) target = $region64
      $region63: #{tpu_custom_call.1} parent=47 // pred_region
        _
      $region64: #{tpu_custom_call.1} parent=47 // pred_fallthru
        _
    $region48: #{tpu_custom_call.1} parent=5 // pred_fallthru
      _
    %p3891 = scmp.le.s32.totalorder 2, %s13
    // Predicated region
    $region65: #{tpu_custom_call.1} parent=5 // pred_check
      %p3892 = pneg %p3891
    $region66: #{tpu_custom_call.1} parent=5 // pred_check_branch
      %3894 = sbr.rel (%p3892) target = $region68
    $region67: #{tpu_custom_call.1} parent=5 // pred_region
      %s3895 = ssub.s32 %s13, 2
    $region68: #{tpu_custom_call.1} parent=5 // pred_fallthru
      _
  $region6: #{tpu_custom_call.1} parent=0 // loop_footer
    %s17 = sadd.s32 1, %s13
  $region7: #{tpu_custom_call.1} parent=0 // loop_footer_branch
    %12 = sbr.rel target = $region3
  $region8: #{tpu_custom_call.1} parent=0 // loop_exit
    _

</llo_original>
